<compile_context>
chip_gen: v7x
topology: tpu7x:2x2x1
jax: 0.10.0
libtpu: 0.0.40
codegen_flags: <defaults>
</compile_context>

<pallas_src>
import functools
import math

import jax
import jax.numpy as jnp
from jax.experimental import pallas as pl
from jax.experimental.pallas import tpu as pltpu


def attention_block_kernel(
    x_ref,                 # (Bt, L, D) input block, f32
    wqkv_ref,              # (D, 3D)   fused in-projection weight (in,out), compute dtype
    bqkv_ref,              # (1, 3D)   fused in-projection bias, f32 (Q part pre-scaled)
    wo_ref,                # (D, D)    out-projection weight (in,out), compute dtype
    bo_ref,                # (1, D)
    g1_ref, be1_ref,       # (1, D)    LayerNorm1 gamma/beta
    w1_ref, b1_ref,        # (D, F), (1, F)
    w2_ref, b2_ref,        # (F, D), (1, D)
    g2_ref, be2_ref,       # (1, D)    LayerNorm2 gamma/beta
    out_ref,               # (Bt, L, D)
    attn_ref=None,         # (Bt, L, L) head-averaged attention weights (optional)
    *, nhead, eps, compute_dtype, need_weights, ffn_chunk,
):
    Bt, L, D = x_ref.shape
    hd = D // nhead
    cd = compute_dtype

    # Flatten the batch tile into the matmul M dimension (leading-dim-only reshape).
    x = x_ref[...].astype(jnp.float32).reshape(Bt * L, D)

    # ---- fused in-projection: one MXU pass with N = 3D (Q already scaled in weights) ----
    qkv_f32 = jnp.dot(x.astype(cd), wqkv_ref[...],
                      preferred_element_type=jnp.float32) + bqkv_ref[...]   # (Bt*L, 3D)
    qkv = qkv_f32.astype(cd)      # one cast for the whole slab; head slices reuse it

    inv_nhead = 1.0 / nhead
    ctx_heads = []
    for h in range(nhead):                           # static loop over heads
        qh = qkv[:, h * hd:(h + 1) * hd].reshape(Bt, L, hd)
        kh = qkv[:, D + h * hd:D + (h + 1) * hd].reshape(Bt, L, hd)
        vh = qkv[:, 2 * D + h * hd:2 * D + (h + 1) * hd].reshape(Bt, L, hd)

        # batched (over Bt) scores, contraction on hd -- no explicit transpose
        s = jnp.einsum('bld,bmd->blm', qh, kh,
                       preferred_element_type=jnp.float32)              # (Bt, L, L) f32
        s = s - jnp.max(s, axis=-1, keepdims=True)
        p = jnp.exp(s)                                                  # unnormalized
        denom = jnp.sum(p, axis=-1, keepdims=True)

        if need_weights:
            # exact reciprocal: normalized weights are returned to the caller
            inv = pl.reciprocal(denom, approx=False)
            p = p * inv
            contrib = p * inv_nhead
            if h == 0:
                attn_ref[...] = contrib          # accumulate directly in the out block
            else:
                attn_ref[...] += contrib
            ctx_h = jnp.einsum('blm,bmd->bld', p.astype(cd), vh,
                               preferred_element_type=jnp.float32)      # (Bt, L, hd)
        else:
            # deferred normalization: scale the (L, hd) context, not the (L, L) probs.
            # approx reciprocal runs on the (otherwise idle) EUP slot.
            inv = pl.reciprocal(denom, approx=True)
            ctx_h = jnp.einsum('blm,bmd->bld', p.astype(cd), vh,
                               preferred_element_type=jnp.float32) * inv

        ctx_heads.append(ctx_h.reshape(Bt * L, hd).astype(cd))

    # Concatenate all heads along lanes, then ONE (Bt*L, D) x (D, D) Wo matmul.
    ctx = jnp.concatenate(ctx_heads, axis=-1)                            # (Bt*L, D) cd
    attn_out = jnp.dot(ctx, wo_ref[...],
                       preferred_element_type=jnp.float32) + bo_ref[...]

    # ---- residual + LayerNorm 1 (f32) ----
    y = x + attn_out
    mu = jnp.mean(y, axis=-1, keepdims=True)
    var = jnp.mean((y - mu) * (y - mu), axis=-1, keepdims=True)
    y = (y - mu) * jax.lax.rsqrt(var + eps) * g1_ref[...] + be1_ref[...]

    # ---- feed-forward (relu), tiled over the F dimension ----
    F_dim = w1_ref.shape[1]
    fc = min(ffn_chunk, F_dim)
    y_cd = y.astype(cd)
    ff = jnp.zeros((Bt * L, D), jnp.float32)
    for c0 in range(0, F_dim, fc):
        c1 = min(c0 + fc, F_dim)
        h1c = jnp.dot(y_cd, w1_ref[:, c0:c1],
                      preferred_element_type=jnp.float32) + b1_ref[:, c0:c1]
        h1c = jnp.maximum(h1c, 0.0)
        ff = ff + jnp.dot(h1c.astype(cd), w2_ref[c0:c1, :],
                          preferred_element_type=jnp.float32)
    ff = ff + b2_ref[...]

    # ---- residual + LayerNorm 2 (f32) ----
    z = y + ff
    mu2 = jnp.mean(z, axis=-1, keepdims=True)
    var2 = jnp.mean((z - mu2) * (z - mu2), axis=-1, keepdims=True)
    z = (z - mu2) * jax.lax.rsqrt(var2 + eps) * g2_ref[...] + be2_ref[...]
    out_ref[...] = z.reshape(Bt, L, D).astype(out_ref.dtype)


def _pick_block_b(B, L, target_rows=512):
    """Largest divisor of B s.t. Bt*L ~ target_rows, but keep >=2 grid steps when B>1
    (v7x has 2 TensorCores; a 1-step grid leaves half the chip idle)."""
    bt = min(B, max(1, target_rows // max(L, 1)))
    bt = min(bt, max(1, B // 2))
    while B % bt:
        bt -= 1
    return max(bt, 1)


def attention_block_forward(x, params, nhead, eps=1e-5,
                            compute_dtype=jnp.bfloat16, need_weights=True,
                            block_b=None, ffn_chunk=512):
    """x: (B, L, D) float32. Returns (out (B,L,D), attn_weights (B,L,L) or None)."""
    B, L, D = x.shape
    assert D % nhead == 0, "d_model must be divisible by nhead"
    cd = compute_dtype
    hd = D // nhead
    scale = 1.0 / math.sqrt(hd)

    # Fuse QKV, pre-transpose PyTorch (out,in)->(in,out), fold 1/sqrt(hd) into Q cols.
    wqkv = jnp.concatenate(
        [params["wq"].T * scale, params["wk"].T, params["wv"].T], axis=1).astype(cd)
    bqkv = jnp.concatenate(
        [params["bq"] * scale, params["bk"], params["bv"]]
    ).reshape(1, 3 * D).astype(jnp.float32)
    wo = params["wo"].T.astype(cd)
    w1 = params["w1"].T.astype(cd)
    w2 = params["w2"].T.astype(cd)
    row = lambda v: v.reshape(1, -1).astype(jnp.float32)
    bo, b1, b2 = row(params["bo"]), row(params["b1"]), row(params["b2"])
    g1, be1 = row(params["ln1_g"]), row(params["ln1_b"])
    g2, be2 = row(params["ln2_g"]), row(params["ln2_b"])
    Fdim = w1.shape[1]

    Bt = block_b if block_b is not None else _pick_block_b(B, L)
    assert B % Bt == 0
    grid = (B // Bt,)

    weights = (wqkv, bqkv, wo, bo, g1, be1, w1, b1, w2, b2, g2, be2)

    def full(a, single):
        nd = a.ndim
        if single:
            # revisited every grid step -> single-buffer to halve weight VMEM
            return pl.BlockSpec(a.shape, lambda b: (0,) * nd,
                                pipeline_mode=pl.Buffered(1))
        return pl.BlockSpec(a.shape, lambda b: (0,) * nd)

    x_spec = pl.BlockSpec((Bt, L, D), lambda b: (b, 0, 0))
    if need_weights:
        out_shape = (jax.ShapeDtypeStruct((B, L, D), jnp.float32),
                     jax.ShapeDtypeStruct((B, L, L), jnp.float32))
        out_specs = (pl.BlockSpec((Bt, L, D), lambda b: (b, 0, 0)),
                     pl.BlockSpec((Bt, L, L), lambda b: (b, 0, 0)))
    else:
        out_shape = jax.ShapeDtypeStruct((B, L, D), jnp.float32)
        out_specs = pl.BlockSpec((Bt, L, D), lambda b: (b, 0, 0))

    # VMEM budget: weights (conservatively x2) + double-buffered IO blocks + live
    # intermediates (qkv slab, ctx, per-head scores, FFN chunk), with headroom.
    cds = jnp.dtype(cd).itemsize
    wbytes = sum(int(w.size) * (cds if w.dtype == cd else 4) for w in weights) * 2
    io_bytes = Bt * L * D * 4 * 2 * 2 + (Bt * L * L * 4 * 2 if need_weights else 0)
    interm = Bt * L * (3 * D * (4 + cds) + 2 * D * 4 + 3 * L * 4
                       + 2 * min(ffn_chunk, Fdim) * 4)
    vmem_limit = int(min(64 * 2**20, max(16 * 2**20, (wbytes + io_bytes + interm) * 2)))

    kernel = functools.partial(attention_block_kernel, nhead=nhead, eps=eps,
                               compute_dtype=cd, need_weights=need_weights,
                               ffn_chunk=ffn_chunk)
    cp = pltpu.CompilerParams(dimension_semantics=("parallel",),
                              vmem_limit_bytes=vmem_limit)

    def call(single_buffer_weights):
        in_specs = [x_spec] + [full(w, single_buffer_weights) for w in weights]
        return pl.pallas_call(
            kernel, out_shape=out_shape, grid=grid,
            in_specs=in_specs, out_specs=out_specs, compiler_params=cp,
        )(x, *weights)

    try:
        res = call(True)
    except Exception:
        # Fallback if this JAX build rejects pipeline_mode=pl.Buffered(1).
        res = call(False)

    if need_weights:
        return res[0], res[1]
    return res, None


# ---------------- pure-JAX reference (PyTorch semantics, eval mode) ----------------
def reference_forward(x, p, nhead, eps=1e-5):
    B, L, D = x.shape
    hd = D // nhead

    def ln(v, g, b):
        mu = jnp.mean(v, axis=-1, keepdims=True)
        var = jnp.mean((v - mu) ** 2, axis=-1, keepdims=True)
        return (v - mu) / jnp.sqrt(var + eps) * g + b

    q = x @ p["wq"].T + p["bq"]
    k = x @ p["wk"].T + p["bk"]
    v = x @ p["wv"].T + p["bv"]
    split = lambda t: t.reshape(B, L, nhead, hd).transpose(0, 2, 1, 3)
    qh, kh, vh = split(q), split(k), split(v)
    s = jnp.einsum("bhld,bhmd->bhlm", qh, kh) / jnp.sqrt(hd)
    pa = jax.nn.softmax(s, axis=-1)
    attn_avg = pa.mean(axis=1)
    o = jnp.einsum("bhlm,bhmd->bhld", pa, vh).transpose(0, 2, 1, 3).reshape(B, L, D)
    o = o @ p["wo"].T + p["bo"]
    y = ln(x + o, p["ln1_g"], p["ln1_b"])
    ff = jnp.maximum(y @ p["w1"].T + p["b1"], 0.0) @ p["w2"].T + p["b2"]
    out = ln(y + ff, p["ln2_g"], p["ln2_b"])
    return out, attn_avg


def init_params(key, d_model, nhead, dim_feedforward):
    ks = jax.random.split(key, 16)
    n = lambda k, shape, s=0.05: (s * jax.random.normal(k, shape)).astype(jnp.float32)
    return {
        "wq": n(ks[0], (d_model, d_model)), "bq": n(ks[1], (d_model,)),
        "wk": n(ks[2], (d_model, d_model)), "bk": n(ks[3], (d_model,)),
        "wv": n(ks[4], (d_model, d_model)), "bv": n(ks[5], (d_model,)),
        "wo": n(ks[6], (d_model, d_model)), "bo": n(ks[7], (d_model,)),
        "w1": n(ks[8], (dim_feedforward, d_model)), "b1": n(ks[9], (dim_feedforward,)),
        "w2": n(ks[10], (d_model, dim_feedforward)), "b2": n(ks[11], (d_model,)),
        "ln1_g": (1.0 + 0.1 * jax.random.normal(ks[12], (d_model,))).astype(jnp.float32),
        "ln1_b": n(ks[13], (d_model,)),
        "ln2_g": (1.0 + 0.1 * jax.random.normal(ks[14], (d_model,))).astype(jnp.float32),
        "ln2_b": n(ks[15], (d_model,)),
    }


if __name__ == "__main__":
    # Small shapes: batch=2, seq=8, d_model=32, nhead=4, dim_feedforward=64.
    # NOTE: real deployments should keep D / 3D / F / L multiples of 128 (lane width);
    # this toy config runs with masked partial stores on purpose (correctness check).
    B, L, D, NH, FF = 2, 8, 32, 4, 64
    key = jax.random.PRNGKey(0)
    kx, kp = jax.random.split(key)
    x = jax.random.normal(kx, (B, L, D), dtype=jnp.float32)
    params = init_params(kp, D, NH, FF)

    ref_out, ref_attn = reference_forward(x, params, NH)

    # f32 compute path (exact-semantics check).
    out, attn = attention_block_forward(x, params, NH, compute_dtype=jnp.float32)
    out = jax.block_until_ready(out)
    attn = jax.block_until_ready(attn)
    assert out.shape == (B, L, D) and attn.shape == (B, L, L)
    assert jnp.allclose(out, ref_out, atol=1e-4, rtol=1e-4)
    assert jnp.allclose(attn, ref_attn, atol=1e-4, rtol=1e-4)

    # bf16 matmul-operand path (default; MXU-native on v6e/v7x); f32 softmax/LN/acc.
    out_bf, attn_bf = attention_block_forward(x, params, NH)
    out_bf = jax.block_until_ready(out_bf)
    assert jnp.allclose(out_bf, ref_out, atol=1e-1, rtol=1e-1)
    assert jnp.allclose(attn_bf, ref_attn, atol=5e-2, rtol=5e-2)

    # need_weights=False fast path (skips attn writeback; approx EUP reciprocal).
    out_nw, none_w = attention_block_forward(x, params, NH, need_weights=False,
                                             compute_dtype=jnp.float32)
    out_nw = jax.block_until_ready(out_nw)
    assert none_w is None
    assert jnp.allclose(out_nw, ref_out, atol=1e-2, rtol=1e-2)

    # TODO(synk): dropout layers are treated as identity (eval-mode semantics);
    # training-mode stochastic dropout would need pltpu.prng_* inside the kernel.
    print("KERNEL_OK")
</pallas_src>

<mosaic_0001>
module attributes {stable_mosaic.version = 11 : i64} {
  func.func @attention_block_kernel(%arg0: i32, %arg1: memref<1x8x32xf32, #tpu.memory_space<vmem>>, %arg2: memref<32x96xf32, #tpu.memory_space<vmem>>, %arg3: memref<1x96xf32, #tpu.memory_space<vmem>>, %arg4: memref<32x32xf32, #tpu.memory_space<vmem>>, %arg5: memref<1x32xf32, #tpu.memory_space<vmem>>, %arg6: memref<1x32xf32, #tpu.memory_space<vmem>>, %arg7: memref<1x32xf32, #tpu.memory_space<vmem>>, %arg8: memref<32x64xf32, #tpu.memory_space<vmem>>, %arg9: memref<1x64xf32, #tpu.memory_space<vmem>>, %arg10: memref<64x32xf32, #tpu.memory_space<vmem>>, %arg11: memref<1x32xf32, #tpu.memory_space<vmem>>, %arg12: memref<1x32xf32, #tpu.memory_space<vmem>>, %arg13: memref<1x32xf32, #tpu.memory_space<vmem>>, %arg14: memref<1x8x32xf32, #tpu.memory_space<vmem>>, %arg15: memref<1x8x8xf32, #tpu.memory_space<vmem>>) attributes {dimension_semantics = [#tpu.dimension_semantics<parallel>], iteration_bounds = array<i64: 2>, scalar_prefetch = 0 : i64, scratch_operands = 0 : i64, tpu.core_type = #tpu.core_type<tc>, window_params = [{transform_indices = @transform_0, window_bounds = array<i64: 1, 8, 32>}, {pipeline_mode = #tpu.pipeline_mode<synchronous>, transform_indices = @transform_1, window_bounds = array<i64: 32, 96>}, {pipeline_mode = #tpu.pipeline_mode<synchronous>, transform_indices = @transform_2, window_bounds = array<i64: 1, 96>}, {pipeline_mode = #tpu.pipeline_mode<synchronous>, transform_indices = @transform_3, window_bounds = array<i64: 32, 32>}, {pipeline_mode = #tpu.pipeline_mode<synchronous>, transform_indices = @transform_4, window_bounds = array<i64: 1, 32>}, {pipeline_mode = #tpu.pipeline_mode<synchronous>, transform_indices = @transform_5, window_bounds = array<i64: 1, 32>}, {pipeline_mode = #tpu.pipeline_mode<synchronous>, transform_indices = @transform_6, window_bounds = array<i64: 1, 32>}, {pipeline_mode = #tpu.pipeline_mode<synchronous>, transform_indices = @transform_7, window_bounds = array<i64: 32, 64>}, {pipeline_mode = #tpu.pipeline_mode<synchronous>, transform_indices = @transform_8, window_bounds = array<i64: 1, 64>}, {pipeline_mode = #tpu.pipeline_mode<synchronous>, transform_indices = @transform_9, window_bounds = array<i64: 64, 32>}, {pipeline_mode = #tpu.pipeline_mode<synchronous>, transform_indices = @transform_10, window_bounds = array<i64: 1, 32>}, {pipeline_mode = #tpu.pipeline_mode<synchronous>, transform_indices = @transform_11, window_bounds = array<i64: 1, 32>}, {pipeline_mode = #tpu.pipeline_mode<synchronous>, transform_indices = @transform_12, window_bounds = array<i64: 1, 32>}, {transform_indices = @transform_13, window_bounds = array<i64: 1, 8, 32>}, {transform_indices = @transform_14, window_bounds = array<i64: 1, 8, 8>}]} {
    %c0 = arith.constant 0 : index
    %c0_0 = arith.constant 0 : index
    %c0_1 = arith.constant 0 : index
    %0 = vector.load %arg1[%c0, %c0_0, %c0_1] : memref<1x8x32xf32, #tpu.memory_space<vmem>>, vector<1x8x32xf32>
    %1 = vector.shape_cast %0 : vector<1x8x32xf32> to vector<8x32xf32>
    %c0_2 = arith.constant 0 : index
    %c0_3 = arith.constant 0 : index
    %2 = vector.load %arg2[%c0_2, %c0_3] : memref<32x96xf32, #tpu.memory_space<vmem>>, vector<32x96xf32>
    %cst = arith.constant dense<0.000000e+00> : vector<8x96xf32>
    %3 = tpu.matmul %1, %2, %cst {dimension_numbers = #tpu.dot_dimension_numbers<[1], [0], [0], [1], [0, 0, 1, 1], [], []>} : vector<8x32xf32>, vector<32x96xf32>, vector<8x96xf32> -> vector<8x96xf32>
    %c0_4 = arith.constant 0 : index
    %c0_5 = arith.constant 0 : index
    %4 = vector.load %arg3[%c0_4, %c0_5] : memref<1x96xf32, #tpu.memory_space<vmem>>, vector<1x96xf32>
    %5 = vector.broadcast %4 : vector<1x96xf32> to vector<8x96xf32>
    %6 = arith.addf %3, %5 : vector<8x96xf32>
    %7 = vector.extract_strided_slice %6 {offsets = [0, 0], sizes = [8, 8], strides = [1, 1]} : vector<8x96xf32> to vector<8x8xf32>
    %8 = vector.shape_cast %7 : vector<8x8xf32> to vector<1x8x8xf32>
    %9 = vector.extract_strided_slice %6 {offsets = [0, 32], sizes = [8, 8], strides = [1, 1]} : vector<8x96xf32> to vector<8x8xf32>
    %10 = vector.shape_cast %9 : vector<8x8xf32> to vector<1x8x8xf32>
    %11 = vector.extract_strided_slice %6 {offsets = [0, 64], sizes = [8, 8], strides = [1, 1]} : vector<8x96xf32> to vector<8x8xf32>
    %12 = vector.shape_cast %11 : vector<8x8xf32> to vector<1x8x8xf32>
    "tpu.trace_start"() <{level = 10 : i32, message = "bld,bmd->blm"}> : () -> ()
    %cst_6 = arith.constant dense<0.000000e+00> : vector<1x8x8xf32>
    %13 = tpu.matmul %8, %10, %cst_6 {dimension_numbers = #tpu.dot_dimension_numbers<[2], [2], [1], [1], [0, 0, 0, 1, 1, 1], [0], [0]>} : vector<1x8x8xf32>, vector<1x8x8xf32>, vector<1x8x8xf32> -> vector<1x8x8xf32>
    "tpu.trace_stop"() : () -> ()
    %cst_7 = arith.constant dense<0xFF800000> : vector<1x8xf32>
    %14 = vector.multi_reduction <maximumf>, %13, %cst_7 [2] : vector<1x8x8xf32> to vector<1x8xf32>
    %15 = vector.shape_cast %14 : vector<1x8xf32> to vector<1x8x1xf32>
    %16 = vector.broadcast %15 : vector<1x8x1xf32> to vector<1x8x8xf32>
    %17 = arith.subf %13, %16 : vector<1x8x8xf32>
    %18 = math.exp %17 : vector<1x8x8xf32>
    %cst_8 = arith.constant dense<0.000000e+00> : vector<1x8xf32>
    %19 = vector.multi_reduction <add>, %18, %cst_8 [2] : vector<1x8x8xf32> to vector<1x8xf32>
    %20 = vector.shape_cast %19 : vector<1x8xf32> to vector<1x8x1xf32>
    %21 = tpu.reciprocal %20 : vector<1x8x1xf32> -> vector<1x8x1xf32>
    %22 = vector.broadcast %21 : vector<1x8x1xf32> to vector<1x8x8xf32>
    %23 = arith.mulf %18, %22 : vector<1x8x8xf32>
    %cst_9 = arith.constant 2.500000e-01 : f32
    %24 = vector.broadcast %cst_9 : f32 to vector<1x8x8xf32>
    %25 = arith.mulf %23, %24 : vector<1x8x8xf32>
    %c0_10 = arith.constant 0 : index
    %c0_11 = arith.constant 0 : index
    %c0_12 = arith.constant 0 : index
    %26 = vector.load %arg15[%c0_10, %c0_11, %c0_12] : memref<1x8x8xf32, #tpu.memory_space<vmem>>, vector<1x8x8xf32>
    tpu.vector_store %arg15[%c0_10, %c0_11, %c0_12], %25 {strides = array<i32>} : memref<1x8x8xf32, #tpu.memory_space<vmem>>, vector<1x8x8xf32>,
    "tpu.trace_start"() <{level = 10 : i32, message = "blm,bmd->bld"}> : () -> ()
    %cst_13 = arith.constant dense<0.000000e+00> : vector<1x8x8xf32>
    %27 = tpu.matmul %23, %12, %cst_13 {dimension_numbers = #tpu.dot_dimension_numbers<[2], [1], [1], [2], [0, 0, 0, 1, 1, 2], [0], [0]>} : vector<1x8x8xf32>, vector<1x8x8xf32>, vector<1x8x8xf32> -> vector<1x8x8xf32>
    "tpu.trace_stop"() : () -> ()
    %28 = vector.shape_cast %27 : vector<1x8x8xf32> to vector<8x8xf32>
    %29 = vector.extract_strided_slice %6 {offsets = [0, 8], sizes = [8, 8], strides = [1, 1]} : vector<8x96xf32> to vector<8x8xf32>
    %30 = vector.shape_cast %29 : vector<8x8xf32> to vector<1x8x8xf32>
    %31 = vector.extract_strided_slice %6 {offsets = [0, 40], sizes = [8, 8], strides = [1, 1]} : vector<8x96xf32> to vector<8x8xf32>
    %32 = vector.shape_cast %31 : vector<8x8xf32> to vector<1x8x8xf32>
    %33 = vector.extract_strided_slice %6 {offsets = [0, 72], sizes = [8, 8], strides = [1, 1]} : vector<8x96xf32> to vector<8x8xf32>
    %34 = vector.shape_cast %33 : vector<8x8xf32> to vector<1x8x8xf32>
    "tpu.trace_start"() <{level = 10 : i32, message = "bld,bmd->blm"}> : () -> ()
    %cst_14 = arith.constant dense<0.000000e+00> : vector<1x8x8xf32>
    %35 = tpu.matmul %30, %32, %cst_14 {dimension_numbers = #tpu.dot_dimension_numbers<[2], [2], [1], [1], [0, 0, 0, 1, 1, 1], [0], [0]>} : vector<1x8x8xf32>, vector<1x8x8xf32>, vector<1x8x8xf32> -> vector<1x8x8xf32>
    "tpu.trace_stop"() : () -> ()
    %cst_15 = arith.constant dense<0xFF800000> : vector<1x8xf32>
    %36 = vector.multi_reduction <maximumf>, %35, %cst_15 [2] : vector<1x8x8xf32> to vector<1x8xf32>
    %37 = vector.shape_cast %36 : vector<1x8xf32> to vector<1x8x1xf32>
    %38 = vector.broadcast %37 : vector<1x8x1xf32> to vector<1x8x8xf32>
    %39 = arith.subf %35, %38 : vector<1x8x8xf32>
    %40 = math.exp %39 : vector<1x8x8xf32>
    %cst_16 = arith.constant dense<0.000000e+00> : vector<1x8xf32>
    %41 = vector.multi_reduction <add>, %40, %cst_16 [2] : vector<1x8x8xf32> to vector<1x8xf32>
    %42 = vector.shape_cast %41 : vector<1x8xf32> to vector<1x8x1xf32>
    %43 = tpu.reciprocal %42 : vector<1x8x1xf32> -> vector<1x8x1xf32>
    %44 = vector.broadcast %43 : vector<1x8x1xf32> to vector<1x8x8xf32>
    %45 = arith.mulf %40, %44 : vector<1x8x8xf32>
    %cst_17 = arith.constant 2.500000e-01 : f32
    %46 = vector.broadcast %cst_17 : f32 to vector<1x8x8xf32>
    %47 = arith.mulf %45, %46 : vector<1x8x8xf32>
    %c0_18 = arith.constant 0 : index
    %c0_19 = arith.constant 0 : index
    %c0_20 = arith.constant 0 : index
    %48 = vector.load %arg15[%c0_18, %c0_19, %c0_20] : memref<1x8x8xf32, #tpu.memory_space<vmem>>, vector<1x8x8xf32>
    %49 = arith.addf %48, %47 : vector<1x8x8xf32>
    %c0_21 = arith.constant 0 : index
    %c0_22 = arith.constant 0 : index
    %c0_23 = arith.constant 0 : index
    %50 = vector.load %arg15[%c0_21, %c0_22, %c0_23] : memref<1x8x8xf32, #tpu.memory_space<vmem>>, vector<1x8x8xf32>
    tpu.vector_store %arg15[%c0_21, %c0_22, %c0_23], %49 {strides = array<i32>} : memref<1x8x8xf32, #tpu.memory_space<vmem>>, vector<1x8x8xf32>,
    "tpu.trace_start"() <{level = 10 : i32, message = "blm,bmd->bld"}> : () -> ()
    %cst_24 = arith.constant dense<0.000000e+00> : vector<1x8x8xf32>
    %51 = tpu.matmul %45, %34, %cst_24 {dimension_numbers = #tpu.dot_dimension_numbers<[2], [1], [1], [2], [0, 0, 0, 1, 1, 2], [0], [0]>} : vector<1x8x8xf32>, vector<1x8x8xf32>, vector<1x8x8xf32> -> vector<1x8x8xf32>
    "tpu.trace_stop"() : () -> ()
    %52 = vector.shape_cast %51 : vector<1x8x8xf32> to vector<8x8xf32>
    %53 = vector.extract_strided_slice %6 {offsets = [0, 16], sizes = [8, 8], strides = [1, 1]} : vector<8x96xf32> to vector<8x8xf32>
    %54 = vector.shape_cast %53 : vector<8x8xf32> to vector<1x8x8xf32>
    %55 = vector.extract_strided_slice %6 {offsets = [0, 48], sizes = [8, 8], strides = [1, 1]} : vector<8x96xf32> to vector<8x8xf32>
    %56 = vector.shape_cast %55 : vector<8x8xf32> to vector<1x8x8xf32>
    %57 = vector.extract_strided_slice %6 {offsets = [0, 80], sizes = [8, 8], strides = [1, 1]} : vector<8x96xf32> to vector<8x8xf32>
    %58 = vector.shape_cast %57 : vector<8x8xf32> to vector<1x8x8xf32>
    "tpu.trace_start"() <{level = 10 : i32, message = "bld,bmd->blm"}> : () -> ()
    %cst_25 = arith.constant dense<0.000000e+00> : vector<1x8x8xf32>
    %59 = tpu.matmul %54, %56, %cst_25 {dimension_numbers = #tpu.dot_dimension_numbers<[2], [2], [1], [1], [0, 0, 0, 1, 1, 1], [0], [0]>} : vector<1x8x8xf32>, vector<1x8x8xf32>, vector<1x8x8xf32> -> vector<1x8x8xf32>
    "tpu.trace_stop"() : () -> ()
    %cst_26 = arith.constant dense<0xFF800000> : vector<1x8xf32>
    %60 = vector.multi_reduction <maximumf>, %59, %cst_26 [2] : vector<1x8x8xf32> to vector<1x8xf32>
    %61 = vector.shape_cast %60 : vector<1x8xf32> to vector<1x8x1xf32>
    %62 = vector.broadcast %61 : vector<1x8x1xf32> to vector<1x8x8xf32>
    %63 = arith.subf %59, %62 : vector<1x8x8xf32>
    %64 = math.exp %63 : vector<1x8x8xf32>
    %cst_27 = arith.constant dense<0.000000e+00> : vector<1x8xf32>
    %65 = vector.multi_reduction <add>, %64, %cst_27 [2] : vector<1x8x8xf32> to vector<1x8xf32>
    %66 = vector.shape_cast %65 : vector<1x8xf32> to vector<1x8x1xf32>
    %67 = tpu.reciprocal %66 : vector<1x8x1xf32> -> vector<1x8x1xf32>
    %68 = vector.broadcast %67 : vector<1x8x1xf32> to vector<1x8x8xf32>
    %69 = arith.mulf %64, %68 : vector<1x8x8xf32>
    %cst_28 = arith.constant 2.500000e-01 : f32
    %70 = vector.broadcast %cst_28 : f32 to vector<1x8x8xf32>
    %71 = arith.mulf %69, %70 : vector<1x8x8xf32>
    %c0_29 = arith.constant 0 : index
    %c0_30 = arith.constant 0 : index
    %c0_31 = arith.constant 0 : index
    %72 = vector.load %arg15[%c0_29, %c0_30, %c0_31] : memref<1x8x8xf32, #tpu.memory_space<vmem>>, vector<1x8x8xf32>
    %73 = arith.addf %72, %71 : vector<1x8x8xf32>
    %c0_32 = arith.constant 0 : index
    %c0_33 = arith.constant 0 : index
    %c0_34 = arith.constant 0 : index
    %74 = vector.load %arg15[%c0_32, %c0_33, %c0_34] : memref<1x8x8xf32, #tpu.memory_space<vmem>>, vector<1x8x8xf32>
    tpu.vector_store %arg15[%c0_32, %c0_33, %c0_34], %73 {strides = array<i32>} : memref<1x8x8xf32, #tpu.memory_space<vmem>>, vector<1x8x8xf32>,
    "tpu.trace_start"() <{level = 10 : i32, message = "blm,bmd->bld"}> : () -> ()
    %cst_35 = arith.constant dense<0.000000e+00> : vector<1x8x8xf32>
    %75 = tpu.matmul %69, %58, %cst_35 {dimension_numbers = #tpu.dot_dimension_numbers<[2], [1], [1], [2], [0, 0, 0, 1, 1, 2], [0], [0]>} : vector<1x8x8xf32>, vector<1x8x8xf32>, vector<1x8x8xf32> -> vector<1x8x8xf32>
    "tpu.trace_stop"() : () -> ()
    %76 = vector.shape_cast %75 : vector<1x8x8xf32> to vector<8x8xf32>
    %77 = vector.extract_strided_slice %6 {offsets = [0, 24], sizes = [8, 8], strides = [1, 1]} : vector<8x96xf32> to vector<8x8xf32>
    %78 = vector.shape_cast %77 : vector<8x8xf32> to vector<1x8x8xf32>
    %79 = vector.extract_strided_slice %6 {offsets = [0, 56], sizes = [8, 8], strides = [1, 1]} : vector<8x96xf32> to vector<8x8xf32>
    %80 = vector.shape_cast %79 : vector<8x8xf32> to vector<1x8x8xf32>
    %81 = vector.extract_strided_slice %6 {offsets = [0, 88], sizes = [8, 8], strides = [1, 1]} : vector<8x96xf32> to vector<8x8xf32>
    %82 = vector.shape_cast %81 : vector<8x8xf32> to vector<1x8x8xf32>
    "tpu.trace_start"() <{level = 10 : i32, message = "bld,bmd->blm"}> : () -> ()
    %cst_36 = arith.constant dense<0.000000e+00> : vector<1x8x8xf32>
    %83 = tpu.matmul %78, %80, %cst_36 {dimension_numbers = #tpu.dot_dimension_numbers<[2], [2], [1], [1], [0, 0, 0, 1, 1, 1], [0], [0]>} : vector<1x8x8xf32>, vector<1x8x8xf32>, vector<1x8x8xf32> -> vector<1x8x8xf32>
    "tpu.trace_stop"() : () -> ()
    %cst_37 = arith.constant dense<0xFF800000> : vector<1x8xf32>
    %84 = vector.multi_reduction <maximumf>, %83, %cst_37 [2] : vector<1x8x8xf32> to vector<1x8xf32>
    %85 = vector.shape_cast %84 : vector<1x8xf32> to vector<1x8x1xf32>
    %86 = vector.broadcast %85 : vector<1x8x1xf32> to vector<1x8x8xf32>
    %87 = arith.subf %83, %86 : vector<1x8x8xf32>
    %88 = math.exp %87 : vector<1x8x8xf32>
    %cst_38 = arith.constant dense<0.000000e+00> : vector<1x8xf32>
    %89 = vector.multi_reduction <add>, %88, %cst_38 [2] : vector<1x8x8xf32> to vector<1x8xf32>
    %90 = vector.shape_cast %89 : vector<1x8xf32> to vector<1x8x1xf32>
    %91 = tpu.reciprocal %90 : vector<1x8x1xf32> -> vector<1x8x1xf32>
    %92 = vector.broadcast %91 : vector<1x8x1xf32> to vector<1x8x8xf32>
    %93 = arith.mulf %88, %92 : vector<1x8x8xf32>
    %cst_39 = arith.constant 2.500000e-01 : f32
    %94 = vector.broadcast %cst_39 : f32 to vector<1x8x8xf32>
    %95 = arith.mulf %93, %94 : vector<1x8x8xf32>
    %c0_40 = arith.constant 0 : index
    %c0_41 = arith.constant 0 : index
    %c0_42 = arith.constant 0 : index
    %96 = vector.load %arg15[%c0_40, %c0_41, %c0_42] : memref<1x8x8xf32, #tpu.memory_space<vmem>>, vector<1x8x8xf32>
    %97 = arith.addf %96, %95 : vector<1x8x8xf32>
    %c0_43 = arith.constant 0 : index
    %c0_44 = arith.constant 0 : index
    %c0_45 = arith.constant 0 : index
    %98 = vector.load %arg15[%c0_43, %c0_44, %c0_45] : memref<1x8x8xf32, #tpu.memory_space<vmem>>, vector<1x8x8xf32>
    tpu.vector_store %arg15[%c0_43, %c0_44, %c0_45], %97 {strides = array<i32>} : memref<1x8x8xf32, #tpu.memory_space<vmem>>, vector<1x8x8xf32>,
    "tpu.trace_start"() <{level = 10 : i32, message = "blm,bmd->bld"}> : () -> ()
    %cst_46 = arith.constant dense<0.000000e+00> : vector<1x8x8xf32>
    %99 = tpu.matmul %93, %82, %cst_46 {dimension_numbers = #tpu.dot_dimension_numbers<[2], [1], [1], [2], [0, 0, 0, 1, 1, 2], [0], [0]>} : vector<1x8x8xf32>, vector<1x8x8xf32>, vector<1x8x8xf32> -> vector<1x8x8xf32>
    "tpu.trace_stop"() : () -> ()
    %100 = vector.shape_cast %99 : vector<1x8x8xf32> to vector<8x8xf32>
    %101 = tpu.concatenate %28, %52, %76, %100 in 1 : vector<8x8xf32>, vector<8x8xf32>, vector<8x8xf32>, vector<8x8xf32> -> vector<8x32xf32>
    %c0_47 = arith.constant 0 : index
    %c0_48 = arith.constant 0 : index
    %102 = vector.load %arg4[%c0_47, %c0_48] : memref<32x32xf32, #tpu.memory_space<vmem>>, vector<32x32xf32>
    %cst_49 = arith.constant dense<0.000000e+00> : vector<8x32xf32>
    %103 = tpu.matmul %101, %102, %cst_49 {dimension_numbers = #tpu.dot_dimension_numbers<[1], [0], [0], [1], [0, 0, 1, 1], [], []>} : vector<8x32xf32>, vector<32x32xf32>, vector<8x32xf32> -> vector<8x32xf32>
    %c0_50 = arith.constant 0 : index
    %c0_51 = arith.constant 0 : index
    %104 = vector.load %arg5[%c0_50, %c0_51] : memref<1x32xf32, #tpu.memory_space<vmem>>, vector<1x32xf32>
    %105 = vector.broadcast %104 : vector<1x32xf32> to vector<8x32xf32>
    %106 = arith.addf %103, %105 : vector<8x32xf32>
    %107 = arith.addf %1, %106 : vector<8x32xf32>
    %cst_52 = arith.constant dense<0.000000e+00> : vector<8xf32>
    %108 = vector.multi_reduction <add>, %107, %cst_52 [1] : vector<8x32xf32> to vector<8xf32>
    %109 = vector.shape_cast %108 : vector<8xf32> to vector<8x1xf32>
    %cst_53 = arith.constant 3.200000e+01 : f32
    %110 = vector.broadcast %cst_53 : f32 to vector<8x1xf32>
    %111 = arith.divf %109, %110 : vector<8x1xf32>
    %112 = vector.broadcast %111 : vector<8x1xf32> to vector<8x32xf32>
    %113 = arith.subf %107, %112 : vector<8x32xf32>
    %114 = vector.broadcast %111 : vector<8x1xf32> to vector<8x32xf32>
    %115 = arith.subf %107, %114 : vector<8x32xf32>
    %116 = arith.mulf %113, %115 : vector<8x32xf32>
    %cst_54 = arith.constant dense<0.000000e+00> : vector<8xf32>
    %117 = vector.multi_reduction <add>, %116, %cst_54 [1] : vector<8x32xf32> to vector<8xf32>
    %118 = vector.shape_cast %117 : vector<8xf32> to vector<8x1xf32>
    %cst_55 = arith.constant 3.200000e+01 : f32
    %119 = vector.broadcast %cst_55 : f32 to vector<8x1xf32>
    %120 = arith.divf %118, %119 : vector<8x1xf32>
    %121 = vector.broadcast %111 : vector<8x1xf32> to vector<8x32xf32>
    %122 = arith.subf %107, %121 : vector<8x32xf32>
    %cst_56 = arith.constant 9.99999974E-6 : f32
    %123 = vector.broadcast %cst_56 : f32 to vector<8x1xf32>
    %124 = arith.addf %120, %123 : vector<8x1xf32>
    %125 = math.rsqrt %124 : vector<8x1xf32>
    %126 = vector.broadcast %125 : vector<8x1xf32> to vector<8x32xf32>
    %127 = arith.mulf %122, %126 : vector<8x32xf32>
    %c0_57 = arith.constant 0 : index
    %c0_58 = arith.constant 0 : index
    %128 = vector.load %arg6[%c0_57, %c0_58] : memref<1x32xf32, #tpu.memory_space<vmem>>, vector<1x32xf32>
    %129 = vector.broadcast %128 : vector<1x32xf32> to vector<8x32xf32>
    %130 = arith.mulf %127, %129 : vector<8x32xf32>
    %c0_59 = arith.constant 0 : index
    %c0_60 = arith.constant 0 : index
    %131 = vector.load %arg7[%c0_59, %c0_60] : memref<1x32xf32, #tpu.memory_space<vmem>>, vector<1x32xf32>
    %132 = vector.broadcast %131 : vector<1x32xf32> to vector<8x32xf32>
    %133 = arith.addf %130, %132 : vector<8x32xf32>
    %cst_61 = arith.constant 0.000000e+00 : f32
    %134 = vector.broadcast %cst_61 : f32 to vector<8x32xf32>
    %c0_62 = arith.constant 0 : index
    %c0_63 = arith.constant 0 : index
    %135 = vector.load %arg8[%c0_62, %c0_63] : memref<32x64xf32, #tpu.memory_space<vmem>>, vector<32x64xf32>
    %cst_64 = arith.constant dense<0.000000e+00> : vector<8x64xf32>
    %136 = tpu.matmul %133, %135, %cst_64 {dimension_numbers = #tpu.dot_dimension_numbers<[1], [0], [0], [1], [0, 0, 1, 1], [], []>} : vector<8x32xf32>, vector<32x64xf32>, vector<8x64xf32> -> vector<8x64xf32>
    %c0_65 = arith.constant 0 : index
    %c0_66 = arith.constant 0 : index
    %137 = vector.load %arg9[%c0_65, %c0_66] : memref<1x64xf32, #tpu.memory_space<vmem>>, vector<1x64xf32>
    %138 = vector.broadcast %137 : vector<1x64xf32> to vector<8x64xf32>
    %139 = arith.addf %136, %138 : vector<8x64xf32>
    %cst_67 = arith.constant 0.000000e+00 : f32
    %140 = vector.broadcast %cst_67 : f32 to vector<8x64xf32>
    %141 = arith.maximumf %139, %140 : vector<8x64xf32>
    %c0_68 = arith.constant 0 : index
    %c0_69 = arith.constant 0 : index
    %142 = vector.load %arg10[%c0_68, %c0_69] : memref<64x32xf32, #tpu.memory_space<vmem>>, vector<64x32xf32>
    %cst_70 = arith.constant dense<0.000000e+00> : vector<8x32xf32>
    %143 = tpu.matmul %141, %142, %cst_70 {dimension_numbers = #tpu.dot_dimension_numbers<[1], [0], [0], [1], [0, 0, 1, 1], [], []>} : vector<8x64xf32>, vector<64x32xf32>, vector<8x32xf32> -> vector<8x32xf32>
    %144 = arith.addf %134, %143 : vector<8x32xf32>
    %c0_71 = arith.constant 0 : index
    %c0_72 = arith.constant 0 : index
    %145 = vector.load %arg11[%c0_71, %c0_72] : memref<1x32xf32, #tpu.memory_space<vmem>>, vector<1x32xf32>
    %146 = vector.broadcast %145 : vector<1x32xf32> to vector<8x32xf32>
    %147 = arith.addf %144, %146 : vector<8x32xf32>
    %148 = arith.addf %133, %147 : vector<8x32xf32>
    %cst_73 = arith.constant dense<0.000000e+00> : vector<8xf32>
    %149 = vector.multi_reduction <add>, %148, %cst_73 [1] : vector<8x32xf32> to vector<8xf32>
    %150 = vector.shape_cast %149 : vector<8xf32> to vector<8x1xf32>
    %cst_74 = arith.constant 3.200000e+01 : f32
    %151 = vector.broadcast %cst_74 : f32 to vector<8x1xf32>
    %152 = arith.divf %150, %151 : vector<8x1xf32>
    %153 = vector.broadcast %152 : vector<8x1xf32> to vector<8x32xf32>
    %154 = arith.subf %148, %153 : vector<8x32xf32>
    %155 = vector.broadcast %152 : vector<8x1xf32> to vector<8x32xf32>
    %156 = arith.subf %148, %155 : vector<8x32xf32>
    %157 = arith.mulf %154, %156 : vector<8x32xf32>
    %cst_75 = arith.constant dense<0.000000e+00> : vector<8xf32>
    %158 = vector.multi_reduction <add>, %157, %cst_75 [1] : vector<8x32xf32> to vector<8xf32>
    %159 = vector.shape_cast %158 : vector<8xf32> to vector<8x1xf32>
    %cst_76 = arith.constant 3.200000e+01 : f32
    %160 = vector.broadcast %cst_76 : f32 to vector<8x1xf32>
    %161 = arith.divf %159, %160 : vector<8x1xf32>
    %162 = vector.broadcast %152 : vector<8x1xf32> to vector<8x32xf32>
    %163 = arith.subf %148, %162 : vector<8x32xf32>
    %cst_77 = arith.constant 9.99999974E-6 : f32
    %164 = vector.broadcast %cst_77 : f32 to vector<8x1xf32>
    %165 = arith.addf %161, %164 : vector<8x1xf32>
    %166 = math.rsqrt %165 : vector<8x1xf32>
    %167 = vector.broadcast %166 : vector<8x1xf32> to vector<8x32xf32>
    %168 = arith.mulf %163, %167 : vector<8x32xf32>
    %c0_78 = arith.constant 0 : index
    %c0_79 = arith.constant 0 : index
    %169 = vector.load %arg12[%c0_78, %c0_79] : memref<1x32xf32, #tpu.memory_space<vmem>>, vector<1x32xf32>
    %170 = vector.broadcast %169 : vector<1x32xf32> to vector<8x32xf32>
    %171 = arith.mulf %168, %170 : vector<8x32xf32>
    %c0_80 = arith.constant 0 : index
    %c0_81 = arith.constant 0 : index
    %172 = vector.load %arg13[%c0_80, %c0_81] : memref<1x32xf32, #tpu.memory_space<vmem>>, vector<1x32xf32>
    %173 = vector.broadcast %172 : vector<1x32xf32> to vector<8x32xf32>
    %174 = arith.addf %171, %173 : vector<8x32xf32>
    %175 = vector.shape_cast %174 : vector<8x32xf32> to vector<1x8x32xf32>
    %c0_82 = arith.constant 0 : index
    %c0_83 = arith.constant 0 : index
    %c0_84 = arith.constant 0 : index
    %176 = vector.load %arg14[%c0_82, %c0_83, %c0_84] : memref<1x8x32xf32, #tpu.memory_space<vmem>>, vector<1x8x32xf32>
    tpu.vector_store %arg14[%c0_82, %c0_83, %c0_84], %175 {strides = array<i32>} : memref<1x8x32xf32, #tpu.memory_space<vmem>>, vector<1x8x32xf32>,
    return
  }
  func.func @transform_0(%arg0: i32) -> (i32, i32, i32) {
    %c0_i32 = arith.constant 0 : i32
    %c0_i32_0 = arith.constant 0 : i32
    %c0_i32_1 = arith.constant 0 : i32
    return %arg0, %c0_i32, %c0_i32_0 : i32, i32, i32
  }
  func.func @transform_1(%arg0: i32) -> (i32, i32) {
    %c0_i32 = arith.constant 0 : i32
    %c0_i32_0 = arith.constant 0 : i32
    %c0_i32_1 = arith.constant 0 : i32
    return %c0_i32, %c0_i32_0 : i32, i32
  }
  func.func @transform_2(%arg0: i32) -> (i32, i32) {
    %c0_i32 = arith.constant 0 : i32
    %c0_i32_0 = arith.constant 0 : i32
    %c0_i32_1 = arith.constant 0 : i32
    return %c0_i32, %c0_i32_0 : i32, i32
  }
  func.func @transform_3(%arg0: i32) -> (i32, i32) {
    %c0_i32 = arith.constant 0 : i32
    %c0_i32_0 = arith.constant 0 : i32
    %c0_i32_1 = arith.constant 0 : i32
    return %c0_i32, %c0_i32_0 : i32, i32
  }
  func.func @transform_4(%arg0: i32) -> (i32, i32) {
    %c0_i32 = arith.constant 0 : i32
    %c0_i32_0 = arith.constant 0 : i32
    %c0_i32_1 = arith.constant 0 : i32
    return %c0_i32, %c0_i32_0 : i32, i32
  }
  func.func @transform_5(%arg0: i32) -> (i32, i32) {
    %c0_i32 = arith.constant 0 : i32
    %c0_i32_0 = arith.constant 0 : i32
    %c0_i32_1 = arith.constant 0 : i32
    return %c0_i32, %c0_i32_0 : i32, i32
  }
  func.func @transform_6(%arg0: i32) -> (i32, i32) {
    %c0_i32 = arith.constant 0 : i32
    %c0_i32_0 = arith.constant 0 : i32
    %c0_i32_1 = arith.constant 0 : i32
    return %c0_i32, %c0_i32_0 : i32, i32
  }
  func.func @transform_7(%arg0: i32) -> (i32, i32) {
    %c0_i32 = arith.constant 0 : i32
    %c0_i32_0 = arith.constant 0 : i32
    %c0_i32_1 = arith.constant 0 : i32
    return %c0_i32, %c0_i32_0 : i32, i32
  }
  func.func @transform_8(%arg0: i32) -> (i32, i32) {
    %c0_i32 = arith.constant 0 : i32
    %c0_i32_0 = arith.constant 0 : i32
    %c0_i32_1 = arith.constant 0 : i32
    return %c0_i32, %c0_i32_0 : i32, i32
  }
  func.func @transform_9(%arg0: i32) -> (i32, i32) {
    %c0_i32 = arith.constant 0 : i32
    %c0_i32_0 = arith.constant 0 : i32
    %c0_i32_1 = arith.constant 0 : i32
    return %c0_i32, %c0_i32_0 : i32, i32
  }
  func.func @transform_10(%arg0: i32) -> (i32, i32) {
    %c0_i32 = arith.constant 0 : i32
    %c0_i32_0 = arith.constant 0 : i32
    %c0_i32_1 = arith.constant 0 : i32
    return %c0_i32, %c0_i32_0 : i32, i32
  }
  func.func @transform_11(%arg0: i32) -> (i32, i32) {
    %c0_i32 = arith.constant 0 : i32
    %c0_i32_0 = arith.constant 0 : i32
    %c0_i32_1 = arith.constant 0 : i32
    return %c0_i32, %c0_i32_0 : i32, i32
  }
  func.func @transform_12(%arg0: i32) -> (i32, i32) {
    %c0_i32 = arith.constant 0 : i32
    %c0_i32_0 = arith.constant 0 : i32
    %c0_i32_1 = arith.constant 0 : i32
    return %c0_i32, %c0_i32_0 : i32, i32
  }
  func.func @transform_13(%arg0: i32) -> (i32, i32, i32) {
    %c0_i32 = arith.constant 0 : i32
    %c0_i32_0 = arith.constant 0 : i32
    %c0_i32_1 = arith.constant 0 : i32
    return %arg0, %c0_i32, %c0_i32_0 : i32, i32, i32
  }
  func.func @transform_14(%arg0: i32) -> (i32, i32, i32) {
    %c0_i32 = arith.constant 0 : i32
    %c0_i32_0 = arith.constant 0 : i32
    %c0_i32_1 = arith.constant 0 : i32
    return %arg0, %c0_i32, %c0_i32_0 : i32, i32, i32
  }
}

module attributes {stable_mosaic.version = 11 : i64} {
  func.func @attention_block_kernel(%arg0: i32, %arg1: memref<1x8x32xf32, #tpu.memory_space<vmem>>, %arg2: memref<32x96xf32, #tpu.memory_space<vmem>>, %arg3: memref<1x96xf32, #tpu.memory_space<vmem>>, %arg4: memref<32x32xf32, #tpu.memory_space<vmem>>, %arg5: memref<1x32xf32, #tpu.memory_space<vmem>>, %arg6: memref<1x32xf32, #tpu.memory_space<vmem>>, %arg7: memref<1x32xf32, #tpu.memory_space<vmem>>, %arg8: memref<32x64xf32, #tpu.memory_space<vmem>>, %arg9: memref<1x64xf32, #tpu.memory_space<vmem>>, %arg10: memref<64x32xf32, #tpu.memory_space<vmem>>, %arg11: memref<1x32xf32, #tpu.memory_space<vmem>>, %arg12: memref<1x32xf32, #tpu.memory_space<vmem>>, %arg13: memref<1x32xf32, #tpu.memory_space<vmem>>, %arg14: memref<1x8x32xf32, #tpu.memory_space<vmem>>, %arg15: memref<1x8x8xf32, #tpu.memory_space<vmem>>) attributes {dimension_semantics = [#tpu.dimension_semantics<parallel>], iteration_bounds = array<i64: 2>, scalar_prefetch = 0 : i64, scratch_operands = 0 : i64, tpu.core_type = #tpu.core_type<tc>, window_params = [{transform_indices = @transform_0, window_bounds = array<i64: 1, 8, 32>}, {pipeline_mode = #tpu.pipeline_mode<synchronous>, transform_indices = @transform_1, window_bounds = array<i64: 32, 96>}, {pipeline_mode = #tpu.pipeline_mode<synchronous>, transform_indices = @transform_2, window_bounds = array<i64: 1, 96>}, {pipeline_mode = #tpu.pipeline_mode<synchronous>, transform_indices = @transform_3, window_bounds = array<i64: 32, 32>}, {pipeline_mode = #tpu.pipeline_mode<synchronous>, transform_indices = @transform_4, window_bounds = array<i64: 1, 32>}, {pipeline_mode = #tpu.pipeline_mode<synchronous>, transform_indices = @transform_5, window_bounds = array<i64: 1, 32>}, {pipeline_mode = #tpu.pipeline_mode<synchronous>, transform_indices = @transform_6, window_bounds = array<i64: 1, 32>}, {pipeline_mode = #tpu.pipeline_mode<synchronous>, transform_indices = @transform_7, window_bounds = array<i64: 32, 64>}, {pipeline_mode = #tpu.pipeline_mode<synchronous>, transform_indices = @transform_8, window_bounds = array<i64: 1, 64>}, {pipeline_mode = #tpu.pipeline_mode<synchronous>, transform_indices = @transform_9, window_bounds = array<i64: 64, 32>}, {pipeline_mode = #tpu.pipeline_mode<synchronous>, transform_indices = @transform_10, window_bounds = array<i64: 1, 32>}, {pipeline_mode = #tpu.pipeline_mode<synchronous>, transform_indices = @transform_11, window_bounds = array<i64: 1, 32>}, {pipeline_mode = #tpu.pipeline_mode<synchronous>, transform_indices = @transform_12, window_bounds = array<i64: 1, 32>}, {transform_indices = @transform_13, window_bounds = array<i64: 1, 8, 32>}, {transform_indices = @transform_14, window_bounds = array<i64: 1, 8, 8>}]} {
    %c0 = arith.constant 0 : index
    %c0_0 = arith.constant 0 : index
    %c0_1 = arith.constant 0 : index
    %0 = vector.load %arg1[%c0, %c0_0, %c0_1] : memref<1x8x32xf32, #tpu.memory_space<vmem>>, vector<1x8x32xf32>
    %1 = vector.shape_cast %0 : vector<1x8x32xf32> to vector<8x32xf32>
    %c0_2 = arith.constant 0 : index
    %c0_3 = arith.constant 0 : index
    %2 = vector.load %arg2[%c0_2, %c0_3] : memref<32x96xf32, #tpu.memory_space<vmem>>, vector<32x96xf32>
    %cst = arith.constant dense<0.000000e+00> : vector<8x96xf32>
    %3 = tpu.matmul %1, %2, %cst {dimension_numbers = #tpu.dot_dimension_numbers<[1], [0], [0], [1], [0, 0, 1, 1], [], []>} : vector<8x32xf32>, vector<32x96xf32>, vector<8x96xf32> -> vector<8x96xf32>
    %c0_4 = arith.constant 0 : index
    %c0_5 = arith.constant 0 : index
    %4 = vector.load %arg3[%c0_4, %c0_5] : memref<1x96xf32, #tpu.memory_space<vmem>>, vector<1x96xf32>
    %5 = vector.broadcast %4 : vector<1x96xf32> to vector<8x96xf32>
    %6 = arith.addf %3, %5 : vector<8x96xf32>
    %7 = vector.extract_strided_slice %6 {offsets = [0, 0], sizes = [8, 8], strides = [1, 1]} : vector<8x96xf32> to vector<8x8xf32>
    %8 = vector.shape_cast %7 : vector<8x8xf32> to vector<1x8x8xf32>
    %9 = vector.extract_strided_slice %6 {offsets = [0, 32], sizes = [8, 8], strides = [1, 1]} : vector<8x96xf32> to vector<8x8xf32>
    %10 = vector.shape_cast %9 : vector<8x8xf32> to vector<1x8x8xf32>
    %11 = vector.extract_strided_slice %6 {offsets = [0, 64], sizes = [8, 8], strides = [1, 1]} : vector<8x96xf32> to vector<8x8xf32>
    %12 = vector.shape_cast %11 : vector<8x8xf32> to vector<1x8x8xf32>
    "tpu.trace_start"() <{level = 10 : i32, message = "bld,bmd->blm"}> : () -> ()
    %cst_6 = arith.constant dense<0.000000e+00> : vector<1x8x8xf32>
    %13 = tpu.matmul %8, %10, %cst_6 {dimension_numbers = #tpu.dot_dimension_numbers<[2], [2], [1], [1], [0, 0, 0, 1, 1, 1], [0], [0]>} : vector<1x8x8xf32>, vector<1x8x8xf32>, vector<1x8x8xf32> -> vector<1x8x8xf32>
    "tpu.trace_stop"() : () -> ()
    %cst_7 = arith.constant dense<0xFF800000> : vector<1x8xf32>
    %14 = vector.multi_reduction <maximumf>, %13, %cst_7 [2] : vector<1x8x8xf32> to vector<1x8xf32>
    %15 = vector.shape_cast %14 : vector<1x8xf32> to vector<1x8x1xf32>
    %16 = vector.broadcast %15 : vector<1x8x1xf32> to vector<1x8x8xf32>
    %17 = arith.subf %13, %16 : vector<1x8x8xf32>
    %18 = math.exp %17 : vector<1x8x8xf32>
    %cst_8 = arith.constant dense<0.000000e+00> : vector<1x8xf32>
    %19 = vector.multi_reduction <add>, %18, %cst_8 [2] : vector<1x8x8xf32> to vector<1x8xf32>
    %20 = vector.shape_cast %19 : vector<1x8xf32> to vector<1x8x1xf32>
    %21 = tpu.reciprocal %20 : vector<1x8x1xf32> -> vector<1x8x1xf32>
    %22 = vector.broadcast %21 : vector<1x8x1xf32> to vector<1x8x8xf32>
    %23 = arith.mulf %18, %22 : vector<1x8x8xf32>
    %cst_9 = arith.constant 2.500000e-01 : f32
    %24 = vector.broadcast %cst_9 : f32 to vector<1x8x8xf32>
    %25 = arith.mulf %23, %24 : vector<1x8x8xf32>
    %c0_10 = arith.constant 0 : index
    %c0_11 = arith.constant 0 : index
    %c0_12 = arith.constant 0 : index
    %26 = vector.load %arg15[%c0_10, %c0_11, %c0_12] : memref<1x8x8xf32, #tpu.memory_space<vmem>>, vector<1x8x8xf32>
    tpu.vector_store %arg15[%c0_10, %c0_11, %c0_12], %25 {strides = array<i32>} : memref<1x8x8xf32, #tpu.memory_space<vmem>>, vector<1x8x8xf32>,
    "tpu.trace_start"() <{level = 10 : i32, message = "blm,bmd->bld"}> : () -> ()
    %cst_13 = arith.constant dense<0.000000e+00> : vector<1x8x8xf32>
    %27 = tpu.matmul %23, %12, %cst_13 {dimension_numbers = #tpu.dot_dimension_numbers<[2], [1], [1], [2], [0, 0, 0, 1, 1, 2], [0], [0]>} : vector<1x8x8xf32>, vector<1x8x8xf32>, vector<1x8x8xf32> -> vector<1x8x8xf32>
    "tpu.trace_stop"() : () -> ()
    %28 = vector.shape_cast %27 : vector<1x8x8xf32> to vector<8x8xf32>
    %29 = vector.extract_strided_slice %6 {offsets = [0, 8], sizes = [8, 8], strides = [1, 1]} : vector<8x96xf32> to vector<8x8xf32>
    %30 = vector.shape_cast %29 : vector<8x8xf32> to vector<1x8x8xf32>
    %31 = vector.extract_strided_slice %6 {offsets = [0, 40], sizes = [8, 8], strides = [1, 1]} : vector<8x96xf32> to vector<8x8xf32>
    %32 = vector.shape_cast %31 : vector<8x8xf32> to vector<1x8x8xf32>
    %33 = vector.extract_strided_slice %6 {offsets = [0, 72], sizes = [8, 8], strides = [1, 1]} : vector<8x96xf32> to vector<8x8xf32>
    %34 = vector.shape_cast %33 : vector<8x8xf32> to vector<1x8x8xf32>
    "tpu.trace_start"() <{level = 10 : i32, message = "bld,bmd->blm"}> : () -> ()
    %cst_14 = arith.constant dense<0.000000e+00> : vector<1x8x8xf32>
    %35 = tpu.matmul %30, %32, %cst_14 {dimension_numbers = #tpu.dot_dimension_numbers<[2], [2], [1], [1], [0, 0, 0, 1, 1, 1], [0], [0]>} : vector<1x8x8xf32>, vector<1x8x8xf32>, vector<1x8x8xf32> -> vector<1x8x8xf32>
    "tpu.trace_stop"() : () -> ()
    %cst_15 = arith.constant dense<0xFF800000> : vector<1x8xf32>
    %36 = vector.multi_reduction <maximumf>, %35, %cst_15 [2] : vector<1x8x8xf32> to vector<1x8xf32>
    %37 = vector.shape_cast %36 : vector<1x8xf32> to vector<1x8x1xf32>
    %38 = vector.broadcast %37 : vector<1x8x1xf32> to vector<1x8x8xf32>
    %39 = arith.subf %35, %38 : vector<1x8x8xf32>
    %40 = math.exp %39 : vector<1x8x8xf32>
    %cst_16 = arith.constant dense<0.000000e+00> : vector<1x8xf32>
    %41 = vector.multi_reduction <add>, %40, %cst_16 [2] : vector<1x8x8xf32> to vector<1x8xf32>
    %42 = vector.shape_cast %41 : vector<1x8xf32> to vector<1x8x1xf32>
    %43 = tpu.reciprocal %42 : vector<1x8x1xf32> -> vector<1x8x1xf32>
    %44 = vector.broadcast %43 : vector<1x8x1xf32> to vector<1x8x8xf32>
    %45 = arith.mulf %40, %44 : vector<1x8x8xf32>
    %cst_17 = arith.constant 2.500000e-01 : f32
    %46 = vector.broadcast %cst_17 : f32 to vector<1x8x8xf32>
    %47 = arith.mulf %45, %46 : vector<1x8x8xf32>
    %c0_18 = arith.constant 0 : index
    %c0_19 = arith.constant 0 : index
    %c0_20 = arith.constant 0 : index
    %48 = vector.load %arg15[%c0_18, %c0_19, %c0_20] : memref<1x8x8xf32, #tpu.memory_space<vmem>>, vector<1x8x8xf32>
    %49 = arith.addf %48, %47 : vector<1x8x8xf32>
    %c0_21 = arith.constant 0 : index
    %c0_22 = arith.constant 0 : index
    %c0_23 = arith.constant 0 : index
    %50 = vector.load %arg15[%c0_21, %c0_22, %c0_23] : memref<1x8x8xf32, #tpu.memory_space<vmem>>, vector<1x8x8xf32>
    tpu.vector_store %arg15[%c0_21, %c0_22, %c0_23], %49 {strides = array<i32>} : memref<1x8x8xf32, #tpu.memory_space<vmem>>, vector<1x8x8xf32>,
    "tpu.trace_start"() <{level = 10 : i32, message = "blm,bmd->bld"}> : () -> ()
    %cst_24 = arith.constant dense<0.000000e+00> : vector<1x8x8xf32>
    %51 = tpu.matmul %45, %34, %cst_24 {dimension_numbers = #tpu.dot_dimension_numbers<[2], [1], [1], [2], [0, 0, 0, 1, 1, 2], [0], [0]>} : vector<1x8x8xf32>, vector<1x8x8xf32>, vector<1x8x8xf32> -> vector<1x8x8xf32>
    "tpu.trace_stop"() : () -> ()
    %52 = vector.shape_cast %51 : vector<1x8x8xf32> to vector<8x8xf32>
    %53 = vector.extract_strided_slice %6 {offsets = [0, 16], sizes = [8, 8], strides = [1, 1]} : vector<8x96xf32> to vector<8x8xf32>
    %54 = vector.shape_cast %53 : vector<8x8xf32> to vector<1x8x8xf32>
    %55 = vector.extract_strided_slice %6 {offsets = [0, 48], sizes = [8, 8], strides = [1, 1]} : vector<8x96xf32> to vector<8x8xf32>
    %56 = vector.shape_cast %55 : vector<8x8xf32> to vector<1x8x8xf32>
    %57 = vector.extract_strided_slice %6 {offsets = [0, 80], sizes = [8, 8], strides = [1, 1]} : vector<8x96xf32> to vector<8x8xf32>
    %58 = vector.shape_cast %57 : vector<8x8xf32> to vector<1x8x8xf32>
    "tpu.trace_start"() <{level = 10 : i32, message = "bld,bmd->blm"}> : () -> ()
    %cst_25 = arith.constant dense<0.000000e+00> : vector<1x8x8xf32>
    %59 = tpu.matmul %54, %56, %cst_25 {dimension_numbers = #tpu.dot_dimension_numbers<[2], [2], [1], [1], [0, 0, 0, 1, 1, 1], [0], [0]>} : vector<1x8x8xf32>, vector<1x8x8xf32>, vector<1x8x8xf32> -> vector<1x8x8xf32>
    "tpu.trace_stop"() : () -> ()
    %cst_26 = arith.constant dense<0xFF800000> : vector<1x8xf32>
    %60 = vector.multi_reduction <maximumf>, %59, %cst_26 [2] : vector<1x8x8xf32> to vector<1x8xf32>
    %61 = vector.shape_cast %60 : vector<1x8xf32> to vector<1x8x1xf32>
    %62 = vector.broadcast %61 : vector<1x8x1xf32> to vector<1x8x8xf32>
    %63 = arith.subf %59, %62 : vector<1x8x8xf32>
    %64 = math.exp %63 : vector<1x8x8xf32>
    %cst_27 = arith.constant dense<0.000000e+00> : vector<1x8xf32>
    %65 = vector.multi_reduction <add>, %64, %cst_27 [2] : vector<1x8x8xf32> to vector<1x8xf32>
    %66 = vector.shape_cast %65 : vector<1x8xf32> to vector<1x8x1xf32>
    %67 = tpu.reciprocal %66 : vector<1x8x1xf32> -> vector<1x8x1xf32>
    %68 = vector.broadcast %67 : vector<1x8x1xf32> to vector<1x8x8xf32>
    %69 = arith.mulf %64, %68 : vector<1x8x8xf32>
    %cst_28 = arith.constant 2.500000e-01 : f32
    %70 = vector.broadcast %cst_28 : f32 to vector<1x8x8xf32>
    %71 = arith.mulf %69, %70 : vector<1x8x8xf32>
    %c0_29 = arith.constant 0 : index
    %c0_30 = arith.constant 0 : index
    %c0_31 = arith.constant 0 : index
    %72 = vector.load %arg15[%c0_29, %c0_30, %c0_31] : memref<1x8x8xf32, #tpu.memory_space<vmem>>, vector<1x8x8xf32>
    %73 = arith.addf %72, %71 : vector<1x8x8xf32>
    %c0_32 = arith.constant 0 : index
    %c0_33 = arith.constant 0 : index
    %c0_34 = arith.constant 0 : index
    %74 = vector.load %arg15[%c0_32, %c0_33, %c0_34] : memref<1x8x8xf32, #tpu.memory_space<vmem>>, vector<1x8x8xf32>
    tpu.vector_store %arg15[%c0_32, %c0_33, %c0_34], %73 {strides = array<i32>} : memref<1x8x8xf32, #tpu.memory_space<vmem>>, vector<1x8x8xf32>,
    "tpu.trace_start"() <{level = 10 : i32, message = "blm,bmd->bld"}> : () -> ()
    %cst_35 = arith.constant dense<0.000000e+00> : vector<1x8x8xf32>
    %75 = tpu.matmul %69, %58, %cst_35 {dimension_numbers = #tpu.dot_dimension_numbers<[2], [1], [1], [2], [0, 0, 0, 1, 1, 2], [0], [0]>} : vector<1x8x8xf32>, vector<1x8x8xf32>, vector<1x8x8xf32> -> vector<1x8x8xf32>
    "tpu.trace_stop"() : () -> ()
    %76 = vector.shape_cast %75 : vector<1x8x8xf32> to vector<8x8xf32>
    %77 = vector.extract_strided_slice %6 {offsets = [0, 24], sizes = [8, 8], strides = [1, 1]} : vector<8x96xf32> to vector<8x8xf32>
    %78 = vector.shape_cast %77 : vector<8x8xf32> to vector<1x8x8xf32>
    %79 = vector.extract_strided_slice %6 {offsets = [0, 56], sizes = [8, 8], strides = [1, 1]} : vector<8x96xf32> to vector<8x8xf32>
    %80 = vector.shape_cast %79 : vector<8x8xf32> to vector<1x8x8xf32>
    %81 = vector.extract_strided_slice %6 {offsets = [0, 88], sizes = [8, 8], strides = [1, 1]} : vector<8x96xf32> to vector<8x8xf32>
    %82 = vector.shape_cast %81 : vector<8x8xf32> to vector<1x8x8xf32>
    "tpu.trace_start"() <{level = 10 : i32, message = "bld,bmd->blm"}> : () -> ()
    %cst_36 = arith.constant dense<0.000000e+00> : vector<1x8x8xf32>
    %83 = tpu.matmul %78, %80, %cst_36 {dimension_numbers = #tpu.dot_dimension_numbers<[2], [2], [1], [1], [0, 0, 0, 1, 1, 1], [0], [0]>} : vector<1x8x8xf32>, vector<1x8x8xf32>, vector<1x8x8xf32> -> vector<1x8x8xf32>
    "tpu.trace_stop"() : () -> ()
    %cst_37 = arith.constant dense<0xFF800000> : vector<1x8xf32>
    %84 = vector.multi_reduction <maximumf>, %83, %cst_37 [2] : vector<1x8x8xf32> to vector<1x8xf32>
    %85 = vector.shape_cast %84 : vector<1x8xf32> to vector<1x8x1xf32>
    %86 = vector.broadcast %85 : vector<1x8x1xf32> to vector<1x8x8xf32>
    %87 = arith.subf %83, %86 : vector<1x8x8xf32>
    %88 = math.exp %87 : vector<1x8x8xf32>
    %cst_38 = arith.constant dense<0.000000e+00> : vector<1x8xf32>
    %89 = vector.multi_reduction <add>, %88, %cst_38 [2] : vector<1x8x8xf32> to vector<1x8xf32>
    %90 = vector.shape_cast %89 : vector<1x8xf32> to vector<1x8x1xf32>
    %91 = tpu.reciprocal %90 : vector<1x8x1xf32> -> vector<1x8x1xf32>
    %92 = vector.broadcast %91 : vector<1x8x1xf32> to vector<1x8x8xf32>
    %93 = arith.mulf %88, %92 : vector<1x8x8xf32>
    %cst_39 = arith.constant 2.500000e-01 : f32
    %94 = vector.broadcast %cst_39 : f32 to vector<1x8x8xf32>
    %95 = arith.mulf %93, %94 : vector<1x8x8xf32>
    %c0_40 = arith.constant 0 : index
    %c0_41 = arith.constant 0 : index
    %c0_42 = arith.constant 0 : index
    %96 = vector.load %arg15[%c0_40, %c0_41, %c0_42] : memref<1x8x8xf32, #tpu.memory_space<vmem>>, vector<1x8x8xf32>
    %97 = arith.addf %96, %95 : vector<1x8x8xf32>
    %c0_43 = arith.constant 0 : index
    %c0_44 = arith.constant 0 : index
    %c0_45 = arith.constant 0 : index
    %98 = vector.load %arg15[%c0_43, %c0_44, %c0_45] : memref<1x8x8xf32, #tpu.memory_space<vmem>>, vector<1x8x8xf32>
    tpu.vector_store %arg15[%c0_43, %c0_44, %c0_45], %97 {strides = array<i32>} : memref<1x8x8xf32, #tpu.memory_space<vmem>>, vector<1x8x8xf32>,
    "tpu.trace_start"() <{level = 10 : i32, message = "blm,bmd->bld"}> : () -> ()
    %cst_46 = arith.constant dense<0.000000e+00> : vector<1x8x8xf32>
    %99 = tpu.matmul %93, %82, %cst_46 {dimension_numbers = #tpu.dot_dimension_numbers<[2], [1], [1], [2], [0, 0, 0, 1, 1, 2], [0], [0]>} : vector<1x8x8xf32>, vector<1x8x8xf32>, vector<1x8x8xf32> -> vector<1x8x8xf32>
    "tpu.trace_stop"() : () -> ()
    %100 = vector.shape_cast %99 : vector<1x8x8xf32> to vector<8x8xf32>
    %101 = tpu.concatenate %28, %52, %76, %100 in 1 : vector<8x8xf32>, vector<8x8xf32>, vector<8x8xf32>, vector<8x8xf32> -> vector<8x32xf32>
    %c0_47 = arith.constant 0 : index
    %c0_48 = arith.constant 0 : index
    %102 = vector.load %arg4[%c0_47, %c0_48] : memref<32x32xf32, #tpu.memory_space<vmem>>, vector<32x32xf32>
    %cst_49 = arith.constant dense<0.000000e+00> : vector<8x32xf32>
    %103 = tpu.matmul %101, %102, %cst_49 {dimension_numbers = #tpu.dot_dimension_numbers<[1], [0], [0], [1], [0, 0, 1, 1], [], []>} : vector<8x32xf32>, vector<32x32xf32>, vector<8x32xf32> -> vector<8x32xf32>
    %c0_50 = arith.constant 0 : index
    %c0_51 = arith.constant 0 : index
    %104 = vector.load %arg5[%c0_50, %c0_51] : memref<1x32xf32, #tpu.memory_space<vmem>>, vector<1x32xf32>
    %105 = vector.broadcast %104 : vector<1x32xf32> to vector<8x32xf32>
    %106 = arith.addf %103, %105 : vector<8x32xf32>
    %107 = arith.addf %1, %106 : vector<8x32xf32>
    %cst_52 = arith.constant dense<0.000000e+00> : vector<8xf32>
    %108 = vector.multi_reduction <add>, %107, %cst_52 [1] : vector<8x32xf32> to vector<8xf32>
    %109 = vector.shape_cast %108 : vector<8xf32> to vector<8x1xf32>
    %cst_53 = arith.constant 3.200000e+01 : f32
    %110 = vector.broadcast %cst_53 : f32 to vector<8x1xf32>
    %111 = arith.divf %109, %110 : vector<8x1xf32>
    %112 = vector.broadcast %111 : vector<8x1xf32> to vector<8x32xf32>
    %113 = arith.subf %107, %112 : vector<8x32xf32>
    %114 = vector.broadcast %111 : vector<8x1xf32> to vector<8x32xf32>
    %115 = arith.subf %107, %114 : vector<8x32xf32>
    %116 = arith.mulf %113, %115 : vector<8x32xf32>
    %cst_54 = arith.constant dense<0.000000e+00> : vector<8xf32>
    %117 = vector.multi_reduction <add>, %116, %cst_54 [1] : vector<8x32xf32> to vector<8xf32>
    %118 = vector.shape_cast %117 : vector<8xf32> to vector<8x1xf32>
    %cst_55 = arith.constant 3.200000e+01 : f32
    %119 = vector.broadcast %cst_55 : f32 to vector<8x1xf32>
    %120 = arith.divf %118, %119 : vector<8x1xf32>
    %121 = vector.broadcast %111 : vector<8x1xf32> to vector<8x32xf32>
    %122 = arith.subf %107, %121 : vector<8x32xf32>
    %cst_56 = arith.constant 9.99999974E-6 : f32
    %123 = vector.broadcast %cst_56 : f32 to vector<8x1xf32>
    %124 = arith.addf %120, %123 : vector<8x1xf32>
    %125 = math.rsqrt %124 : vector<8x1xf32>
    %126 = vector.broadcast %125 : vector<8x1xf32> to vector<8x32xf32>
    %127 = arith.mulf %122, %126 : vector<8x32xf32>
    %c0_57 = arith.constant 0 : index
    %c0_58 = arith.constant 0 : index
    %128 = vector.load %arg6[%c0_57, %c0_58] : memref<1x32xf32, #tpu.memory_space<vmem>>, vector<1x32xf32>
    %129 = vector.broadcast %128 : vector<1x32xf32> to vector<8x32xf32>
    %130 = arith.mulf %127, %129 : vector<8x32xf32>
    %c0_59 = arith.constant 0 : index
    %c0_60 = arith.constant 0 : index
    %131 = vector.load %arg7[%c0_59, %c0_60] : memref<1x32xf32, #tpu.memory_space<vmem>>, vector<1x32xf32>
    %132 = vector.broadcast %131 : vector<1x32xf32> to vector<8x32xf32>
    %133 = arith.addf %130, %132 : vector<8x32xf32>
    %cst_61 = arith.constant 0.000000e+00 : f32
    %134 = vector.broadcast %cst_61 : f32 to vector<8x32xf32>
    %c0_62 = arith.constant 0 : index
    %c0_63 = arith.constant 0 : index
    %135 = vector.load %arg8[%c0_62, %c0_63] : memref<32x64xf32, #tpu.memory_space<vmem>>, vector<32x64xf32>
    %cst_64 = arith.constant dense<0.000000e+00> : vector<8x64xf32>
    %136 = tpu.matmul %133, %135, %cst_64 {dimension_numbers = #tpu.dot_dimension_numbers<[1], [0], [0], [1], [0, 0, 1, 1], [], []>} : vector<8x32xf32>, vector<32x64xf32>, vector<8x64xf32> -> vector<8x64xf32>
    %c0_65 = arith.constant 0 : index
    %c0_66 = arith.constant 0 : index
    %137 = vector.load %arg9[%c0_65, %c0_66] : memref<1x64xf32, #tpu.memory_space<vmem>>, vector<1x64xf32>
    %138 = vector.broadcast %137 : vector<1x64xf32> to vector<8x64xf32>
    %139 = arith.addf %136, %138 : vector<8x64xf32>
    %cst_67 = arith.constant 0.000000e+00 : f32
    %140 = vector.broadcast %cst_67 : f32 to vector<8x64xf32>
    %141 = arith.maximumf %139, %140 : vector<8x64xf32>
    %c0_68 = arith.constant 0 : index
    %c0_69 = arith.constant 0 : index
    %142 = vector.load %arg10[%c0_68, %c0_69] : memref<64x32xf32, #tpu.memory_space<vmem>>, vector<64x32xf32>
    %cst_70 = arith.constant dense<0.000000e+00> : vector<8x32xf32>
    %143 = tpu.matmul %141, %142, %cst_70 {dimension_numbers = #tpu.dot_dimension_numbers<[1], [0], [0], [1], [0, 0, 1, 1], [], []>} : vector<8x64xf32>, vector<64x32xf32>, vector<8x32xf32> -> vector<8x32xf32>
    %144 = arith.addf %134, %143 : vector<8x32xf32>
    %c0_71 = arith.constant 0 : index
    %c0_72 = arith.constant 0 : index
    %145 = vector.load %arg11[%c0_71, %c0_72] : memref<1x32xf32, #tpu.memory_space<vmem>>, vector<1x32xf32>
    %146 = vector.broadcast %145 : vector<1x32xf32> to vector<8x32xf32>
    %147 = arith.addf %144, %146 : vector<8x32xf32>
    %148 = arith.addf %133, %147 : vector<8x32xf32>
    %cst_73 = arith.constant dense<0.000000e+00> : vector<8xf32>
    %149 = vector.multi_reduction <add>, %148, %cst_73 [1] : vector<8x32xf32> to vector<8xf32>
    %150 = vector.shape_cast %149 : vector<8xf32> to vector<8x1xf32>
    %cst_74 = arith.constant 3.200000e+01 : f32
    %151 = vector.broadcast %cst_74 : f32 to vector<8x1xf32>
    %152 = arith.divf %150, %151 : vector<8x1xf32>
    %153 = vector.broadcast %152 : vector<8x1xf32> to vector<8x32xf32>
    %154 = arith.subf %148, %153 : vector<8x32xf32>
    %155 = vector.broadcast %152 : vector<8x1xf32> to vector<8x32xf32>
    %156 = arith.subf %148, %155 : vector<8x32xf32>
    %157 = arith.mulf %154, %156 : vector<8x32xf32>
    %cst_75 = arith.constant dense<0.000000e+00> : vector<8xf32>
    %158 = vector.multi_reduction <add>, %157, %cst_75 [1] : vector<8x32xf32> to vector<8xf32>
    %159 = vector.shape_cast %158 : vector<8xf32> to vector<8x1xf32>
    %cst_76 = arith.constant 3.200000e+01 : f32
    %160 = vector.broadcast %cst_76 : f32 to vector<8x1xf32>
    %161 = arith.divf %159, %160 : vector<8x1xf32>
    %162 = vector.broadcast %152 : vector<8x1xf32> to vector<8x32xf32>
    %163 = arith.subf %148, %162 : vector<8x32xf32>
    %cst_77 = arith.constant 9.99999974E-6 : f32
    %164 = vector.broadcast %cst_77 : f32 to vector<8x1xf32>
    %165 = arith.addf %161, %164 : vector<8x1xf32>
    %166 = math.rsqrt %165 : vector<8x1xf32>
    %167 = vector.broadcast %166 : vector<8x1xf32> to vector<8x32xf32>
    %168 = arith.mulf %163, %167 : vector<8x32xf32>
    %c0_78 = arith.constant 0 : index
    %c0_79 = arith.constant 0 : index
    %169 = vector.load %arg12[%c0_78, %c0_79] : memref<1x32xf32, #tpu.memory_space<vmem>>, vector<1x32xf32>
    %170 = vector.broadcast %169 : vector<1x32xf32> to vector<8x32xf32>
    %171 = arith.mulf %168, %170 : vector<8x32xf32>
    %c0_80 = arith.constant 0 : index
    %c0_81 = arith.constant 0 : index
    %172 = vector.load %arg13[%c0_80, %c0_81] : memref<1x32xf32, #tpu.memory_space<vmem>>, vector<1x32xf32>
    %173 = vector.broadcast %172 : vector<1x32xf32> to vector<8x32xf32>
    %174 = arith.addf %171, %173 : vector<8x32xf32>
    %175 = vector.shape_cast %174 : vector<8x32xf32> to vector<1x8x32xf32>
    %c0_82 = arith.constant 0 : index
    %c0_83 = arith.constant 0 : index
    %c0_84 = arith.constant 0 : index
    %176 = vector.load %arg14[%c0_82, %c0_83, %c0_84] : memref<1x8x32xf32, #tpu.memory_space<vmem>>, vector<1x8x32xf32>
    tpu.vector_store %arg14[%c0_82, %c0_83, %c0_84], %175 {strides = array<i32>} : memref<1x8x32xf32, #tpu.memory_space<vmem>>, vector<1x8x32xf32>,
    return
  }
  func.func @transform_0(%arg0: i32) -> (i32, i32, i32) {
    %c0_i32 = arith.constant 0 : i32
    %c0_i32_0 = arith.constant 0 : i32
    %c0_i32_1 = arith.constant 0 : i32
    return %arg0, %c0_i32, %c0_i32_0 : i32, i32, i32
  }
  func.func @transform_1(%arg0: i32) -> (i32, i32) {
    %c0_i32 = arith.constant 0 : i32
    %c0_i32_0 = arith.constant 0 : i32
    %c0_i32_1 = arith.constant 0 : i32
    return %c0_i32, %c0_i32_0 : i32, i32
  }
  func.func @transform_2(%arg0: i32) -> (i32, i32) {
    %c0_i32 = arith.constant 0 : i32
    %c0_i32_0 = arith.constant 0 : i32
    %c0_i32_1 = arith.constant 0 : i32
    return %c0_i32, %c0_i32_0 : i32, i32
  }
  func.func @transform_3(%arg0: i32) -> (i32, i32) {
    %c0_i32 = arith.constant 0 : i32
    %c0_i32_0 = arith.constant 0 : i32
    %c0_i32_1 = arith.constant 0 : i32
    return %c0_i32, %c0_i32_0 : i32, i32
  }
  func.func @transform_4(%arg0: i32) -> (i32, i32) {
    %c0_i32 = arith.constant 0 : i32
    %c0_i32_0 = arith.constant 0 : i32
    %c0_i32_1 = arith.constant 0 : i32
    return %c0_i32, %c0_i32_0 : i32, i32
  }
  func.func @transform_5(%arg0: i32) -> (i32, i32) {
    %c0_i32 = arith.constant 0 : i32
    %c0_i32_0 = arith.constant 0 : i32
    %c0_i32_1 = arith.constant 0 : i32
    return %c0_i32, %c0_i32_0 : i32, i32
  }
  func.func @transform_6(%arg0: i32) -> (i32, i32) {
    %c0_i32 = arith.constant 0 : i32
    %c0_i32_0 = arith.constant 0 : i32
    %c0_i32_1 = arith.constant 0 : i32
    return %c0_i32, %c0_i32_0 : i32, i32
  }
  func.func @transform_7(%arg0: i32) -> (i32, i32) {
    %c0_i32 = arith.constant 0 : i32
    %c0_i32_0 = arith.constant 0 : i32
    %c0_i32_1 = arith.constant 0 : i32
    return %c0_i32, %c0_i32_0 : i32, i32
  }
  func.func @transform_8(%arg0: i32) -> (i32, i32) {
    %c0_i32 = arith.constant 0 : i32
    %c0_i32_0 = arith.constant 0 : i32
    %c0_i32_1 = arith.constant 0 : i32
    return %c0_i32, %c0_i32_0 : i32, i32
  }
  func.func @transform_9(%arg0: i32) -> (i32, i32) {
    %c0_i32 = arith.constant 0 : i32
    %c0_i32_0 = arith.constant 0 : i32
    %c0_i32_1 = arith.constant 0 : i32
    return %c0_i32, %c0_i32_0 : i32, i32
  }
  func.func @transform_10(%arg0: i32) -> (i32, i32) {
    %c0_i32 = arith.constant 0 : i32
    %c0_i32_0 = arith.constant 0 : i32
    %c0_i32_1 = arith.constant 0 : i32
    return %c0_i32, %c0_i32_0 : i32, i32
  }
  func.func @transform_11(%arg0: i32) -> (i32, i32) {
    %c0_i32 = arith.constant 0 : i32
    %c0_i32_0 = arith.constant 0 : i32
    %c0_i32_1 = arith.constant 0 : i32
    return %c0_i32, %c0_i32_0 : i32, i32
  }
  func.func @transform_12(%arg0: i32) -> (i32, i32) {
    %c0_i32 = arith.constant 0 : i32
    %c0_i32_0 = arith.constant 0 : i32
    %c0_i32_1 = arith.constant 0 : i32
    return %c0_i32, %c0_i32_0 : i32, i32
  }
  func.func @transform_13(%arg0: i32) -> (i32, i32, i32) {
    %c0_i32 = arith.constant 0 : i32
    %c0_i32_0 = arith.constant 0 : i32
    %c0_i32_1 = arith.constant 0 : i32
    return %arg0, %c0_i32, %c0_i32_0 : i32, i32, i32
  }
  func.func @transform_14(%arg0: i32) -> (i32, i32, i32) {
    %c0_i32 = arith.constant 0 : i32
    %c0_i32_0 = arith.constant 0 : i32
    %c0_i32_1 = arith.constant 0 : i32
    return %arg0, %c0_i32, %c0_i32_0 : i32, i32, i32
  }
}

</mosaic_0001>

<llo_original>
// kernel: tpu_custom_call.1
$region0: #{tpu_custom_call.1}
  #allocation0 [shape = 'u32[]', space=smem, size = 0x4, offset = 0x4, fixed_abs, tag = 'smem constant byte address 0x4 - core index']
  #allocation1 [shape = 'u32[144,128]{1,0:T(1,128)}', space=vmem, size = 0x12000, scoped, tag = 'internal scratch']
  %s0 = inlined_call_operand.hbm [shape: f32[2,8,32], index: 0, kind: input, shape index: {}]
  %s1 = inlined_call_operand.vmem [shape: f32[32,96], index: 1, kind: input, shape index: {}]
  %s2 = inlined_call_operand.vmem [shape: f32[1,96], index: 2, kind: input, shape index: {}]
  %s3 = inlined_call_operand.vmem [shape: f32[32,32], index: 3, kind: input, shape index: {}]
  %s4 = inlined_call_operand.vmem [shape: f32[1,32], index: 4, kind: input, shape index: {}]
  %s5 = inlined_call_operand.hbm [shape: f32[1,32], index: 5, kind: input, shape index: {}]
  %s6 = inlined_call_operand.hbm [shape: f32[1,32], index: 6, kind: input, shape index: {}]
  %s7 = inlined_call_operand.vmem [shape: f32[32,64], index: 7, kind: input, shape index: {}]
  %s8 = inlined_call_operand.hbm [shape: f32[1,64], index: 8, kind: input, shape index: {}]
  %s9 = inlined_call_operand.vmem [shape: f32[64,32], index: 9, kind: input, shape index: {}]
  %s10 = inlined_call_operand.vmem [shape: f32[1,32], index: 10, kind: input, shape index: {}]
  %s11 = inlined_call_operand.vmem [shape: f32[1,32], index: 11, kind: input, shape index: {}]
  %s12 = inlined_call_operand.vmem [shape: f32[1,32], index: 12, kind: input, shape index: {}]
  %s13 = inlined_call_operand.hbm [shape: f32[2,8,32], index: 13, kind: output, shape index: {0}]
  %s14 = inlined_call_operand.hbm [shape: f32[2,8,8], index: 14, kind: output, shape index: {1}]
  %15 = xla_tuple %s13, %s14
  %s16 = sld [smem:[#allocation0]]
  $region109: #{tpu_custom_call.1} parent=0
    _
  %s18 = ssub.s32 1, %s16
  %s19 = scalar_select 0, %s18, %s16
  $region1: #{tpu_custom_call.1} parent=0
    #allocation2 [shape = 'u8[8192]{0}', space=vmem, size = 0x2000, scoped, tag = 'input window, operand 0']
    #allocation3 [shape = 's32[2]{0}', space=sflag, size = 0x8, scoped, tag = 'scoped memory for tpu_custom_call.1']
    #allocation4 [shape = 's32[2]{0}', space=sflag, size = 0x8, scoped, tag = 'scoped memory for tpu_custom_call.1']
    #allocation5 [shape = 'u8[512]{0}', space=vmem, size = 0x400, scoped, tag = 'input window, operand 5, single buffered']
    #allocation6 [shape = 's32[1]{0}', space=sflag, size = 0x4, scoped, tag = 'scoped memory for tpu_custom_call.1']
    #allocation7 [shape = 'u8[512]{0}', space=vmem, size = 0x400, scoped, tag = 'input window, operand 6, single buffered']
    #allocation8 [shape = 'u8[512]{0}', space=vmem, size = 0x400, scoped, tag = 'input window, operand 8, single buffered']
    #allocation9 [shape = 's32[1]{0}', space=sflag, size = 0x4, scoped, tag = 'scoped memory for tpu_custom_call.1']
    #allocation10 [shape = 'u8[8192]{0}', space=vmem, size = 0x2000, scoped, tag = 'output window, operand 0']
    #allocation11 [shape = 'u8[8192]{0}', space=vmem, size = 0x2000, scoped, tag = 'output window, operand 1']
    #allocation12 [shape = 's32[2]{0}', space=sflag, size = 0x8, scoped, tag = 'scoped memory for tpu_custom_call.1']
    %20 = vsyncpa [#allocation3], 0
    %s21 = scalar_lea.sflag [#allocation3], 1
    %22 = vsyncpa %s21, 0
    %23 = vsyncpa [#allocation6], 0
    %24 = vsyncpa [#allocation9], 0
    %25 = vsyncpa [#allocation4], 0
    %s26 = scalar_lea.sflag [#allocation4], 1
    %27 = vsyncpa %s26, 0
    %28 = vsyncpa [#allocation12], 0
    %s29 = scalar_lea.sflag [#allocation12], 1
    %30 = vsyncpa %s29, 0
    loop: start=0, step=1, limit=4
    $region2: #{tpu_custom_call.1} parent=1 // loop_pre_header
      _
    $region3: #{tpu_custom_call.1} parent=1 // loop_header
      %s32 = sphi 0, %s36
      %p33 = scmp.ge.s32.totalorder %s32, 4
      %s42 = sphi 0, %s44
      %s45 = sphi 0, %s42
      %s46 = sphi 0, %s45
      %s62 = sphi 0, %s46
      %s66 = sphi 0, %s66
      %s68 = sphi 0, %s66
      %s69 = sphi 0, %s68
      %s83 = sphi 0, %s69
      %s87 = sphi 0, %s87
      %s89 = sphi 0, %s87
      %s90 = sphi 0, %s89
      %s104 = sphi 0, %s90
      %s108 = sphi 0, %s108
      %s110 = sphi 0, %s108
      %s111 = sphi 0, %s110
      %s125 = sphi 0, %s111
      %s129 = sphi 0, %s129
      %s131 = sphi 0, %s129
      %s132 = sphi 0, %s131
      %s146 = sphi 0, %s132
      %s150 = sphi 0, %s150
      %s152 = sphi 0, %s150
      %s153 = sphi 0, %s152
      %s167 = sphi 0, %s153
      %s171 = sphi 0, %s171
      %s173 = sphi 0, %s171
      %s174 = sphi 0, %s173
      %s188 = sphi 0, %s174
      %s192 = sphi 0, %s192
      %s194 = sphi 0, %s192
      %s195 = sphi 0, %s194
      %s209 = sphi 0, %s195
      %s213 = sphi 0, %s213
      %s215 = sphi 0, %s213
      %s216 = sphi 0, %s215
      %s230 = sphi 0, %s216
      %s234 = sphi 0, %s234
      %s236 = sphi 0, %s234
      %s237 = sphi 0, %s236
      %s251 = sphi 0, %s237
      %s255 = sphi 0, %s255
      %s257 = sphi 0, %s255
      %s258 = sphi 0, %s257
      %s272 = sphi 0, %s258
      %s276 = sphi 0, %s276
      %s278 = sphi 0, %s276
      %s279 = sphi 0, %s278
      %s293 = sphi 0, %s279
      %s297 = sphi 0, %s297
      %s299 = sphi 0, %s297
      %s300 = sphi 0, %s299
      %s314 = sphi 0, %s300
      %s320 = sphi 0, %s322
      %s323 = sphi 0, %s320
      %s324 = sphi 0, %s323
      %s340 = sphi 0, %s324
      %s346 = sphi 0, %s348
      %s349 = sphi 0, %s346
      %s350 = sphi 0, %s349
      %s366 = sphi 0, %s350
    $region4: #{tpu_custom_call.1} parent=1 // loop_header_branch
      %35 = sbr.rel (%p33) target = $region8
    $region5: #{tpu_custom_call.1} parent=1 // loop_body
      %s37 = ssub.s32 %s32, 1
      %s38 = ssub.s32 %s32, 2
      %s39 = sadd.s32 %s32, 1
      %s40 = ssub.s32 %s32, %s39
      %p41 = scmp.eq.s32.totalorder %s40, 0
      %s43 = sadd.s32 %s42, 1
      %s44 = scalar_select %p41, %s42, %s43
      %p47 = pneg %p41
      %p48 = scmp.eq.s32.totalorder %s32, 1
      %p49 = por %p47, %p48
      %p50 = scmp.ne.s32.totalorder %s42, %s45
      %p51 = scmp.eq.s32.totalorder %s32, 0
      %p52 = por %p50, %p51
      %p53 = scmp.ne.s32.totalorder %s42, %s45
      %p54 = scmp.eq.s32.totalorder %s37, 1
      %p55 = por %p53, %p54
      %p56 = scmp.ne.s32.totalorder %s45, %s46
      %p57 = scmp.eq.s32.totalorder %s37, 0
      %p58 = por %p56, %p57
      %p59 = scmp.ne.s32.totalorder %s45, %s46
      %p60 = scmp.eq.s32.totalorder %s38, 1
      %p61 = por %p59, %p60
      %p63 = scmp.ne.s32.totalorder %s46, %s62
      %p64 = scmp.eq.s32.totalorder %s38, 0
      %p65 = por %p63, %p64
      %s67 = sadd.s32 %s66, 1
      %p70 = scmp.eq.s32.totalorder %s32, 1
      %p71 = scmp.ne.s32.totalorder %s66, %s68
      %p72 = scmp.eq.s32.totalorder %s32, 0
      %p73 = por %p71, %p72
      %p74 = scmp.ne.s32.totalorder %s66, %s68
      %p75 = scmp.eq.s32.totalorder %s37, 1
      %p76 = por %p74, %p75
      %p77 = scmp.ne.s32.totalorder %s68, %s69
      %p78 = scmp.eq.s32.totalorder %s37, 0
      %p79 = por %p77, %p78
      %p80 = scmp.ne.s32.totalorder %s68, %s69
      %p81 = scmp.eq.s32.totalorder %s38, 1
      %p82 = por %p80, %p81
      %p84 = scmp.ne.s32.totalorder %s69, %s83
      %p85 = scmp.eq.s32.totalorder %s38, 0
      %p86 = por %p84, %p85
      %s88 = sadd.s32 %s87, 1
      %p91 = scmp.eq.s32.totalorder %s32, 1
      %p92 = scmp.ne.s32.totalorder %s87, %s89
      %p93 = scmp.eq.s32.totalorder %s32, 0
      %p94 = por %p92, %p93
      %p95 = scmp.ne.s32.totalorder %s87, %s89
      %p96 = scmp.eq.s32.totalorder %s37, 1
      %p97 = por %p95, %p96
      %p98 = scmp.ne.s32.totalorder %s89, %s90
      %p99 = scmp.eq.s32.totalorder %s37, 0
      %p100 = por %p98, %p99
      %p101 = scmp.ne.s32.totalorder %s89, %s90
      %p102 = scmp.eq.s32.totalorder %s38, 1
      %p103 = por %p101, %p102
      %p105 = scmp.ne.s32.totalorder %s90, %s104
      %p106 = scmp.eq.s32.totalorder %s38, 0
      %p107 = por %p105, %p106
      %s109 = sadd.s32 %s108, 1
      %p112 = scmp.eq.s32.totalorder %s32, 1
      %p113 = scmp.ne.s32.totalorder %s108, %s110
      %p114 = scmp.eq.s32.totalorder %s32, 0
      %p115 = por %p113, %p114
      %p116 = scmp.ne.s32.totalorder %s108, %s110
      %p117 = scmp.eq.s32.totalorder %s37, 1
      %p118 = por %p116, %p117
      %p119 = scmp.ne.s32.totalorder %s110, %s111
      %p120 = scmp.eq.s32.totalorder %s37, 0
      %p121 = por %p119, %p120
      %p122 = scmp.ne.s32.totalorder %s110, %s111
      %p123 = scmp.eq.s32.totalorder %s38, 1
      %p124 = por %p122, %p123
      %p126 = scmp.ne.s32.totalorder %s111, %s125
      %p127 = scmp.eq.s32.totalorder %s38, 0
      %p128 = por %p126, %p127
      %s130 = sadd.s32 %s129, 1
      %p133 = scmp.eq.s32.totalorder %s32, 1
      %p134 = scmp.ne.s32.totalorder %s129, %s131
      %p135 = scmp.eq.s32.totalorder %s32, 0
      %p136 = por %p134, %p135
      %p137 = scmp.ne.s32.totalorder %s129, %s131
      %p138 = scmp.eq.s32.totalorder %s37, 1
      %p139 = por %p137, %p138
      %p140 = scmp.ne.s32.totalorder %s131, %s132
      %p141 = scmp.eq.s32.totalorder %s37, 0
      %p142 = por %p140, %p141
      %p143 = scmp.ne.s32.totalorder %s131, %s132
      %p144 = scmp.eq.s32.totalorder %s38, 1
      %p145 = por %p143, %p144
      %p147 = scmp.ne.s32.totalorder %s132, %s146
      %p148 = scmp.eq.s32.totalorder %s38, 0
      %p149 = por %p147, %p148
      %s151 = sadd.s32 %s150, 1
      %p154 = scmp.eq.s32.totalorder %s32, 1
      %p155 = scmp.ne.s32.totalorder %s150, %s152
      %p156 = scmp.eq.s32.totalorder %s32, 0
      %p157 = por %p155, %p156
      %p158 = scmp.ne.s32.totalorder %s150, %s152
      %p159 = scmp.eq.s32.totalorder %s37, 1
      %p160 = por %p158, %p159
      %p161 = scmp.ne.s32.totalorder %s152, %s153
      %p162 = scmp.eq.s32.totalorder %s37, 0
      %p163 = por %p161, %p162
      %p164 = scmp.ne.s32.totalorder %s152, %s153
      %p165 = scmp.eq.s32.totalorder %s38, 1
      %p166 = por %p164, %p165
      %p168 = scmp.ne.s32.totalorder %s153, %s167
      %p169 = scmp.eq.s32.totalorder %s38, 0
      %p170 = por %p168, %p169
      %s172 = sadd.s32 %s171, 1
      %p175 = scmp.eq.s32.totalorder %s32, 1
      %p176 = scmp.ne.s32.totalorder %s171, %s173
      %p177 = scmp.eq.s32.totalorder %s32, 0
      %p178 = por %p176, %p177
      %p179 = scmp.ne.s32.totalorder %s171, %s173
      %p180 = scmp.eq.s32.totalorder %s37, 1
      %p181 = por %p179, %p180
      %p182 = scmp.ne.s32.totalorder %s173, %s174
      %p183 = scmp.eq.s32.totalorder %s37, 0
      %p184 = por %p182, %p183
      %p185 = scmp.ne.s32.totalorder %s173, %s174
      %p186 = scmp.eq.s32.totalorder %s38, 1
      %p187 = por %p185, %p186
      %p189 = scmp.ne.s32.totalorder %s174, %s188
      %p190 = scmp.eq.s32.totalorder %s38, 0
      %p191 = por %p189, %p190
      %s193 = sadd.s32 %s192, 1
      %p196 = scmp.eq.s32.totalorder %s32, 1
      %p197 = scmp.ne.s32.totalorder %s192, %s194
      %p198 = scmp.eq.s32.totalorder %s32, 0
      %p199 = por %p197, %p198
      %p200 = scmp.ne.s32.totalorder %s192, %s194
      %p201 = scmp.eq.s32.totalorder %s37, 1
      %p202 = por %p200, %p201
      %p203 = scmp.ne.s32.totalorder %s194, %s195
      %p204 = scmp.eq.s32.totalorder %s37, 0
      %p205 = por %p203, %p204
      %p206 = scmp.ne.s32.totalorder %s194, %s195
      %p207 = scmp.eq.s32.totalorder %s38, 1
      %p208 = por %p206, %p207
      %p210 = scmp.ne.s32.totalorder %s195, %s209
      %p211 = scmp.eq.s32.totalorder %s38, 0
      %p212 = por %p210, %p211
      %s214 = sadd.s32 %s213, 1
      %p217 = scmp.eq.s32.totalorder %s32, 1
      %p218 = scmp.ne.s32.totalorder %s213, %s215
      %p219 = scmp.eq.s32.totalorder %s32, 0
      %p220 = por %p218, %p219
      %p221 = scmp.ne.s32.totalorder %s213, %s215
      %p222 = scmp.eq.s32.totalorder %s37, 1
      %p223 = por %p221, %p222
      %p224 = scmp.ne.s32.totalorder %s215, %s216
      %p225 = scmp.eq.s32.totalorder %s37, 0
      %p226 = por %p224, %p225
      %p227 = scmp.ne.s32.totalorder %s215, %s216
      %p228 = scmp.eq.s32.totalorder %s38, 1
      %p229 = por %p227, %p228
      %p231 = scmp.ne.s32.totalorder %s216, %s230
      %p232 = scmp.eq.s32.totalorder %s38, 0
      %p233 = por %p231, %p232
      %s235 = sadd.s32 %s234, 1
      %p238 = scmp.eq.s32.totalorder %s32, 1
      %p239 = scmp.ne.s32.totalorder %s234, %s236
      %p240 = scmp.eq.s32.totalorder %s32, 0
      %p241 = por %p239, %p240
      %p242 = scmp.ne.s32.totalorder %s234, %s236
      %p243 = scmp.eq.s32.totalorder %s37, 1
      %p244 = por %p242, %p243
      %p245 = scmp.ne.s32.totalorder %s236, %s237
      %p246 = scmp.eq.s32.totalorder %s37, 0
      %p247 = por %p245, %p246
      %p248 = scmp.ne.s32.totalorder %s236, %s237
      %p249 = scmp.eq.s32.totalorder %s38, 1
      %p250 = por %p248, %p249
      %p252 = scmp.ne.s32.totalorder %s237, %s251
      %p253 = scmp.eq.s32.totalorder %s38, 0
      %p254 = por %p252, %p253
      %s256 = sadd.s32 %s255, 1
      %p259 = scmp.eq.s32.totalorder %s32, 1
      %p260 = scmp.ne.s32.totalorder %s255, %s257
      %p261 = scmp.eq.s32.totalorder %s32, 0
      %p262 = por %p260, %p261
      %p263 = scmp.ne.s32.totalorder %s255, %s257
      %p264 = scmp.eq.s32.totalorder %s37, 1
      %p265 = por %p263, %p264
      %p266 = scmp.ne.s32.totalorder %s257, %s258
      %p267 = scmp.eq.s32.totalorder %s37, 0
      %p268 = por %p266, %p267
      %p269 = scmp.ne.s32.totalorder %s257, %s258
      %p270 = scmp.eq.s32.totalorder %s38, 1
      %p271 = por %p269, %p270
      %p273 = scmp.ne.s32.totalorder %s258, %s272
      %p274 = scmp.eq.s32.totalorder %s38, 0
      %p275 = por %p273, %p274
      %s277 = sadd.s32 %s276, 1
      %p280 = scmp.eq.s32.totalorder %s32, 1
      %p281 = scmp.ne.s32.totalorder %s276, %s278
      %p282 = scmp.eq.s32.totalorder %s32, 0
      %p283 = por %p281, %p282
      %p284 = scmp.ne.s32.totalorder %s276, %s278
      %p285 = scmp.eq.s32.totalorder %s37, 1
      %p286 = por %p284, %p285
      %p287 = scmp.ne.s32.totalorder %s278, %s279
      %p288 = scmp.eq.s32.totalorder %s37, 0
      %p289 = por %p287, %p288
      %p290 = scmp.ne.s32.totalorder %s278, %s279
      %p291 = scmp.eq.s32.totalorder %s38, 1
      %p292 = por %p290, %p291
      %p294 = scmp.ne.s32.totalorder %s279, %s293
      %p295 = scmp.eq.s32.totalorder %s38, 0
      %p296 = por %p294, %p295
      %s298 = sadd.s32 %s297, 1
      %p301 = scmp.eq.s32.totalorder %s32, 1
      %p302 = scmp.ne.s32.totalorder %s297, %s299
      %p303 = scmp.eq.s32.totalorder %s32, 0
      %p304 = por %p302, %p303
      %p305 = scmp.ne.s32.totalorder %s297, %s299
      %p306 = scmp.eq.s32.totalorder %s37, 1
      %p307 = por %p305, %p306
      %p308 = scmp.ne.s32.totalorder %s299, %s300
      %p309 = scmp.eq.s32.totalorder %s37, 0
      %p310 = por %p308, %p309
      %p311 = scmp.ne.s32.totalorder %s299, %s300
      %p312 = scmp.eq.s32.totalorder %s38, 1
      %p313 = por %p311, %p312
      %p315 = scmp.ne.s32.totalorder %s300, %s314
      %p316 = scmp.eq.s32.totalorder %s38, 0
      %p317 = por %p315, %p316
      %s318 = ssub.s32 %s32, %s39
      %p319 = scmp.eq.s32.totalorder %s318, 0
      %s321 = sadd.s32 %s320, 1
      %s322 = scalar_select %p319, %s320, %s321
      %p325 = pneg %p319
      %p326 = scmp.eq.s32.totalorder %s32, 1
      %p327 = por %p325, %p326
      %p328 = scmp.ne.s32.totalorder %s320, %s323
      %p329 = scmp.eq.s32.totalorder %s32, 0
      %p330 = por %p328, %p329
      %p331 = scmp.ne.s32.totalorder %s320, %s323
      %p332 = scmp.eq.s32.totalorder %s37, 1
      %p333 = por %p331, %p332
      %p334 = scmp.ne.s32.totalorder %s323, %s324
      %p335 = scmp.eq.s32.totalorder %s37, 0
      %p336 = por %p334, %p335
      %p337 = scmp.ne.s32.totalorder %s323, %s324
      %p338 = scmp.eq.s32.totalorder %s38, 1
      %p339 = por %p337, %p338
      %p341 = scmp.ne.s32.totalorder %s324, %s340
      %p342 = scmp.eq.s32.totalorder %s38, 0
      %p343 = por %p341, %p342
      %s344 = ssub.s32 %s32, %s39
      %p345 = scmp.eq.s32.totalorder %s344, 0
      %s347 = sadd.s32 %s346, 1
      %s348 = scalar_select %p345, %s346, %s347
      %p351 = pneg %p345
      %p352 = scmp.eq.s32.totalorder %s32, 1
      %p353 = por %p351, %p352
      %p354 = scmp.ne.s32.totalorder %s346, %s349
      %p355 = scmp.eq.s32.totalorder %s32, 0
      %p356 = por %p354, %p355
      %p357 = scmp.ne.s32.totalorder %s346, %s349
      %p358 = scmp.eq.s32.totalorder %s37, 1
      %p359 = por %p357, %p358
      %p360 = scmp.ne.s32.totalorder %s349, %s350
      %p361 = scmp.eq.s32.totalorder %s37, 0
      %p362 = por %p360, %p361
      %p363 = scmp.ne.s32.totalorder %s349, %s350
      %p364 = scmp.eq.s32.totalorder %s38, 1
      %p365 = por %p363, %p364
      %p367 = scmp.ne.s32.totalorder %s350, %s366
      %p368 = scmp.eq.s32.totalorder %s38, 0
      %p369 = por %p367, %p368
      %p370 = scmp.le.s32.totalorder 1, %s32
      %p371 = scmp.lt.s32.totalorder %s32, 3
      %p372 = pnand %p370, %p371
      %p373 = pneg %p372
      // Predicated region
      $region9: #{tpu_custom_call.1} parent=5 // pred_check
        _
      $region10: #{tpu_custom_call.1} parent=5 // pred_check_branch
        %375 = sbr.rel (%p372) target = $region12
      $region11: #{tpu_custom_call.1} parent=5 // pred_region
        %s376 = ssub.s32 %s32, 1
        // Predicated region
        $region13: #{tpu_custom_call.1} parent=11 // pred_check
          %p377 = pneg %p79
        $region14: #{tpu_custom_call.1} parent=11 // pred_check_branch
          %379 = sbr.rel (%p377) target = $region16
        $region15: #{tpu_custom_call.1} parent=11 // pred_region
          _
        $region16: #{tpu_custom_call.1} parent=11 // pred_fallthru
          _
        // Predicated region
        $region17: #{tpu_custom_call.1} parent=11 // pred_check
          %p380 = pneg %p100
        $region18: #{tpu_custom_call.1} parent=11 // pred_check_branch
          %382 = sbr.rel (%p380) target = $region20
        $region19: #{tpu_custom_call.1} parent=11 // pred_region
          _
        $region20: #{tpu_custom_call.1} parent=11 // pred_fallthru
          _
        // Predicated region
        $region21: #{tpu_custom_call.1} parent=11 // pred_check
          %p383 = pneg %p121
        $region22: #{tpu_custom_call.1} parent=11 // pred_check_branch
          %385 = sbr.rel (%p383) target = $region24
        $region23: #{tpu_custom_call.1} parent=11 // pred_region
          _
        $region24: #{tpu_custom_call.1} parent=11 // pred_fallthru
          _
        // Predicated region
        $region25: #{tpu_custom_call.1} parent=11 // pred_check
          %p386 = pneg %p142
        $region26: #{tpu_custom_call.1} parent=11 // pred_check_branch
          %388 = sbr.rel (%p386) target = $region28
        $region27: #{tpu_custom_call.1} parent=11 // pred_region
          _
        $region28: #{tpu_custom_call.1} parent=11 // pred_fallthru
          _
        // Predicated region
        $region29: #{tpu_custom_call.1} parent=11 // pred_check
          %p389 = pneg %p163
        $region30: #{tpu_custom_call.1} parent=11 // pred_check_branch
          %391 = sbr.rel (%p389) target = $region32
        $region31: #{tpu_custom_call.1} parent=11 // pred_region
          %s393 = ssub.s32 16, 16
          %394 = vsyncadd [#allocation6], %s393
          %s396 = sshll.u32 [#allocation5], 4
          %s397 = int_to_ptr.vmem [resolvable:$true] %s396
          %399 = dma.hbm_to_vmem [thread:$0]  %s5, 16, %s397, [#allocation6]
        $region32: #{tpu_custom_call.1} parent=11 // pred_fallthru
          _
        // Predicated region
        $region33: #{tpu_custom_call.1} parent=11 // pred_check
          %p400 = pneg %p184
        $region34: #{tpu_custom_call.1} parent=11 // pred_check_branch
          %402 = sbr.rel (%p400) target = $region36
        $region35: #{tpu_custom_call.1} parent=11 // pred_region
          %s404 = ssub.s32 16, 16
          %405 = vsyncadd [#allocation6], %s404
          %s407 = sshll.u32 [#allocation7], 4
          %s408 = int_to_ptr.vmem [resolvable:$true] %s407
          %410 = dma.hbm_to_vmem [thread:$0]  %s6, 16, %s408, [#allocation6]
        $region36: #{tpu_custom_call.1} parent=11 // pred_fallthru
          _
        // Predicated region
        $region37: #{tpu_custom_call.1} parent=11 // pred_check
          %p411 = pneg %p205
        $region38: #{tpu_custom_call.1} parent=11 // pred_check_branch
          %413 = sbr.rel (%p411) target = $region40
        $region39: #{tpu_custom_call.1} parent=11 // pred_region
          _
        $region40: #{tpu_custom_call.1} parent=11 // pred_fallthru
          _
        // Predicated region
        $region41: #{tpu_custom_call.1} parent=11 // pred_check
          %p414 = pneg %p226
        $region42: #{tpu_custom_call.1} parent=11 // pred_check_branch
          %416 = sbr.rel (%p414) target = $region44
        $region43: #{tpu_custom_call.1} parent=11 // pred_region
          %s418 = ssub.s32 16, 16
          %419 = vsyncadd [#allocation9], %s418
          %s421 = sshll.u32 [#allocation8], 4
          %s422 = int_to_ptr.vmem [resolvable:$true] %s421
          %424 = dma.hbm_to_vmem [thread:$0]  %s8, 16, %s422, [#allocation9]
        $region44: #{tpu_custom_call.1} parent=11 // pred_fallthru
          _
        // Predicated region
        $region45: #{tpu_custom_call.1} parent=11 // pred_check
          %p425 = pneg %p247
        $region46: #{tpu_custom_call.1} parent=11 // pred_check_branch
          %427 = sbr.rel (%p425) target = $region48
        $region47: #{tpu_custom_call.1} parent=11 // pred_region
          _
        $region48: #{tpu_custom_call.1} parent=11 // pred_fallthru
          _
        // Predicated region
        $region49: #{tpu_custom_call.1} parent=11 // pred_check
          %p428 = pneg %p268
        $region50: #{tpu_custom_call.1} parent=11 // pred_check_branch
          %430 = sbr.rel (%p428) target = $region52
        $region51: #{tpu_custom_call.1} parent=11 // pred_region
          _
        $region52: #{tpu_custom_call.1} parent=11 // pred_fallthru
          _
        // Predicated region
        $region53: #{tpu_custom_call.1} parent=11 // pred_check
          %p431 = pneg %p289
        $region54: #{tpu_custom_call.1} parent=11 // pred_check_branch
          %433 = sbr.rel (%p431) target = $region56
        $region55: #{tpu_custom_call.1} parent=11 // pred_region
          _
        $region56: #{tpu_custom_call.1} parent=11 // pred_fallthru
          _
        // Predicated region
        $region57: #{tpu_custom_call.1} parent=11 // pred_check
          %p434 = pneg %p310
        $region58: #{tpu_custom_call.1} parent=11 // pred_check_branch
          %436 = sbr.rel (%p434) target = $region60
        $region59: #{tpu_custom_call.1} parent=11 // pred_region
          _
        $region60: #{tpu_custom_call.1} parent=11 // pred_fallthru
          _
      $region12: #{tpu_custom_call.1} parent=5 // pred_fallthru
        _
      %p437 = scmp.lt.s32.totalorder %s32, 2
      // Predicated region
      $region61: #{tpu_custom_call.1} parent=5 // pred_check
        %p438 = pneg %p437
      $region62: #{tpu_custom_call.1} parent=5 // pred_check_branch
        %440 = sbr.rel (%p438) target = $region64
      $region63: #{tpu_custom_call.1} parent=5 // pred_region
        // Predicated region
        $region65: #{tpu_custom_call.1} parent=63 // pred_check
          %p441 = pneg %p52
        $region66: #{tpu_custom_call.1} parent=63 // pred_check_branch
          %443 = sbr.rel (%p441) target = $region68
        $region67: #{tpu_custom_call.1} parent=63 // pred_region
          %s444 = sand.u32 %s42, 1
          %s445 = scalar_lea.sflag [#allocation3], %s444
          %s446 = sand.u32 %s42, 1
          %s447 = smul.addr %s446, 8
          %s448 = scalar_lea.vmem [#allocation2], %s447
          %s450 = ssub.s32 128, 128
          %451 = vsyncadd %s445, %s450
          %s452 = smul.addr %s32, 128
          %s453 = scalar_lea.hbm %s0, %s452
          %s455 = sshll.u32 %s448, 4
          %s456 = int_to_ptr.vmem [resolvable:$true] %s455
          %458 = dma.hbm_to_vmem [thread:$0]  %s453, 128, %s456, %s445
        $region68: #{tpu_custom_call.1} parent=63 // pred_fallthru
          _
      $region64: #{tpu_custom_call.1} parent=5 // pred_fallthru
        _
      %p459 = scmp.le.s32.totalorder 1, %s32
      %p460 = scmp.lt.s32.totalorder %s32, 3
      %p461 = pnand %p459, %p460
      %p462 = pneg %p461
      // Predicated region
      $region69: #{tpu_custom_call.1} parent=5 // pred_check
        _
      $region70: #{tpu_custom_call.1} parent=5 // pred_check_branch
        %464 = sbr.rel (%p461) target = $region72
      $region71: #{tpu_custom_call.1} parent=5 // pred_region
        %s465 = ssub.s32 %s32, 1
        %s466 = sand.u32 %s45, 1
        %s467 = scalar_lea.sflag [#allocation3], %s466
        %s468 = sand.u32 %s45, 1
        %s469 = smul.addr %s468, 8
        %s470 = scalar_lea.vmem [#allocation2], %s469
        // Predicated region
        $region73: #{tpu_custom_call.1} parent=71 // pred_check
          %p471 = pneg %p58
        $region74: #{tpu_custom_call.1} parent=71 // pred_check_branch
          %473 = sbr.rel (%p471) target = $region76
        $region75: #{tpu_custom_call.1} parent=71 // pred_region
          %474 = dma.done %s467, 128
        $region76: #{tpu_custom_call.1} parent=71 // pred_fallthru
          _
        // Predicated region
        $region77: #{tpu_custom_call.1} parent=71 // pred_check
          %p475 = pneg %p163
        $region78: #{tpu_custom_call.1} parent=71 // pred_check_branch
          %477 = sbr.rel (%p475) target = $region80
        $region79: #{tpu_custom_call.1} parent=71 // pred_region
          %478 = dma.done [#allocation6], 16
        $region80: #{tpu_custom_call.1} parent=71 // pred_fallthru
          _
        // Predicated region
        $region81: #{tpu_custom_call.1} parent=71 // pred_check
          %p479 = pneg %p184
        $region82: #{tpu_custom_call.1} parent=71 // pred_check_branch
          %481 = sbr.rel (%p479) target = $region84
        $region83: #{tpu_custom_call.1} parent=71 // pred_region
          %482 = dma.done [#allocation6], 16
        $region84: #{tpu_custom_call.1} parent=71 // pred_fallthru
          _
        // Predicated region
        $region85: #{tpu_custom_call.1} parent=71 // pred_check
          %p483 = pneg %p226
        $region86: #{tpu_custom_call.1} parent=71 // pred_check_branch
          %485 = sbr.rel (%p483) target = $region88
        $region87: #{tpu_custom_call.1} parent=71 // pred_region
          %486 = dma.done [#allocation9], 16
        $region88: #{tpu_custom_call.1} parent=71 // pred_fallthru
          _
        %s487 = sand.u32 %s45, 1
        %s488 = scalar_lea.sflag [#allocation3], %s487
        %s489 = sand.u32 %s45, 1
        %s490 = smul.addr %s489, 8
        %s491 = scalar_lea.vmem [#allocation2], %s490
        %p492 = pneg %p58
        %p493 = pneg %p55
        %p494 = pneg %p79
        %p495 = pneg %p76
        %p496 = pneg %p100
        %p497 = pneg %p97
        %p498 = pneg %p121
        %p499 = pneg %p118
        %p500 = pneg %p142
        %p501 = pneg %p139
        %p502 = pneg %p163
        %p503 = pneg %p160
        %p504 = pneg %p184
        %p505 = pneg %p181
        %p506 = pneg %p205
        %p507 = pneg %p202
        %p508 = pneg %p226
        %p509 = pneg %p223
        %p510 = pneg %p247
        %p511 = pneg %p244
        %p512 = pneg %p268
        %p513 = pneg %p265
        %p514 = pneg %p289
        %p515 = pneg %p286
        %p516 = pneg %p310
        %p517 = pneg %p307
        %p518 = pneg %p336
        %p519 = pneg %p333
        %s520 = sand.u32 %s323, 1
        %s521 = scalar_lea.sflag [#allocation4], %s520
        %s522 = sand.u32 %s323, 1
        %s523 = smul.addr %s522, 8
        %s524 = scalar_lea.vmem [#allocation10], %s523
        %p525 = pneg %p362
        %p526 = pneg %p359
        %s527 = sand.u32 %s349, 1
        %s528 = scalar_lea.sflag [#allocation12], %s527
        %s529 = sand.u32 %s349, 1
        %s530 = smul.addr %s529, 8
        %s531 = scalar_lea.vmem [#allocation11], %s530
        %v532 = vld [vmem:[%s470] sm:$0xff]
        %v533 = vld [vmem:[%s1] sm:$0xff]
        %v534 = vld [vmem:[%s1 + $0x8] sm:$0xff]
        %v535 = vld [vmem:[%s1 + $0x10] sm:$0xff]
        %v536 = vld [vmem:[%s1 + $0x18] sm:$0xff]
        %v537 = vld [vmem:[%s2] sm:$0x1]
        %v539 = vlaneseq
        %v540 = vshrl.u32 %v539, 7
        %v541 = vsub.s32 0, %v540
        %v542 = vrot.slane %v537, %v541
        %vm544 = vcmask 261120
        %v546 = vsel %vm544, %v532, 0
        %548 = vmatprep.subr.mxu0 0.0
        %549 = vmatpush1.msra.mxu0 %v533
        %550 = vmatprep.subr.mxu0 0.0
        %551 = vmatpush1.msra.mxu0 %v534
        %552 = vmatprep.subr.mxu0 0.0
        %553 = vmatpush1.msra.mxu0 %v535
        %554 = vmatprep.subr.mxu0 0.0
        %555 = vmatpush1.msra.mxu0 %v536
        %556 = vmatprep.subr.mxu0 0.0
        %557 = vmatpush1.msra.mxu0 0.0
        %558 = vmatprep.subr.mxu0 0.0
        %559 = vmatpush1.msra.mxu0 0.0
        %560 = vmatprep.subr.mxu0 0.0
        %561 = vmatpush1.msra.mxu0 0.0
        %562 = vmatprep.subr.mxu0 0.0
        %563 = vmatpush1.msra.mxu0 0.0
        %564 = vmatprep.subr.mxu0 0.0
        %565 = vmatpush1.msra.mxu0 0.0
        %566 = vmatprep.subr.mxu0 0.0
        %567 = vmatpush1.msra.mxu0 0.0
        %568 = vmatprep.subr.mxu0 0.0
        %569 = vmatpush1.msra.mxu0 0.0
        %570 = vmatprep.subr.mxu0 0.0
        %571 = vmatpush1.msra.mxu0 0.0
        %572 = vmatprep.subr.mxu0 0.0
        %573 = vmatpush1.msra.mxu0 0.0
        %574 = vmatprep.subr.mxu0 0.0
        %575 = vmatpush1.msra.mxu0 0.0
        %576 = vmatprep.subr.mxu0 0.0
        %577 = vmatpush1.msra.mxu0 0.0
        %578 = vmatprep.subr.mxu0 0.0
        %579 = vmatpush1.msra.mxu0 0.0
        %580 = vmatprep.subr.mxu0 0.0
        %581 = vmatpush1.msra.mxu0 0.0
        %582 = vmatprep.subr.mxu0 0.0
        %583 = vmatpush1.msra.mxu0 0.0
        %584 = vmatprep.subr.mxu0 0.0
        %585 = vmatpush1.msra.mxu0 0.0
        %586 = vmatprep.subr.mxu0 0.0
        %587 = vmatpush1.msra.mxu0 0.0
        %588 = vmatprep.subr.mxu0 0.0
        %589 = vmatpush1.msra.mxu0 0.0
        %590 = vmatprep.subr.mxu0 0.0
        %591 = vmatpush1.msra.mxu0 0.0
        %592 = vmatprep.subr.mxu0 0.0
        %593 = vmatpush1.msra.mxu0 0.0
        %594 = vmatprep.subr.mxu0 0.0
        %595 = vmatpush1.msra.mxu0 0.0
        %596 = vmatprep.subr.mxu0 0.0
        %597 = vmatpush1.msra.mxu0 0.0
        %598 = vmatprep.subr.mxu0 0.0
        %599 = vmatpush1.msra.mxu0 0.0
        %600 = vmatprep.subr.mxu0 0.0
        %601 = vmatpush1.msra.mxu0 0.0
        %602 = vmatprep.subr.mxu0 0.0
        %603 = vmatpush1.msra.mxu0 0.0
        %604 = vmatprep.subr.mxu0 0.0
        %605 = vmatpush1.msra.mxu0 0.0
        %606 = vmatprep.subr.mxu0 0.0
        %607 = vmatpush1.msra.mxu0 0.0
        %608 = vmatprep.subr.mxu0 0.0
        %609 = vmatpush1.msra.mxu0 0.0
        %610 = vmatprep.subr.mxu0 0.0
        %611 = vmatpush1.msra.mxu0 0.0
        %612 = vmatprep.mubr.f32.mxu0 0.0
        %613 = vmatmul.mubr.f32.gmra.mrb[0].mxu0 %v546
        %v614 = vpop.f32.mrb[0].mxu0
        %v615 = vadd.f32 %v542, %v614
        %v616 = vpop.f32.mrb[0].mxu0
        %617 = vdwg.mxu0
        %619 = vrot.lane.b32.xlu0 %v615, 96
        %v620 = vpop.permute.xlu0 %619
        %vm621 = vcmask 64512
        %v622 = vsel %vm621, %v615, 0
        %v624 = vsel %vm621, %v620, 0
        %626 = vmatprep.subr.mxu0 0.0
        %627 = vmatpush1.xpose.msra.mxu0 %v624
        %628 = vmatprep.subr.mxu0 0.0
        %629 = vmatpush1.xpose.msra.mxu0 0.0
        %630 = vmatprep.subr.mxu0 0.0
        %631 = vmatpush1.xpose.msra.mxu0 0.0
        %632 = vmatprep.subr.mxu0 0.0
        %633 = vmatpush1.xpose.msra.mxu0 0.0
        %634 = vmatprep.subr.mxu0 0.0
        %635 = vmatpush1.xpose.msra.mxu0 0.0
        %636 = vmatprep.subr.mxu0 0.0
        %637 = vmatpush1.xpose.msra.mxu0 0.0
        %638 = vmatprep.subr.mxu0 0.0
        %639 = vmatpush1.xpose.msra.mxu0 0.0
        %640 = vmatprep.subr.mxu0 0.0
        %641 = vmatpush1.xpose.msra.mxu0 0.0
        %642 = vmatprep.subr.mxu0 0.0
        %643 = vmatpush1.xpose.msra.mxu0 0.0
        %644 = vmatprep.subr.mxu0 0.0
        %645 = vmatpush1.xpose.msra.mxu0 0.0
        %646 = vmatprep.subr.mxu0 0.0
        %647 = vmatpush1.xpose.msra.mxu0 0.0
        %648 = vmatprep.subr.mxu0 0.0
        %649 = vmatpush1.xpose.msra.mxu0 0.0
        %650 = vmatprep.subr.mxu0 0.0
        %651 = vmatpush1.xpose.msra.mxu0 0.0
        %652 = vmatprep.subr.mxu0 0.0
        %653 = vmatpush1.xpose.msra.mxu0 0.0
        %654 = vmatprep.subr.mxu0 0.0
        %655 = vmatpush1.xpose.msra.mxu0 0.0
        %656 = vmatprep.subr.mxu0 0.0
        %657 = vmatpush1.xpose.msra.mxu0 0.0
        %658 = vmatprep.subr.mxu0 0.0
        %659 = vmatpush1.xpose.msra.mxu0 0.0
        %660 = vmatprep.subr.mxu0 0.0
        %661 = vmatpush1.xpose.msra.mxu0 0.0
        %662 = vmatprep.subr.mxu0 0.0
        %663 = vmatpush1.xpose.msra.mxu0 0.0
        %664 = vmatprep.subr.mxu0 0.0
        %665 = vmatpush1.xpose.msra.mxu0 0.0
        %666 = vmatprep.subr.mxu0 0.0
        %667 = vmatpush1.xpose.msra.mxu0 0.0
        %668 = vmatprep.subr.mxu0 0.0
        %669 = vmatpush1.xpose.msra.mxu0 0.0
        %670 = vmatprep.subr.mxu0 0.0
        %671 = vmatpush1.xpose.msra.mxu0 0.0
        %672 = vmatprep.subr.mxu0 0.0
        %673 = vmatpush1.xpose.msra.mxu0 0.0
        %674 = vmatprep.subr.mxu0 0.0
        %675 = vmatpush1.xpose.msra.mxu0 0.0
        %676 = vmatprep.subr.mxu0 0.0
        %677 = vmatpush1.xpose.msra.mxu0 0.0
        %678 = vmatprep.subr.mxu0 0.0
        %679 = vmatpush1.xpose.msra.mxu0 0.0
        %680 = vmatprep.subr.mxu0 0.0
        %681 = vmatpush1.xpose.msra.mxu0 0.0
        %682 = vmatprep.subr.mxu0 0.0
        %683 = vmatpush1.xpose.msra.mxu0 0.0
        %684 = vmatprep.subr.mxu0 0.0
        %685 = vmatpush1.xpose.msra.mxu0 0.0
        %686 = vmatprep.subr.mxu0 0.0
        %687 = vmatpush1.xpose.msra.mxu0 0.0
        %688 = vmatprep.subr.mxu0 0.0
        %689 = vmatpush1.xpose.msra.mxu0 0.0
        %690 = vmatprep.mubr.f32.mxu0 0.0
        %691 = vmatmul.mubr.f32.gmra.mrb[0].mxu0 %v622
        %v692 = vpop.f32.mrb[0].mxu0
        %v693 = vadd.f32 0.0, %v692
        %v694 = vpop.f32.mrb[0].mxu0
        %695 = vdwg.mxu0
        %v696 = vsel %vm621, %v693, -inf
        %697 = vmax.xlane.f32.xlu0 %v696
        %v698 = vpop.xlane.xlu0 %697
        %v699 = vsub.f32 %v693, %v698
        %v700 = vmul.f32 %v699, 1.442695
        %v701 = vpow.pop %v700
        %v702 = vsel %vm621, %v701, 0.0
        %703 = vadd.xlane.f32.xlu0 %v702
        %v704 = vpop.xlane.xlu0 %703
        %v705 = vrcp.pop %v704
        %v706 = vmul.f32 %v701, %v705
        %v707 = vmul.f32 %v706, 0.25
        %708 = vst.msk [vmem:[%s531] sm:$0xff] %vm621, %v707
        %709 = vrot.lane.b32.xlu0 %v615, 64
        %v710 = vpop.permute.xlu0 %709
        %v713 = vsel %vm621, %v706, 0
        %715 = vmatprep.subr.mxu0 0.0
        %716 = vmatpush1.msra.mxu0 %v710
        %717 = vmatprep.subr.mxu0 0.0
        %718 = vmatpush1.msra.mxu0 0.0
        %719 = vmatprep.subr.mxu0 0.0
        %720 = vmatpush1.msra.mxu0 0.0
        %721 = vmatprep.subr.mxu0 0.0
        %722 = vmatpush1.msra.mxu0 0.0
        %723 = vmatprep.subr.mxu0 0.0
        %724 = vmatpush1.msra.mxu0 0.0
        %725 = vmatprep.subr.mxu0 0.0
        %726 = vmatpush1.msra.mxu0 0.0
        %727 = vmatprep.subr.mxu0 0.0
        %728 = vmatpush1.msra.mxu0 0.0
        %729 = vmatprep.subr.mxu0 0.0
        %730 = vmatpush1.msra.mxu0 0.0
        %731 = vmatprep.subr.mxu0 0.0
        %732 = vmatpush1.msra.mxu0 0.0
        %733 = vmatprep.subr.mxu0 0.0
        %734 = vmatpush1.msra.mxu0 0.0
        %735 = vmatprep.subr.mxu0 0.0
        %736 = vmatpush1.msra.mxu0 0.0
        %737 = vmatprep.subr.mxu0 0.0
        %738 = vmatpush1.msra.mxu0 0.0
        %739 = vmatprep.subr.mxu0 0.0
        %740 = vmatpush1.msra.mxu0 0.0
        %741 = vmatprep.subr.mxu0 0.0
        %742 = vmatpush1.msra.mxu0 0.0
        %743 = vmatprep.subr.mxu0 0.0
        %744 = vmatpush1.msra.mxu0 0.0
        %745 = vmatprep.subr.mxu0 0.0
        %746 = vmatpush1.msra.mxu0 0.0
        %747 = vmatprep.subr.mxu0 0.0
        %748 = vmatpush1.msra.mxu0 0.0
        %749 = vmatprep.subr.mxu0 0.0
        %750 = vmatpush1.msra.mxu0 0.0
        %751 = vmatprep.subr.mxu0 0.0
        %752 = vmatpush1.msra.mxu0 0.0
        %753 = vmatprep.subr.mxu0 0.0
        %754 = vmatpush1.msra.mxu0 0.0
        %755 = vmatprep.subr.mxu0 0.0
        %756 = vmatpush1.msra.mxu0 0.0
        %757 = vmatprep.subr.mxu0 0.0
        %758 = vmatpush1.msra.mxu0 0.0
        %759 = vmatprep.subr.mxu0 0.0
        %760 = vmatpush1.msra.mxu0 0.0
        %761 = vmatprep.subr.mxu0 0.0
        %762 = vmatpush1.msra.mxu0 0.0
        %763 = vmatprep.subr.mxu0 0.0
        %764 = vmatpush1.msra.mxu0 0.0
        %765 = vmatprep.subr.mxu0 0.0
        %766 = vmatpush1.msra.mxu0 0.0
        %767 = vmatprep.subr.mxu0 0.0
        %768 = vmatpush1.msra.mxu0 0.0
        %769 = vmatprep.subr.mxu0 0.0
        %770 = vmatpush1.msra.mxu0 0.0
        %771 = vmatprep.subr.mxu0 0.0
        %772 = vmatpush1.msra.mxu0 0.0
        %773 = vmatprep.subr.mxu0 0.0
        %774 = vmatpush1.msra.mxu0 0.0
        %775 = vmatprep.subr.mxu0 0.0
        %776 = vmatpush1.msra.mxu0 0.0
        %777 = vmatprep.subr.mxu0 0.0
        %778 = vmatpush1.msra.mxu0 0.0
        %779 = vmatprep.mubr.f32.mxu0 0.0
        %780 = vmatmul.mubr.f32.gmra.mrb[0].mxu0 %v713
        %v781 = vpop.f32.mrb[0].mxu0
        %v782 = vadd.f32 0.0, %v781
        %v783 = vpop.f32.mrb[0].mxu0
        %784 = vdwg.mxu0
        %785 = vrot.lane.b32.xlu0 %v615, 120
        %v786 = vpop.permute.xlu0 %785
        %787 = vrot.lane.b32.xlu0 %v615, 88
        %v788 = vpop.permute.xlu0 %787
        %v789 = vsel %vm621, %v786, 0
        %v791 = vsel %vm621, %v788, 0
        %793 = vmatprep.subr.mxu0 0.0
        %794 = vmatpush1.xpose.msra.mxu0 %v791
        %795 = vmatprep.subr.mxu0 0.0
        %796 = vmatpush1.xpose.msra.mxu0 0.0
        %797 = vmatprep.subr.mxu0 0.0
        %798 = vmatpush1.xpose.msra.mxu0 0.0
        %799 = vmatprep.subr.mxu0 0.0
        %800 = vmatpush1.xpose.msra.mxu0 0.0
        %801 = vmatprep.subr.mxu0 0.0
        %802 = vmatpush1.xpose.msra.mxu0 0.0
        %803 = vmatprep.subr.mxu0 0.0
        %804 = vmatpush1.xpose.msra.mxu0 0.0
        %805 = vmatprep.subr.mxu0 0.0
        %806 = vmatpush1.xpose.msra.mxu0 0.0
        %807 = vmatprep.subr.mxu0 0.0
        %808 = vmatpush1.xpose.msra.mxu0 0.0
        %809 = vmatprep.subr.mxu0 0.0
        %810 = vmatpush1.xpose.msra.mxu0 0.0
        %811 = vmatprep.subr.mxu0 0.0
        %812 = vmatpush1.xpose.msra.mxu0 0.0
        %813 = vmatprep.subr.mxu0 0.0
        %814 = vmatpush1.xpose.msra.mxu0 0.0
        %815 = vmatprep.subr.mxu0 0.0
        %816 = vmatpush1.xpose.msra.mxu0 0.0
        %817 = vmatprep.subr.mxu0 0.0
        %818 = vmatpush1.xpose.msra.mxu0 0.0
        %819 = vmatprep.subr.mxu0 0.0
        %820 = vmatpush1.xpose.msra.mxu0 0.0
        %821 = vmatprep.subr.mxu0 0.0
        %822 = vmatpush1.xpose.msra.mxu0 0.0
        %823 = vmatprep.subr.mxu0 0.0
        %824 = vmatpush1.xpose.msra.mxu0 0.0
        %825 = vmatprep.subr.mxu0 0.0
        %826 = vmatpush1.xpose.msra.mxu0 0.0
        %827 = vmatprep.subr.mxu0 0.0
        %828 = vmatpush1.xpose.msra.mxu0 0.0
        %829 = vmatprep.subr.mxu0 0.0
        %830 = vmatpush1.xpose.msra.mxu0 0.0
        %831 = vmatprep.subr.mxu0 0.0
        %832 = vmatpush1.xpose.msra.mxu0 0.0
        %833 = vmatprep.subr.mxu0 0.0
        %834 = vmatpush1.xpose.msra.mxu0 0.0
        %835 = vmatprep.subr.mxu0 0.0
        %836 = vmatpush1.xpose.msra.mxu0 0.0
        %837 = vmatprep.subr.mxu0 0.0
        %838 = vmatpush1.xpose.msra.mxu0 0.0
        %839 = vmatprep.subr.mxu0 0.0
        %840 = vmatpush1.xpose.msra.mxu0 0.0
        %841 = vmatprep.subr.mxu0 0.0
        %842 = vmatpush1.xpose.msra.mxu0 0.0
        %843 = vmatprep.subr.mxu0 0.0
        %844 = vmatpush1.xpose.msra.mxu0 0.0
        %845 = vmatprep.subr.mxu0 0.0
        %846 = vmatpush1.xpose.msra.mxu0 0.0
        %847 = vmatprep.subr.mxu0 0.0
        %848 = vmatpush1.xpose.msra.mxu0 0.0
        %849 = vmatprep.subr.mxu0 0.0
        %850 = vmatpush1.xpose.msra.mxu0 0.0
        %851 = vmatprep.subr.mxu0 0.0
        %852 = vmatpush1.xpose.msra.mxu0 0.0
        %853 = vmatprep.subr.mxu0 0.0
        %854 = vmatpush1.xpose.msra.mxu0 0.0
        %855 = vmatprep.subr.mxu0 0.0
        %856 = vmatpush1.xpose.msra.mxu0 0.0
        %857 = vmatprep.mubr.f32.mxu0 0.0
        %858 = vmatmul.mubr.f32.gmra.mrb[0].mxu0 %v789
        %v859 = vpop.f32.mrb[0].mxu0
        %v860 = vadd.f32 0.0, %v859
        %v861 = vpop.f32.mrb[0].mxu0
        %862 = vdwg.mxu0
        %v863 = vsel %vm621, %v860, -inf
        %864 = vmax.xlane.f32.xlu0 %v863
        %v865 = vpop.xlane.xlu0 %864
        %v866 = vsub.f32 %v860, %v865
        %v867 = vmul.f32 %v866, 1.442695
        %v868 = vpow.pop %v867
        %v869 = vsel %vm621, %v868, 0.0
        %870 = vadd.xlane.f32.xlu0 %v869
        %v871 = vpop.xlane.xlu0 %870
        %v872 = vrcp.pop %v871
        %v873 = vmul.f32 %v868, %v872
        %v874 = vmul.f32 %v873, 0.25
        %v875 = vld [vmem:[%s531] sm:$0xff]
        %v876 = vadd.f32 %v875, %v874
        %877 = vst.msk [vmem:[%s531] sm:$0xff] %vm621, %v876
        %878 = vrot.lane.b32.xlu0 %v615, 56
        %v879 = vpop.permute.xlu0 %878
        %v882 = vsel %vm621, %v873, 0
        %884 = vmatprep.subr.mxu0 0.0
        %885 = vmatpush1.msra.mxu0 %v879
        %886 = vmatprep.subr.mxu0 0.0
        %887 = vmatpush1.msra.mxu0 0.0
        %888 = vmatprep.subr.mxu0 0.0
        %889 = vmatpush1.msra.mxu0 0.0
        %890 = vmatprep.subr.mxu0 0.0
        %891 = vmatpush1.msra.mxu0 0.0
        %892 = vmatprep.subr.mxu0 0.0
        %893 = vmatpush1.msra.mxu0 0.0
        %894 = vmatprep.subr.mxu0 0.0
        %895 = vmatpush1.msra.mxu0 0.0
        %896 = vmatprep.subr.mxu0 0.0
        %897 = vmatpush1.msra.mxu0 0.0
        %898 = vmatprep.subr.mxu0 0.0
        %899 = vmatpush1.msra.mxu0 0.0
        %900 = vmatprep.subr.mxu0 0.0
        %901 = vmatpush1.msra.mxu0 0.0
        %902 = vmatprep.subr.mxu0 0.0
        %903 = vmatpush1.msra.mxu0 0.0
        %904 = vmatprep.subr.mxu0 0.0
        %905 = vmatpush1.msra.mxu0 0.0
        %906 = vmatprep.subr.mxu0 0.0
        %907 = vmatpush1.msra.mxu0 0.0
        %908 = vmatprep.subr.mxu0 0.0
        %909 = vmatpush1.msra.mxu0 0.0
        %910 = vmatprep.subr.mxu0 0.0
        %911 = vmatpush1.msra.mxu0 0.0
        %912 = vmatprep.subr.mxu0 0.0
        %913 = vmatpush1.msra.mxu0 0.0
        %914 = vmatprep.subr.mxu0 0.0
        %915 = vmatpush1.msra.mxu0 0.0
        %916 = vmatprep.subr.mxu0 0.0
        %917 = vmatpush1.msra.mxu0 0.0
        %918 = vmatprep.subr.mxu0 0.0
        %919 = vmatpush1.msra.mxu0 0.0
        %920 = vmatprep.subr.mxu0 0.0
        %921 = vmatpush1.msra.mxu0 0.0
        %922 = vmatprep.subr.mxu0 0.0
        %923 = vmatpush1.msra.mxu0 0.0
        %924 = vmatprep.subr.mxu0 0.0
        %925 = vmatpush1.msra.mxu0 0.0
        %926 = vmatprep.subr.mxu0 0.0
        %927 = vmatpush1.msra.mxu0 0.0
        %928 = vmatprep.subr.mxu0 0.0
        %929 = vmatpush1.msra.mxu0 0.0
        %930 = vmatprep.subr.mxu0 0.0
        %931 = vmatpush1.msra.mxu0 0.0
        %932 = vmatprep.subr.mxu0 0.0
        %933 = vmatpush1.msra.mxu0 0.0
        %934 = vmatprep.subr.mxu0 0.0
        %935 = vmatpush1.msra.mxu0 0.0
        %936 = vmatprep.subr.mxu0 0.0
        %937 = vmatpush1.msra.mxu0 0.0
        %938 = vmatprep.subr.mxu0 0.0
        %939 = vmatpush1.msra.mxu0 0.0
        %940 = vmatprep.subr.mxu0 0.0
        %941 = vmatpush1.msra.mxu0 0.0
        %942 = vmatprep.subr.mxu0 0.0
        %943 = vmatpush1.msra.mxu0 0.0
        %944 = vmatprep.subr.mxu0 0.0
        %945 = vmatpush1.msra.mxu0 0.0
        %946 = vmatprep.subr.mxu0 0.0
        %947 = vmatpush1.msra.mxu0 0.0
        %948 = vmatprep.mubr.f32.mxu0 0.0
        %949 = vmatmul.mubr.f32.gmra.mrb[0].mxu0 %v882
        %v950 = vpop.f32.mrb[0].mxu0
        %v951 = vadd.f32 0.0, %v950
        %v952 = vpop.f32.mrb[0].mxu0
        %953 = vdwg.mxu0
        %954 = vrot.lane.b32.xlu0 %v615, 112
        %v955 = vpop.permute.xlu0 %954
        %956 = vrot.lane.b32.xlu0 %v615, 80
        %v957 = vpop.permute.xlu0 %956
        %v958 = vsel %vm621, %v955, 0
        %v960 = vsel %vm621, %v957, 0
        %962 = vmatprep.subr.mxu0 0.0
        %963 = vmatpush1.xpose.msra.mxu0 %v960
        %964 = vmatprep.subr.mxu0 0.0
        %965 = vmatpush1.xpose.msra.mxu0 0.0
        %966 = vmatprep.subr.mxu0 0.0
        %967 = vmatpush1.xpose.msra.mxu0 0.0
        %968 = vmatprep.subr.mxu0 0.0
        %969 = vmatpush1.xpose.msra.mxu0 0.0
        %970 = vmatprep.subr.mxu0 0.0
        %971 = vmatpush1.xpose.msra.mxu0 0.0
        %972 = vmatprep.subr.mxu0 0.0
        %973 = vmatpush1.xpose.msra.mxu0 0.0
        %974 = vmatprep.subr.mxu0 0.0
        %975 = vmatpush1.xpose.msra.mxu0 0.0
        %976 = vmatprep.subr.mxu0 0.0
        %977 = vmatpush1.xpose.msra.mxu0 0.0
        %978 = vmatprep.subr.mxu0 0.0
        %979 = vmatpush1.xpose.msra.mxu0 0.0
        %980 = vmatprep.subr.mxu0 0.0
        %981 = vmatpush1.xpose.msra.mxu0 0.0
        %982 = vmatprep.subr.mxu0 0.0
        %983 = vmatpush1.xpose.msra.mxu0 0.0
        %984 = vmatprep.subr.mxu0 0.0
        %985 = vmatpush1.xpose.msra.mxu0 0.0
        %986 = vmatprep.subr.mxu0 0.0
        %987 = vmatpush1.xpose.msra.mxu0 0.0
        %988 = vmatprep.subr.mxu0 0.0
        %989 = vmatpush1.xpose.msra.mxu0 0.0
        %990 = vmatprep.subr.mxu0 0.0
        %991 = vmatpush1.xpose.msra.mxu0 0.0
        %992 = vmatprep.subr.mxu0 0.0
        %993 = vmatpush1.xpose.msra.mxu0 0.0
        %994 = vmatprep.subr.mxu0 0.0
        %995 = vmatpush1.xpose.msra.mxu0 0.0
        %996 = vmatprep.subr.mxu0 0.0
        %997 = vmatpush1.xpose.msra.mxu0 0.0
        %998 = vmatprep.subr.mxu0 0.0
        %999 = vmatpush1.xpose.msra.mxu0 0.0
        %1000 = vmatprep.subr.mxu0 0.0
        %1001 = vmatpush1.xpose.msra.mxu0 0.0
        %1002 = vmatprep.subr.mxu0 0.0
        %1003 = vmatpush1.xpose.msra.mxu0 0.0
        %1004 = vmatprep.subr.mxu0 0.0
        %1005 = vmatpush1.xpose.msra.mxu0 0.0
        %1006 = vmatprep.subr.mxu0 0.0
        %1007 = vmatpush1.xpose.msra.mxu0 0.0
        %1008 = vmatprep.subr.mxu0 0.0
        %1009 = vmatpush1.xpose.msra.mxu0 0.0
        %1010 = vmatprep.subr.mxu0 0.0
        %1011 = vmatpush1.xpose.msra.mxu0 0.0
        %1012 = vmatprep.subr.mxu0 0.0
        %1013 = vmatpush1.xpose.msra.mxu0 0.0
        %1014 = vmatprep.subr.mxu0 0.0
        %1015 = vmatpush1.xpose.msra.mxu0 0.0
        %1016 = vmatprep.subr.mxu0 0.0
        %1017 = vmatpush1.xpose.msra.mxu0 0.0
        %1018 = vmatprep.subr.mxu0 0.0
        %1019 = vmatpush1.xpose.msra.mxu0 0.0
        %1020 = vmatprep.subr.mxu0 0.0
        %1021 = vmatpush1.xpose.msra.mxu0 0.0
        %1022 = vmatprep.subr.mxu0 0.0
        %1023 = vmatpush1.xpose.msra.mxu0 0.0
        %1024 = vmatprep.subr.mxu0 0.0
        %1025 = vmatpush1.xpose.msra.mxu0 0.0
        %1026 = vmatprep.mubr.f32.mxu0 0.0
        %1027 = vmatmul.mubr.f32.gmra.mrb[0].mxu0 %v958
        %v1028 = vpop.f32.mrb[0].mxu0
        %v1029 = vadd.f32 0.0, %v1028
        %v1030 = vpop.f32.mrb[0].mxu0
        %1031 = vdwg.mxu0
        %v1032 = vsel %vm621, %v1029, -inf
        %1033 = vmax.xlane.f32.xlu0 %v1032
        %v1034 = vpop.xlane.xlu0 %1033
        %v1035 = vsub.f32 %v1029, %v1034
        %v1036 = vmul.f32 %v1035, 1.442695
        %v1037 = vpow.pop %v1036
        %v1038 = vsel %vm621, %v1037, 0.0
        %1039 = vadd.xlane.f32.xlu0 %v1038
        %v1040 = vpop.xlane.xlu0 %1039
        %v1041 = vrcp.pop %v1040
        %v1042 = vmul.f32 %v1037, %v1041
        %v1043 = vmul.f32 %v1042, 0.25
        %v1044 = vld [vmem:[%s531] sm:$0xff]
        %v1045 = vadd.f32 %v1044, %v1043
        %1046 = vst.msk [vmem:[%s531] sm:$0xff] %vm621, %v1045
        %1047 = vrot.lane.b32.xlu0 %v615, 48
        %v1048 = vpop.permute.xlu0 %1047
        %v1051 = vsel %vm621, %v1042, 0
        %1053 = vmatprep.subr.mxu0 0.0
        %1054 = vmatpush1.msra.mxu0 %v1048
        %1055 = vmatprep.subr.mxu0 0.0
        %1056 = vmatpush1.msra.mxu0 0.0
        %1057 = vmatprep.subr.mxu0 0.0
        %1058 = vmatpush1.msra.mxu0 0.0
        %1059 = vmatprep.subr.mxu0 0.0
        %1060 = vmatpush1.msra.mxu0 0.0
        %1061 = vmatprep.subr.mxu0 0.0
        %1062 = vmatpush1.msra.mxu0 0.0
        %1063 = vmatprep.subr.mxu0 0.0
        %1064 = vmatpush1.msra.mxu0 0.0
        %1065 = vmatprep.subr.mxu0 0.0
        %1066 = vmatpush1.msra.mxu0 0.0
        %1067 = vmatprep.subr.mxu0 0.0
        %1068 = vmatpush1.msra.mxu0 0.0
        %1069 = vmatprep.subr.mxu0 0.0
        %1070 = vmatpush1.msra.mxu0 0.0
        %1071 = vmatprep.subr.mxu0 0.0
        %1072 = vmatpush1.msra.mxu0 0.0
        %1073 = vmatprep.subr.mxu0 0.0
        %1074 = vmatpush1.msra.mxu0 0.0
        %1075 = vmatprep.subr.mxu0 0.0
        %1076 = vmatpush1.msra.mxu0 0.0
        %1077 = vmatprep.subr.mxu0 0.0
        %1078 = vmatpush1.msra.mxu0 0.0
        %1079 = vmatprep.subr.mxu0 0.0
        %1080 = vmatpush1.msra.mxu0 0.0
        %1081 = vmatprep.subr.mxu0 0.0
        %1082 = vmatpush1.msra.mxu0 0.0
        %1083 = vmatprep.subr.mxu0 0.0
        %1084 = vmatpush1.msra.mxu0 0.0
        %1085 = vmatprep.subr.mxu0 0.0
        %1086 = vmatpush1.msra.mxu0 0.0
        %1087 = vmatprep.subr.mxu0 0.0
        %1088 = vmatpush1.msra.mxu0 0.0
        %1089 = vmatprep.subr.mxu0 0.0
        %1090 = vmatpush1.msra.mxu0 0.0
        %1091 = vmatprep.subr.mxu0 0.0
        %1092 = vmatpush1.msra.mxu0 0.0
        %1093 = vmatprep.subr.mxu0 0.0
        %1094 = vmatpush1.msra.mxu0 0.0
        %1095 = vmatprep.subr.mxu0 0.0
        %1096 = vmatpush1.msra.mxu0 0.0
        %1097 = vmatprep.subr.mxu0 0.0
        %1098 = vmatpush1.msra.mxu0 0.0
        %1099 = vmatprep.subr.mxu0 0.0
        %1100 = vmatpush1.msra.mxu0 0.0
        %1101 = vmatprep.subr.mxu0 0.0
        %1102 = vmatpush1.msra.mxu0 0.0
        %1103 = vmatprep.subr.mxu0 0.0
        %1104 = vmatpush1.msra.mxu0 0.0
        %1105 = vmatprep.subr.mxu0 0.0
        %1106 = vmatpush1.msra.mxu0 0.0
        %1107 = vmatprep.subr.mxu0 0.0
        %1108 = vmatpush1.msra.mxu0 0.0
        %1109 = vmatprep.subr.mxu0 0.0
        %1110 = vmatpush1.msra.mxu0 0.0
        %1111 = vmatprep.subr.mxu0 0.0
        %1112 = vmatpush1.msra.mxu0 0.0
        %1113 = vmatprep.subr.mxu0 0.0
        %1114 = vmatpush1.msra.mxu0 0.0
        %1115 = vmatprep.subr.mxu0 0.0
        %1116 = vmatpush1.msra.mxu0 0.0
        %1117 = vmatprep.mubr.f32.mxu0 0.0
        %1118 = vmatmul.mubr.f32.gmra.mrb[0].mxu0 %v1051
        %v1119 = vpop.f32.mrb[0].mxu0
        %v1120 = vadd.f32 0.0, %v1119
        %v1121 = vpop.f32.mrb[0].mxu0
        %1122 = vdwg.mxu0
        %1123 = vrot.lane.b32.xlu0 %v615, 104
        %v1124 = vpop.permute.xlu0 %1123
        %1125 = vrot.lane.b32.xlu0 %v615, 72
        %v1126 = vpop.permute.xlu0 %1125
        %v1127 = vsel %vm621, %v1124, 0
        %v1129 = vsel %vm621, %v1126, 0
        %1131 = vmatprep.subr.mxu0 0.0
        %1132 = vmatpush1.xpose.msra.mxu0 %v1129
        %1133 = vmatprep.subr.mxu0 0.0
        %1134 = vmatpush1.xpose.msra.mxu0 0.0
        %1135 = vmatprep.subr.mxu0 0.0
        %1136 = vmatpush1.xpose.msra.mxu0 0.0
        %1137 = vmatprep.subr.mxu0 0.0
        %1138 = vmatpush1.xpose.msra.mxu0 0.0
        %1139 = vmatprep.subr.mxu0 0.0
        %1140 = vmatpush1.xpose.msra.mxu0 0.0
        %1141 = vmatprep.subr.mxu0 0.0
        %1142 = vmatpush1.xpose.msra.mxu0 0.0
        %1143 = vmatprep.subr.mxu0 0.0
        %1144 = vmatpush1.xpose.msra.mxu0 0.0
        %1145 = vmatprep.subr.mxu0 0.0
        %1146 = vmatpush1.xpose.msra.mxu0 0.0
        %1147 = vmatprep.subr.mxu0 0.0
        %1148 = vmatpush1.xpose.msra.mxu0 0.0
        %1149 = vmatprep.subr.mxu0 0.0
        %1150 = vmatpush1.xpose.msra.mxu0 0.0
        %1151 = vmatprep.subr.mxu0 0.0
        %1152 = vmatpush1.xpose.msra.mxu0 0.0
        %1153 = vmatprep.subr.mxu0 0.0
        %1154 = vmatpush1.xpose.msra.mxu0 0.0
        %1155 = vmatprep.subr.mxu0 0.0
        %1156 = vmatpush1.xpose.msra.mxu0 0.0
        %1157 = vmatprep.subr.mxu0 0.0
        %1158 = vmatpush1.xpose.msra.mxu0 0.0
        %1159 = vmatprep.subr.mxu0 0.0
        %1160 = vmatpush1.xpose.msra.mxu0 0.0
        %1161 = vmatprep.subr.mxu0 0.0
        %1162 = vmatpush1.xpose.msra.mxu0 0.0
        %1163 = vmatprep.subr.mxu0 0.0
        %1164 = vmatpush1.xpose.msra.mxu0 0.0
        %1165 = vmatprep.subr.mxu0 0.0
        %1166 = vmatpush1.xpose.msra.mxu0 0.0
        %1167 = vmatprep.subr.mxu0 0.0
        %1168 = vmatpush1.xpose.msra.mxu0 0.0
        %1169 = vmatprep.subr.mxu0 0.0
        %1170 = vmatpush1.xpose.msra.mxu0 0.0
        %1171 = vmatprep.subr.mxu0 0.0
        %1172 = vmatpush1.xpose.msra.mxu0 0.0
        %1173 = vmatprep.subr.mxu0 0.0
        %1174 = vmatpush1.xpose.msra.mxu0 0.0
        %1175 = vmatprep.subr.mxu0 0.0
        %1176 = vmatpush1.xpose.msra.mxu0 0.0
        %1177 = vmatprep.subr.mxu0 0.0
        %1178 = vmatpush1.xpose.msra.mxu0 0.0
        %1179 = vmatprep.subr.mxu0 0.0
        %1180 = vmatpush1.xpose.msra.mxu0 0.0
        %1181 = vmatprep.subr.mxu0 0.0
        %1182 = vmatpush1.xpose.msra.mxu0 0.0
        %1183 = vmatprep.subr.mxu0 0.0
        %1184 = vmatpush1.xpose.msra.mxu0 0.0
        %1185 = vmatprep.subr.mxu0 0.0
        %1186 = vmatpush1.xpose.msra.mxu0 0.0
        %1187 = vmatprep.subr.mxu0 0.0
        %1188 = vmatpush1.xpose.msra.mxu0 0.0
        %1189 = vmatprep.subr.mxu0 0.0
        %1190 = vmatpush1.xpose.msra.mxu0 0.0
        %1191 = vmatprep.subr.mxu0 0.0
        %1192 = vmatpush1.xpose.msra.mxu0 0.0
        %1193 = vmatprep.subr.mxu0 0.0
        %1194 = vmatpush1.xpose.msra.mxu0 0.0
        %1195 = vmatprep.mubr.f32.mxu0 0.0
        %1196 = vmatmul.mubr.f32.gmra.mrb[0].mxu0 %v1127
        %v1197 = vpop.f32.mrb[0].mxu0
        %v1198 = vadd.f32 0.0, %v1197
        %v1199 = vpop.f32.mrb[0].mxu0
        %1200 = vdwg.mxu0
        %v1201 = vsel %vm621, %v1198, -inf
        %1202 = vmax.xlane.f32.xlu0 %v1201
        %v1203 = vpop.xlane.xlu0 %1202
        %v1204 = vsub.f32 %v1198, %v1203
        %v1205 = vmul.f32 %v1204, 1.442695
        %v1206 = vpow.pop %v1205
        %v1207 = vsel %vm621, %v1206, 0.0
        %1208 = vadd.xlane.f32.xlu0 %v1207
        %v1209 = vpop.xlane.xlu0 %1208
        %v1210 = vrcp.pop %v1209
        %v1211 = vmul.f32 %v1206, %v1210
        %v1212 = vmul.f32 %v1211, 0.25
        %v1213 = vld [vmem:[%s531] sm:$0xff]
        %v1214 = vadd.f32 %v1213, %v1212
        %1215 = vst.msk [vmem:[%s531] sm:$0xff] %vm621, %v1214
        %1216 = vrot.lane.b32.xlu0 %v615, 40
        %v1217 = vpop.permute.xlu0 %1216
        %v1220 = vsel %vm621, %v1211, 0
        %1222 = vmatprep.subr.mxu0 0.0
        %1223 = vmatpush1.msra.mxu0 %v1217
        %1224 = vmatprep.subr.mxu0 0.0
        %1225 = vmatpush1.msra.mxu0 0.0
        %1226 = vmatprep.subr.mxu0 0.0
        %1227 = vmatpush1.msra.mxu0 0.0
        %1228 = vmatprep.subr.mxu0 0.0
        %1229 = vmatpush1.msra.mxu0 0.0
        %1230 = vmatprep.subr.mxu0 0.0
        %1231 = vmatpush1.msra.mxu0 0.0
        %1232 = vmatprep.subr.mxu0 0.0
        %1233 = vmatpush1.msra.mxu0 0.0
        %1234 = vmatprep.subr.mxu0 0.0
        %1235 = vmatpush1.msra.mxu0 0.0
        %1236 = vmatprep.subr.mxu0 0.0
        %1237 = vmatpush1.msra.mxu0 0.0
        %1238 = vmatprep.subr.mxu0 0.0
        %1239 = vmatpush1.msra.mxu0 0.0
        %1240 = vmatprep.subr.mxu0 0.0
        %1241 = vmatpush1.msra.mxu0 0.0
        %1242 = vmatprep.subr.mxu0 0.0
        %1243 = vmatpush1.msra.mxu0 0.0
        %1244 = vmatprep.subr.mxu0 0.0
        %1245 = vmatpush1.msra.mxu0 0.0
        %1246 = vmatprep.subr.mxu0 0.0
        %1247 = vmatpush1.msra.mxu0 0.0
        %1248 = vmatprep.subr.mxu0 0.0
        %1249 = vmatpush1.msra.mxu0 0.0
        %1250 = vmatprep.subr.mxu0 0.0
        %1251 = vmatpush1.msra.mxu0 0.0
        %1252 = vmatprep.subr.mxu0 0.0
        %1253 = vmatpush1.msra.mxu0 0.0
        %1254 = vmatprep.subr.mxu0 0.0
        %1255 = vmatpush1.msra.mxu0 0.0
        %1256 = vmatprep.subr.mxu0 0.0
        %1257 = vmatpush1.msra.mxu0 0.0
        %1258 = vmatprep.subr.mxu0 0.0
        %1259 = vmatpush1.msra.mxu0 0.0
        %1260 = vmatprep.subr.mxu0 0.0
        %1261 = vmatpush1.msra.mxu0 0.0
        %1262 = vmatprep.subr.mxu0 0.0
        %1263 = vmatpush1.msra.mxu0 0.0
        %1264 = vmatprep.subr.mxu0 0.0
        %1265 = vmatpush1.msra.mxu0 0.0
        %1266 = vmatprep.subr.mxu0 0.0
        %1267 = vmatpush1.msra.mxu0 0.0
        %1268 = vmatprep.subr.mxu0 0.0
        %1269 = vmatpush1.msra.mxu0 0.0
        %1270 = vmatprep.subr.mxu0 0.0
        %1271 = vmatpush1.msra.mxu0 0.0
        %1272 = vmatprep.subr.mxu0 0.0
        %1273 = vmatpush1.msra.mxu0 0.0
        %1274 = vmatprep.subr.mxu0 0.0
        %1275 = vmatpush1.msra.mxu0 0.0
        %1276 = vmatprep.subr.mxu0 0.0
        %1277 = vmatpush1.msra.mxu0 0.0
        %1278 = vmatprep.subr.mxu0 0.0
        %1279 = vmatpush1.msra.mxu0 0.0
        %1280 = vmatprep.subr.mxu0 0.0
        %1281 = vmatpush1.msra.mxu0 0.0
        %1282 = vmatprep.subr.mxu0 0.0
        %1283 = vmatpush1.msra.mxu0 0.0
        %1284 = vmatprep.subr.mxu0 0.0
        %1285 = vmatpush1.msra.mxu0 0.0
        %1286 = vmatprep.mubr.f32.mxu0 0.0
        %1287 = vmatmul.mubr.f32.gmra.mrb[0].mxu0 %v1220
        %v1288 = vpop.f32.mrb[0].mxu0
        %v1289 = vadd.f32 0.0, %v1288
        %v1290 = vpop.f32.mrb[0].mxu0
        %1291 = vdwg.mxu0
        %1293 = vrot.lane.b32.xlu0 %v951, 8
        %v1294 = vpop.permute.xlu0 %1293
        %1297 = vrot.lane.b32.xlu0 %v1120, 16
        %v1298 = vpop.permute.xlu0 %1297
        %1301 = vrot.lane.b32.xlu0 %v1289, 24
        %v1302 = vpop.permute.xlu0 %1301
        %v1304 = vsel %vm621, %v782, %v1294
        %vm1305 = vcmask 130048
        %v1306 = vsel %vm1305, %v1304, %v1298
        %vm1307 = vcmask 195584
        %v1308 = vsel %vm1307, %v1306, %v1302
        %v1309 = vld [vmem:[%s3] sm:$0xff]
        %v1310 = vld [vmem:[%s3 + $0x8] sm:$0xff]
        %v1311 = vld [vmem:[%s3 + $0x10] sm:$0xff]
        %v1312 = vld [vmem:[%s3 + $0x18] sm:$0xff]
        %v1313 = vld [vmem:[%s4] sm:$0x1]
        %v1315 = vlaneseq
        %v1316 = vshrl.u32 %v1315, 7
        %v1317 = vsub.s32 0, %v1316
        %v1318 = vrot.slane %v1313, %v1317
        %v1321 = vsel %vm544, %v1308, 0
        %1323 = vmatprep.subr.mxu0 0.0
        %1324 = vmatpush1.msra.mxu0 %v1309
        %1325 = vmatprep.subr.mxu0 0.0
        %1326 = vmatpush1.msra.mxu0 %v1310
        %1327 = vmatprep.subr.mxu0 0.0
        %1328 = vmatpush1.msra.mxu0 %v1311
        %1329 = vmatprep.subr.mxu0 0.0
        %1330 = vmatpush1.msra.mxu0 %v1312
        %1331 = vmatprep.subr.mxu0 0.0
        %1332 = vmatpush1.msra.mxu0 0.0
        %1333 = vmatprep.subr.mxu0 0.0
        %1334 = vmatpush1.msra.mxu0 0.0
        %1335 = vmatprep.subr.mxu0 0.0
        %1336 = vmatpush1.msra.mxu0 0.0
        %1337 = vmatprep.subr.mxu0 0.0
        %1338 = vmatpush1.msra.mxu0 0.0
        %1339 = vmatprep.subr.mxu0 0.0
        %1340 = vmatpush1.msra.mxu0 0.0
        %1341 = vmatprep.subr.mxu0 0.0
        %1342 = vmatpush1.msra.mxu0 0.0
        %1343 = vmatprep.subr.mxu0 0.0
        %1344 = vmatpush1.msra.mxu0 0.0
        %1345 = vmatprep.subr.mxu0 0.0
        %1346 = vmatpush1.msra.mxu0 0.0
        %1347 = vmatprep.subr.mxu0 0.0
        %1348 = vmatpush1.msra.mxu0 0.0
        %1349 = vmatprep.subr.mxu0 0.0
        %1350 = vmatpush1.msra.mxu0 0.0
        %1351 = vmatprep.subr.mxu0 0.0
        %1352 = vmatpush1.msra.mxu0 0.0
        %1353 = vmatprep.subr.mxu0 0.0
        %1354 = vmatpush1.msra.mxu0 0.0
        %1355 = vmatprep.subr.mxu0 0.0
        %1356 = vmatpush1.msra.mxu0 0.0
        %1357 = vmatprep.subr.mxu0 0.0
        %1358 = vmatpush1.msra.mxu0 0.0
        %1359 = vmatprep.subr.mxu0 0.0
        %1360 = vmatpush1.msra.mxu0 0.0
        %1361 = vmatprep.subr.mxu0 0.0
        %1362 = vmatpush1.msra.mxu0 0.0
        %1363 = vmatprep.subr.mxu0 0.0
        %1364 = vmatpush1.msra.mxu0 0.0
        %1365 = vmatprep.subr.mxu0 0.0
        %1366 = vmatpush1.msra.mxu0 0.0
        %1367 = vmatprep.subr.mxu0 0.0
        %1368 = vmatpush1.msra.mxu0 0.0
        %1369 = vmatprep.subr.mxu0 0.0
        %1370 = vmatpush1.msra.mxu0 0.0
        %1371 = vmatprep.subr.mxu0 0.0
        %1372 = vmatpush1.msra.mxu0 0.0
        %1373 = vmatprep.subr.mxu0 0.0
        %1374 = vmatpush1.msra.mxu0 0.0
        %1375 = vmatprep.subr.mxu0 0.0
        %1376 = vmatpush1.msra.mxu0 0.0
        %1377 = vmatprep.subr.mxu0 0.0
        %1378 = vmatpush1.msra.mxu0 0.0
        %1379 = vmatprep.subr.mxu0 0.0
        %1380 = vmatpush1.msra.mxu0 0.0
        %1381 = vmatprep.subr.mxu0 0.0
        %1382 = vmatpush1.msra.mxu0 0.0
        %1383 = vmatprep.subr.mxu0 0.0
        %1384 = vmatpush1.msra.mxu0 0.0
        %1385 = vmatprep.subr.mxu0 0.0
        %1386 = vmatpush1.msra.mxu0 0.0
        %1387 = vmatprep.mubr.f32.mxu0 0.0
        %1388 = vmatmul.mubr.f32.gmra.mrb[0].mxu0 %v1321
        %v1389 = vpop.f32.mrb[0].mxu0
        %v1390 = vadd.f32 %v1318, %v1389
        %v1391 = vpop.f32.mrb[0].mxu0
        %1392 = vdwg.mxu0
        %v1393 = vadd.f32 %v532, %v1390
        %v1394 = vsel %vm544, %v1393, 0.0
        %1395 = vadd.xlane.f32.xlu0 %v1394
        %v1396 = vpop.xlane.xlu0 %1395
        %v1397 = vrcp.pop 32.0
        %v1398 = vmul.f32 %v1396, %v1397
        %v1399 = vsub.f32 %v1393, %v1398
        %v1400 = vmul.f32 %v1399, %v1399
        %v1401 = vsel %vm544, %v1400, 0.0
        %1402 = vadd.xlane.f32.xlu0 %v1401
        %v1403 = vpop.xlane.xlu0 %1402
        %v1404 = vmul.f32 %v1403, %v1397
        %v1405 = vadd.f32 %v1404, 1e-05
        %v1406 = vrsqrt.pop %v1405
        %v1407 = vmul.f32 %v1399, %v1406
        %v1408 = vld [vmem:[#allocation5] sm:$0x1]
        %v1410 = vlaneseq
        %v1411 = vshrl.u32 %v1410, 7
        %v1412 = vsub.s32 0, %v1411
        %v1413 = vrot.slane %v1408, %v1412
        %v1415 = vmul.f32 %v1407, %v1413
        %v1416 = vld [vmem:[#allocation7] sm:$0x1]
        %v1418 = vlaneseq
        %v1419 = vshrl.u32 %v1418, 7
        %v1420 = vsub.s32 0, %v1419
        %v1421 = vrot.slane %v1416, %v1420
        %v1423 = vadd.f32 %v1415, %v1421
        %v1424 = vld [vmem:[%s7] sm:$0xff]
        %v1425 = vld [vmem:[%s7 + $0x8] sm:$0xff]
        %v1426 = vld [vmem:[%s7 + $0x10] sm:$0xff]
        %v1427 = vld [vmem:[%s7 + $0x18] sm:$0xff]
        %v1428 = vld [vmem:[#allocation8] sm:$0x1]
        %v1430 = vlaneseq
        %v1431 = vshrl.u32 %v1430, 7
        %v1432 = vsub.s32 0, %v1431
        %v1433 = vrot.slane %v1428, %v1432
        %v1436 = vsel %vm544, %v1423, 0
        %1438 = vmatprep.subr.mxu0 0.0
        %1439 = vmatpush1.msra.mxu0 %v1424
        %1440 = vmatprep.subr.mxu0 0.0
        %1441 = vmatpush1.msra.mxu0 %v1425
        %1442 = vmatprep.subr.mxu0 0.0
        %1443 = vmatpush1.msra.mxu0 %v1426
        %1444 = vmatprep.subr.mxu0 0.0
        %1445 = vmatpush1.msra.mxu0 %v1427
        %1446 = vmatprep.subr.mxu0 0.0
        %1447 = vmatpush1.msra.mxu0 0.0
        %1448 = vmatprep.subr.mxu0 0.0
        %1449 = vmatpush1.msra.mxu0 0.0
        %1450 = vmatprep.subr.mxu0 0.0
        %1451 = vmatpush1.msra.mxu0 0.0
        %1452 = vmatprep.subr.mxu0 0.0
        %1453 = vmatpush1.msra.mxu0 0.0
        %1454 = vmatprep.subr.mxu0 0.0
        %1455 = vmatpush1.msra.mxu0 0.0
        %1456 = vmatprep.subr.mxu0 0.0
        %1457 = vmatpush1.msra.mxu0 0.0
        %1458 = vmatprep.subr.mxu0 0.0
        %1459 = vmatpush1.msra.mxu0 0.0
        %1460 = vmatprep.subr.mxu0 0.0
        %1461 = vmatpush1.msra.mxu0 0.0
        %1462 = vmatprep.subr.mxu0 0.0
        %1463 = vmatpush1.msra.mxu0 0.0
        %1464 = vmatprep.subr.mxu0 0.0
        %1465 = vmatpush1.msra.mxu0 0.0
        %1466 = vmatprep.subr.mxu0 0.0
        %1467 = vmatpush1.msra.mxu0 0.0
        %1468 = vmatprep.subr.mxu0 0.0
        %1469 = vmatpush1.msra.mxu0 0.0
        %1470 = vmatprep.subr.mxu0 0.0
        %1471 = vmatpush1.msra.mxu0 0.0
        %1472 = vmatprep.subr.mxu0 0.0
        %1473 = vmatpush1.msra.mxu0 0.0
        %1474 = vmatprep.subr.mxu0 0.0
        %1475 = vmatpush1.msra.mxu0 0.0
        %1476 = vmatprep.subr.mxu0 0.0
        %1477 = vmatpush1.msra.mxu0 0.0
        %1478 = vmatprep.subr.mxu0 0.0
        %1479 = vmatpush1.msra.mxu0 0.0
        %1480 = vmatprep.subr.mxu0 0.0
        %1481 = vmatpush1.msra.mxu0 0.0
        %1482 = vmatprep.subr.mxu0 0.0
        %1483 = vmatpush1.msra.mxu0 0.0
        %1484 = vmatprep.subr.mxu0 0.0
        %1485 = vmatpush1.msra.mxu0 0.0
        %1486 = vmatprep.subr.mxu0 0.0
        %1487 = vmatpush1.msra.mxu0 0.0
        %1488 = vmatprep.subr.mxu0 0.0
        %1489 = vmatpush1.msra.mxu0 0.0
        %1490 = vmatprep.subr.mxu0 0.0
        %1491 = vmatpush1.msra.mxu0 0.0
        %1492 = vmatprep.subr.mxu0 0.0
        %1493 = vmatpush1.msra.mxu0 0.0
        %1494 = vmatprep.subr.mxu0 0.0
        %1495 = vmatpush1.msra.mxu0 0.0
        %1496 = vmatprep.subr.mxu0 0.0
        %1497 = vmatpush1.msra.mxu0 0.0
        %1498 = vmatprep.subr.mxu0 0.0
        %1499 = vmatpush1.msra.mxu0 0.0
        %1500 = vmatprep.subr.mxu0 0.0
        %1501 = vmatpush1.msra.mxu0 0.0
        %1502 = vmatprep.mubr.f32.mxu0 0.0
        %1503 = vmatmul.mubr.f32.gmra.mrb[0].mxu0 %v1436
        %v1504 = vpop.f32.mrb[0].mxu0
        %v1505 = vadd.f32 %v1433, %v1504
        %v1506 = vpop.f32.mrb[0].mxu0
        %1507 = vdwg.mxu0
        %v1508 = vmax.f32 %v1505, 0.0
        %v1509 = vld [vmem:[%s9] sm:$0xff]
        %v1510 = vld [vmem:[%s9 + $0x8] sm:$0xff]
        %v1511 = vld [vmem:[%s9 + $0x10] sm:$0xff]
        %v1512 = vld [vmem:[%s9 + $0x18] sm:$0xff]
        %v1513 = vld [vmem:[%s9 + $0x20] sm:$0xff]
        %v1514 = vld [vmem:[%s9 + $0x28] sm:$0xff]
        %v1515 = vld [vmem:[%s9 + $0x30] sm:$0xff]
        %v1516 = vld [vmem:[%s9 + $0x38] sm:$0xff]
        %v1517 = vld [vmem:[%s10] sm:$0x1]
        %v1519 = vlaneseq
        %v1520 = vshrl.u32 %v1519, 7
        %v1521 = vsub.s32 0, %v1520
        %v1522 = vrot.slane %v1517, %v1521
        %vm1524 = vcmask 523264
        %v1526 = vsel %vm1524, %v1508, 0
        %1528 = vmatprep.subr.mxu0 0.0
        %1529 = vmatpush1.msra.mxu0 %v1509
        %1530 = vmatprep.subr.mxu0 0.0
        %1531 = vmatpush1.msra.mxu0 %v1510
        %1532 = vmatprep.subr.mxu0 0.0
        %1533 = vmatpush1.msra.mxu0 %v1511
        %1534 = vmatprep.subr.mxu0 0.0
        %1535 = vmatpush1.msra.mxu0 %v1512
        %1536 = vmatprep.subr.mxu0 0.0
        %1537 = vmatpush1.msra.mxu0 %v1513
        %1538 = vmatprep.subr.mxu0 0.0
        %1539 = vmatpush1.msra.mxu0 %v1514
        %1540 = vmatprep.subr.mxu0 0.0
        %1541 = vmatpush1.msra.mxu0 %v1515
        %1542 = vmatprep.subr.mxu0 0.0
        %1543 = vmatpush1.msra.mxu0 %v1516
        %1544 = vmatprep.subr.mxu0 0.0
        %1545 = vmatpush1.msra.mxu0 0.0
        %1546 = vmatprep.subr.mxu0 0.0
        %1547 = vmatpush1.msra.mxu0 0.0
        %1548 = vmatprep.subr.mxu0 0.0
        %1549 = vmatpush1.msra.mxu0 0.0
        %1550 = vmatprep.subr.mxu0 0.0
        %1551 = vmatpush1.msra.mxu0 0.0
        %1552 = vmatprep.subr.mxu0 0.0
        %1553 = vmatpush1.msra.mxu0 0.0
        %1554 = vmatprep.subr.mxu0 0.0
        %1555 = vmatpush1.msra.mxu0 0.0
        %1556 = vmatprep.subr.mxu0 0.0
        %1557 = vmatpush1.msra.mxu0 0.0
        %1558 = vmatprep.subr.mxu0 0.0
        %1559 = vmatpush1.msra.mxu0 0.0
        %1560 = vmatprep.subr.mxu0 0.0
        %1561 = vmatpush1.msra.mxu0 0.0
        %1562 = vmatprep.subr.mxu0 0.0
        %1563 = vmatpush1.msra.mxu0 0.0
        %1564 = vmatprep.subr.mxu0 0.0
        %1565 = vmatpush1.msra.mxu0 0.0
        %1566 = vmatprep.subr.mxu0 0.0
        %1567 = vmatpush1.msra.mxu0 0.0
        %1568 = vmatprep.subr.mxu0 0.0
        %1569 = vmatpush1.msra.mxu0 0.0
        %1570 = vmatprep.subr.mxu0 0.0
        %1571 = vmatpush1.msra.mxu0 0.0
        %1572 = vmatprep.subr.mxu0 0.0
        %1573 = vmatpush1.msra.mxu0 0.0
        %1574 = vmatprep.subr.mxu0 0.0
        %1575 = vmatpush1.msra.mxu0 0.0
        %1576 = vmatprep.subr.mxu0 0.0
        %1577 = vmatpush1.msra.mxu0 0.0
        %1578 = vmatprep.subr.mxu0 0.0
        %1579 = vmatpush1.msra.mxu0 0.0
        %1580 = vmatprep.subr.mxu0 0.0
        %1581 = vmatpush1.msra.mxu0 0.0
        %1582 = vmatprep.subr.mxu0 0.0
        %1583 = vmatpush1.msra.mxu0 0.0
        %1584 = vmatprep.subr.mxu0 0.0
        %1585 = vmatpush1.msra.mxu0 0.0
        %1586 = vmatprep.subr.mxu0 0.0
        %1587 = vmatpush1.msra.mxu0 0.0
        %1588 = vmatprep.subr.mxu0 0.0
        %1589 = vmatpush1.msra.mxu0 0.0
        %1590 = vmatprep.subr.mxu0 0.0
        %1591 = vmatpush1.msra.mxu0 0.0
        %1592 = vmatprep.mubr.f32.mxu0 0.0
        %1593 = vmatmul.mubr.f32.gmra.mrb[0].mxu0 %v1526
        %v1594 = vpop.f32.mrb[0].mxu0
        %v1595 = vadd.f32 %v1522, %v1594
        %v1596 = vpop.f32.mrb[0].mxu0
        %1597 = vdwg.mxu0
        %v1598 = vadd.f32 %v1423, %v1595
        %v1599 = vsel %vm544, %v1598, 0.0
        %1600 = vadd.xlane.f32.xlu0 %v1599
        %v1601 = vpop.xlane.xlu0 %1600
        %v1602 = vmul.f32 %v1601, %v1397
        %v1603 = vsub.f32 %v1598, %v1602
        %v1604 = vmul.f32 %v1603, %v1603
        %v1605 = vsel %vm544, %v1604, 0.0
        %1606 = vadd.xlane.f32.xlu0 %v1605
        %v1607 = vpop.xlane.xlu0 %1606
        %v1608 = vmul.f32 %v1607, %v1397
        %v1609 = vadd.f32 %v1608, 1e-05
        %v1610 = vrsqrt.pop %v1609
        %v1611 = vmul.f32 %v1603, %v1610
        %v1612 = vld [vmem:[%s11] sm:$0x1]
        %v1614 = vlaneseq
        %v1615 = vshrl.u32 %v1614, 7
        %v1616 = vsub.s32 0, %v1615
        %v1617 = vrot.slane %v1612, %v1616
        %v1619 = vmul.f32 %v1611, %v1617
        %v1620 = vld [vmem:[%s12] sm:$0x1]
        %v1622 = vlaneseq
        %v1623 = vshrl.u32 %v1622, 7
        %v1624 = vsub.s32 0, %v1623
        %v1625 = vrot.slane %v1620, %v1624
        %v1627 = vadd.f32 %v1619, %v1625
        %1628 = vst.msk [vmem:[%s524] sm:$0xff] %vm544, %v1627
        %s1629 = sand.u32 %s323, 1
        %s1630 = scalar_lea.sflag [#allocation4], %s1629
        %s1631 = sand.u32 %s323, 1
        %s1632 = smul.addr %s1631, 8
        %s1633 = scalar_lea.vmem [#allocation10], %s1632
        %s1634 = sand.u32 %s349, 1
        %s1635 = scalar_lea.sflag [#allocation12], %s1634
        %s1636 = sand.u32 %s349, 1
        %s1637 = smul.addr %s1636, 8
        %s1638 = scalar_lea.vmem [#allocation11], %s1637
        // Predicated region
        $region89: #{tpu_custom_call.1} parent=71 // pred_check
          %p1639 = pneg %p333
        $region90: #{tpu_custom_call.1} parent=71 // pred_check_branch
          %1641 = sbr.rel (%p1639) target = $region92
        $region91: #{tpu_custom_call.1} parent=71 // pred_region
          %s1643 = ssub.s32 128, 128
          %1644 = vsyncadd %s1630, %s1643
          %s1645 = smul.addr %s37, 128
          %s1646 = scalar_lea.hbm %s13, %s1645
          %s1648 = sshll.u32 %s1633, 4
          %s1649 = int_to_ptr.vmem [resolvable:$true] %s1648
          %1651 = dma.vmem_to_hbm [thread:$0]  %s1649, 128, %s1646, %s1630
        $region92: #{tpu_custom_call.1} parent=71 // pred_fallthru
          _
        // Predicated region
        $region93: #{tpu_custom_call.1} parent=71 // pred_check
          %p1652 = pneg %p359
        $region94: #{tpu_custom_call.1} parent=71 // pred_check_branch
          %1654 = sbr.rel (%p1652) target = $region96
        $region95: #{tpu_custom_call.1} parent=71 // pred_region
          %s1656 = ssub.s32 128, 128
          %1657 = vsyncadd %s1635, %s1656
          %s1658 = smul.addr %s37, 128
          %s1659 = scalar_lea.hbm %s14, %s1658
          %s1661 = sshll.u32 %s1638, 4
          %s1662 = int_to_ptr.vmem [resolvable:$true] %s1661
          %1664 = dma.vmem_to_hbm [thread:$0]  %s1662, 128, %s1659, %s1635
        $region96: #{tpu_custom_call.1} parent=71 // pred_fallthru
          _
      $region72: #{tpu_custom_call.1} parent=5 // pred_fallthru
        _
      %p1665 = scmp.le.s32.totalorder 2, %s32
      // Predicated region
      $region97: #{tpu_custom_call.1} parent=5 // pred_check
        %p1666 = pneg %p1665
      $region98: #{tpu_custom_call.1} parent=5 // pred_check_branch
        %1668 = sbr.rel (%p1666) target = $region100
      $region99: #{tpu_custom_call.1} parent=5 // pred_region
        %s1669 = ssub.s32 %s32, 2
        // Predicated region
        $region101: #{tpu_custom_call.1} parent=99 // pred_check
          %p1670 = pneg %p339
        $region102: #{tpu_custom_call.1} parent=99 // pred_check_branch
          %1672 = sbr.rel (%p1670) target = $region104
        $region103: #{tpu_custom_call.1} parent=99 // pred_region
          %s1673 = sand.u32 %s324, 1
          %s1674 = scalar_lea.sflag [#allocation4], %s1673
          %s1675 = sand.u32 %s324, 1
          %s1676 = smul.addr %s1675, 8
          %s1677 = scalar_lea.vmem [#allocation10], %s1676
          %1678 = dma.done %s1674, 128
        $region104: #{tpu_custom_call.1} parent=99 // pred_fallthru
          _
        // Predicated region
        $region105: #{tpu_custom_call.1} parent=99 // pred_check
          %p1679 = pneg %p365
        $region106: #{tpu_custom_call.1} parent=99 // pred_check_branch
          %1681 = sbr.rel (%p1679) target = $region108
        $region107: #{tpu_custom_call.1} parent=99 // pred_region
          %s1682 = sand.u32 %s350, 1
          %s1683 = scalar_lea.sflag [#allocation12], %s1682
          %s1684 = sand.u32 %s350, 1
          %s1685 = smul.addr %s1684, 8
          %s1686 = scalar_lea.vmem [#allocation11], %s1685
          %1687 = dma.done %s1683, 128
        $region108: #{tpu_custom_call.1} parent=99 // pred_fallthru
          _
      $region100: #{tpu_custom_call.1} parent=5 // pred_fallthru
        _
    $region6: #{tpu_custom_call.1} parent=1 // loop_footer
      %s36 = sadd.s32 1, %s32
    $region7: #{tpu_custom_call.1} parent=1 // loop_footer_branch
      %31 = sbr.rel target = $region3
    $region8: #{tpu_custom_call.1} parent=1 // loop_exit
      _
    %1688 = vsyncpa [#allocation3], 1
    %s1689 = scalar_lea.sflag [#allocation3], 1
    %1690 = vsyncpa %s1689, 1
    %1691 = vsyncpa [#allocation6], 1
    %1692 = vsyncpa [#allocation9], 1
    %1693 = vsyncpa [#allocation4], 1
    %s1694 = scalar_lea.sflag [#allocation4], 1
    %1695 = vsyncpa %s1694, 1
    %1696 = vsyncpa [#allocation12], 1
    %s1697 = scalar_lea.sflag [#allocation12], 1
    %1698 = vsyncpa %s1697, 1

// kernel: tpu_custom_call.1
$region0: #{tpu_custom_call.1}
  #allocation0 [shape = 'u32[]', space=smem, size = 0x4, offset = 0x4, fixed_abs, tag = 'smem constant byte address 0x4 - core index']
  #allocation1 [shape = 'u32[144,128]{1,0:T(1,128)}', space=vmem, size = 0x12000, scoped, tag = 'internal scratch']
  %s0 = inlined_call_operand.hbm [shape: f32[2,8,32], index: 0, kind: input, shape index: {}]
  %s1 = inlined_call_operand.vmem [shape: f32[32,96], index: 1, kind: input, shape index: {}]
  %s2 = inlined_call_operand.vmem [shape: f32[1,96], index: 2, kind: input, shape index: {}]
  %s3 = inlined_call_operand.vmem [shape: f32[32,32], index: 3, kind: input, shape index: {}]
  %s4 = inlined_call_operand.vmem [shape: f32[1,32], index: 4, kind: input, shape index: {}]
  %s5 = inlined_call_operand.hbm [shape: f32[1,32], index: 5, kind: input, shape index: {}]
  %s6 = inlined_call_operand.hbm [shape: f32[1,32], index: 6, kind: input, shape index: {}]
  %s7 = inlined_call_operand.vmem [shape: f32[32,64], index: 7, kind: input, shape index: {}]
  %s8 = inlined_call_operand.hbm [shape: f32[1,64], index: 8, kind: input, shape index: {}]
  %s9 = inlined_call_operand.vmem [shape: f32[64,32], index: 9, kind: input, shape index: {}]
  %s10 = inlined_call_operand.vmem [shape: f32[1,32], index: 10, kind: input, shape index: {}]
  %s11 = inlined_call_operand.vmem [shape: f32[1,32], index: 11, kind: input, shape index: {}]
  %s12 = inlined_call_operand.vmem [shape: f32[1,32], index: 12, kind: input, shape index: {}]
  %s13 = inlined_call_operand.hbm [shape: f32[2,8,32], index: 13, kind: output, shape index: {0}]
  %s14 = inlined_call_operand.hbm [shape: f32[2,8,8], index: 14, kind: output, shape index: {1}]
  %15 = xla_tuple %s13, %s14
  %s16 = sld [smem:[#allocation0]]
  $region109: #{tpu_custom_call.1} parent=0
    _
  %s18 = ssub.s32 1, %s16
  %s19 = scalar_select 0, %s18, %s16
  $region1: #{tpu_custom_call.1} parent=0
    #allocation2 [shape = 'u8[8192]{0}', space=vmem, size = 0x2000, scoped, tag = 'input window, operand 0']
    #allocation3 [shape = 's32[2]{0}', space=sflag, size = 0x8, scoped, tag = 'scoped memory for tpu_custom_call.1']
    #allocation4 [shape = 's32[2]{0}', space=sflag, size = 0x8, scoped, tag = 'scoped memory for tpu_custom_call.1']
    #allocation5 [shape = 'u8[512]{0}', space=vmem, size = 0x400, scoped, tag = 'input window, operand 5, single buffered']
    #allocation6 [shape = 's32[1]{0}', space=sflag, size = 0x4, scoped, tag = 'scoped memory for tpu_custom_call.1']
    #allocation7 [shape = 'u8[512]{0}', space=vmem, size = 0x400, scoped, tag = 'input window, operand 6, single buffered']
    #allocation8 [shape = 'u8[512]{0}', space=vmem, size = 0x400, scoped, tag = 'input window, operand 8, single buffered']
    #allocation9 [shape = 's32[1]{0}', space=sflag, size = 0x4, scoped, tag = 'scoped memory for tpu_custom_call.1']
    #allocation10 [shape = 'u8[8192]{0}', space=vmem, size = 0x2000, scoped, tag = 'output window, operand 0']
    #allocation11 [shape = 'u8[8192]{0}', space=vmem, size = 0x2000, scoped, tag = 'output window, operand 1']
    #allocation12 [shape = 's32[2]{0}', space=sflag, size = 0x8, scoped, tag = 'scoped memory for tpu_custom_call.1']
    %20 = vsyncpa [#allocation3], 0
    %s21 = scalar_lea.sflag [#allocation3], 1
    %22 = vsyncpa %s21, 0
    %23 = vsyncpa [#allocation6], 0
    %24 = vsyncpa [#allocation9], 0
    %25 = vsyncpa [#allocation4], 0
    %s26 = scalar_lea.sflag [#allocation4], 1
    %27 = vsyncpa %s26, 0
    %28 = vsyncpa [#allocation12], 0
    %s29 = scalar_lea.sflag [#allocation12], 1
    %30 = vsyncpa %s29, 0
    loop: start=0, step=1, limit=4
    $region2: #{tpu_custom_call.1} parent=1 // loop_pre_header
      _
    $region3: #{tpu_custom_call.1} parent=1 // loop_header
      %s32 = sphi 0, %s36
      %p33 = scmp.ge.s32.totalorder %s32, 4
      %s42 = sphi 0, %s44
      %s45 = sphi 0, %s42
      %s46 = sphi 0, %s45
      %s62 = sphi 0, %s46
      %s66 = sphi 0, %s66
      %s68 = sphi 0, %s66
      %s69 = sphi 0, %s68
      %s83 = sphi 0, %s69
      %s87 = sphi 0, %s87
      %s89 = sphi 0, %s87
      %s90 = sphi 0, %s89
      %s104 = sphi 0, %s90
      %s108 = sphi 0, %s108
      %s110 = sphi 0, %s108
      %s111 = sphi 0, %s110
      %s125 = sphi 0, %s111
      %s129 = sphi 0, %s129
      %s131 = sphi 0, %s129
      %s132 = sphi 0, %s131
      %s146 = sphi 0, %s132
      %s150 = sphi 0, %s150
      %s152 = sphi 0, %s150
      %s153 = sphi 0, %s152
      %s167 = sphi 0, %s153
      %s171 = sphi 0, %s171
      %s173 = sphi 0, %s171
      %s174 = sphi 0, %s173
      %s188 = sphi 0, %s174
      %s192 = sphi 0, %s192
      %s194 = sphi 0, %s192
      %s195 = sphi 0, %s194
      %s209 = sphi 0, %s195
      %s213 = sphi 0, %s213
      %s215 = sphi 0, %s213
      %s216 = sphi 0, %s215
      %s230 = sphi 0, %s216
      %s234 = sphi 0, %s234
      %s236 = sphi 0, %s234
      %s237 = sphi 0, %s236
      %s251 = sphi 0, %s237
      %s255 = sphi 0, %s255
      %s257 = sphi 0, %s255
      %s258 = sphi 0, %s257
      %s272 = sphi 0, %s258
      %s276 = sphi 0, %s276
      %s278 = sphi 0, %s276
      %s279 = sphi 0, %s278
      %s293 = sphi 0, %s279
      %s297 = sphi 0, %s297
      %s299 = sphi 0, %s297
      %s300 = sphi 0, %s299
      %s314 = sphi 0, %s300
      %s320 = sphi 0, %s322
      %s323 = sphi 0, %s320
      %s324 = sphi 0, %s323
      %s340 = sphi 0, %s324
      %s346 = sphi 0, %s348
      %s349 = sphi 0, %s346
      %s350 = sphi 0, %s349
      %s366 = sphi 0, %s350
    $region4: #{tpu_custom_call.1} parent=1 // loop_header_branch
      %35 = sbr.rel (%p33) target = $region8
    $region5: #{tpu_custom_call.1} parent=1 // loop_body
      %s37 = ssub.s32 %s32, 1
      %s38 = ssub.s32 %s32, 2
      %s39 = sadd.s32 %s32, 1
      %s40 = ssub.s32 %s32, %s39
      %p41 = scmp.eq.s32.totalorder %s40, 0
      %s43 = sadd.s32 %s42, 1
      %s44 = scalar_select %p41, %s42, %s43
      %p47 = pneg %p41
      %p48 = scmp.eq.s32.totalorder %s32, 1
      %p49 = por %p47, %p48
      %p50 = scmp.ne.s32.totalorder %s42, %s45
      %p51 = scmp.eq.s32.totalorder %s32, 0
      %p52 = por %p50, %p51
      %p53 = scmp.ne.s32.totalorder %s42, %s45
      %p54 = scmp.eq.s32.totalorder %s37, 1
      %p55 = por %p53, %p54
      %p56 = scmp.ne.s32.totalorder %s45, %s46
      %p57 = scmp.eq.s32.totalorder %s37, 0
      %p58 = por %p56, %p57
      %p59 = scmp.ne.s32.totalorder %s45, %s46
      %p60 = scmp.eq.s32.totalorder %s38, 1
      %p61 = por %p59, %p60
      %p63 = scmp.ne.s32.totalorder %s46, %s62
      %p64 = scmp.eq.s32.totalorder %s38, 0
      %p65 = por %p63, %p64
      %s67 = sadd.s32 %s66, 1
      %p70 = scmp.eq.s32.totalorder %s32, 1
      %p71 = scmp.ne.s32.totalorder %s66, %s68
      %p72 = scmp.eq.s32.totalorder %s32, 0
      %p73 = por %p71, %p72
      %p74 = scmp.ne.s32.totalorder %s66, %s68
      %p75 = scmp.eq.s32.totalorder %s37, 1
      %p76 = por %p74, %p75
      %p77 = scmp.ne.s32.totalorder %s68, %s69
      %p78 = scmp.eq.s32.totalorder %s37, 0
      %p79 = por %p77, %p78
      %p80 = scmp.ne.s32.totalorder %s68, %s69
      %p81 = scmp.eq.s32.totalorder %s38, 1
      %p82 = por %p80, %p81
      %p84 = scmp.ne.s32.totalorder %s69, %s83
      %p85 = scmp.eq.s32.totalorder %s38, 0
      %p86 = por %p84, %p85
      %s88 = sadd.s32 %s87, 1
      %p91 = scmp.eq.s32.totalorder %s32, 1
      %p92 = scmp.ne.s32.totalorder %s87, %s89
      %p93 = scmp.eq.s32.totalorder %s32, 0
      %p94 = por %p92, %p93
      %p95 = scmp.ne.s32.totalorder %s87, %s89
      %p96 = scmp.eq.s32.totalorder %s37, 1
      %p97 = por %p95, %p96
      %p98 = scmp.ne.s32.totalorder %s89, %s90
      %p99 = scmp.eq.s32.totalorder %s37, 0
      %p100 = por %p98, %p99
      %p101 = scmp.ne.s32.totalorder %s89, %s90
      %p102 = scmp.eq.s32.totalorder %s38, 1
      %p103 = por %p101, %p102
      %p105 = scmp.ne.s32.totalorder %s90, %s104
      %p106 = scmp.eq.s32.totalorder %s38, 0
      %p107 = por %p105, %p106
      %s109 = sadd.s32 %s108, 1
      %p112 = scmp.eq.s32.totalorder %s32, 1
      %p113 = scmp.ne.s32.totalorder %s108, %s110
      %p114 = scmp.eq.s32.totalorder %s32, 0
      %p115 = por %p113, %p114
      %p116 = scmp.ne.s32.totalorder %s108, %s110
      %p117 = scmp.eq.s32.totalorder %s37, 1
      %p118 = por %p116, %p117
      %p119 = scmp.ne.s32.totalorder %s110, %s111
      %p120 = scmp.eq.s32.totalorder %s37, 0
      %p121 = por %p119, %p120
      %p122 = scmp.ne.s32.totalorder %s110, %s111
      %p123 = scmp.eq.s32.totalorder %s38, 1
      %p124 = por %p122, %p123
      %p126 = scmp.ne.s32.totalorder %s111, %s125
      %p127 = scmp.eq.s32.totalorder %s38, 0
      %p128 = por %p126, %p127
      %s130 = sadd.s32 %s129, 1
      %p133 = scmp.eq.s32.totalorder %s32, 1
      %p134 = scmp.ne.s32.totalorder %s129, %s131
      %p135 = scmp.eq.s32.totalorder %s32, 0
      %p136 = por %p134, %p135
      %p137 = scmp.ne.s32.totalorder %s129, %s131
      %p138 = scmp.eq.s32.totalorder %s37, 1
      %p139 = por %p137, %p138
      %p140 = scmp.ne.s32.totalorder %s131, %s132
      %p141 = scmp.eq.s32.totalorder %s37, 0
      %p142 = por %p140, %p141
      %p143 = scmp.ne.s32.totalorder %s131, %s132
      %p144 = scmp.eq.s32.totalorder %s38, 1
      %p145 = por %p143, %p144
      %p147 = scmp.ne.s32.totalorder %s132, %s146
      %p148 = scmp.eq.s32.totalorder %s38, 0
      %p149 = por %p147, %p148
      %s151 = sadd.s32 %s150, 1
      %p154 = scmp.eq.s32.totalorder %s32, 1
      %p155 = scmp.ne.s32.totalorder %s150, %s152
      %p156 = scmp.eq.s32.totalorder %s32, 0
      %p157 = por %p155, %p156
      %p158 = scmp.ne.s32.totalorder %s150, %s152
      %p159 = scmp.eq.s32.totalorder %s37, 1
      %p160 = por %p158, %p159
      %p161 = scmp.ne.s32.totalorder %s152, %s153
      %p162 = scmp.eq.s32.totalorder %s37, 0
      %p163 = por %p161, %p162
      %p164 = scmp.ne.s32.totalorder %s152, %s153
      %p165 = scmp.eq.s32.totalorder %s38, 1
      %p166 = por %p164, %p165
      %p168 = scmp.ne.s32.totalorder %s153, %s167
      %p169 = scmp.eq.s32.totalorder %s38, 0
      %p170 = por %p168, %p169
      %s172 = sadd.s32 %s171, 1
      %p175 = scmp.eq.s32.totalorder %s32, 1
      %p176 = scmp.ne.s32.totalorder %s171, %s173
      %p177 = scmp.eq.s32.totalorder %s32, 0
      %p178 = por %p176, %p177
      %p179 = scmp.ne.s32.totalorder %s171, %s173
      %p180 = scmp.eq.s32.totalorder %s37, 1
      %p181 = por %p179, %p180
      %p182 = scmp.ne.s32.totalorder %s173, %s174
      %p183 = scmp.eq.s32.totalorder %s37, 0
      %p184 = por %p182, %p183
      %p185 = scmp.ne.s32.totalorder %s173, %s174
      %p186 = scmp.eq.s32.totalorder %s38, 1
      %p187 = por %p185, %p186
      %p189 = scmp.ne.s32.totalorder %s174, %s188
      %p190 = scmp.eq.s32.totalorder %s38, 0
      %p191 = por %p189, %p190
      %s193 = sadd.s32 %s192, 1
      %p196 = scmp.eq.s32.totalorder %s32, 1
      %p197 = scmp.ne.s32.totalorder %s192, %s194
      %p198 = scmp.eq.s32.totalorder %s32, 0
      %p199 = por %p197, %p198
      %p200 = scmp.ne.s32.totalorder %s192, %s194
      %p201 = scmp.eq.s32.totalorder %s37, 1
      %p202 = por %p200, %p201
      %p203 = scmp.ne.s32.totalorder %s194, %s195
      %p204 = scmp.eq.s32.totalorder %s37, 0
      %p205 = por %p203, %p204
      %p206 = scmp.ne.s32.totalorder %s194, %s195
      %p207 = scmp.eq.s32.totalorder %s38, 1
      %p208 = por %p206, %p207
      %p210 = scmp.ne.s32.totalorder %s195, %s209
      %p211 = scmp.eq.s32.totalorder %s38, 0
      %p212 = por %p210, %p211
      %s214 = sadd.s32 %s213, 1
      %p217 = scmp.eq.s32.totalorder %s32, 1
      %p218 = scmp.ne.s32.totalorder %s213, %s215
      %p219 = scmp.eq.s32.totalorder %s32, 0
      %p220 = por %p218, %p219
      %p221 = scmp.ne.s32.totalorder %s213, %s215
      %p222 = scmp.eq.s32.totalorder %s37, 1
      %p223 = por %p221, %p222
      %p224 = scmp.ne.s32.totalorder %s215, %s216
      %p225 = scmp.eq.s32.totalorder %s37, 0
      %p226 = por %p224, %p225
      %p227 = scmp.ne.s32.totalorder %s215, %s216
      %p228 = scmp.eq.s32.totalorder %s38, 1
      %p229 = por %p227, %p228
      %p231 = scmp.ne.s32.totalorder %s216, %s230
      %p232 = scmp.eq.s32.totalorder %s38, 0
      %p233 = por %p231, %p232
      %s235 = sadd.s32 %s234, 1
      %p238 = scmp.eq.s32.totalorder %s32, 1
      %p239 = scmp.ne.s32.totalorder %s234, %s236
      %p240 = scmp.eq.s32.totalorder %s32, 0
      %p241 = por %p239, %p240
      %p242 = scmp.ne.s32.totalorder %s234, %s236
      %p243 = scmp.eq.s32.totalorder %s37, 1
      %p244 = por %p242, %p243
      %p245 = scmp.ne.s32.totalorder %s236, %s237
      %p246 = scmp.eq.s32.totalorder %s37, 0
      %p247 = por %p245, %p246
      %p248 = scmp.ne.s32.totalorder %s236, %s237
      %p249 = scmp.eq.s32.totalorder %s38, 1
      %p250 = por %p248, %p249
      %p252 = scmp.ne.s32.totalorder %s237, %s251
      %p253 = scmp.eq.s32.totalorder %s38, 0
      %p254 = por %p252, %p253
      %s256 = sadd.s32 %s255, 1
      %p259 = scmp.eq.s32.totalorder %s32, 1
      %p260 = scmp.ne.s32.totalorder %s255, %s257
      %p261 = scmp.eq.s32.totalorder %s32, 0
      %p262 = por %p260, %p261
      %p263 = scmp.ne.s32.totalorder %s255, %s257
      %p264 = scmp.eq.s32.totalorder %s37, 1
      %p265 = por %p263, %p264
      %p266 = scmp.ne.s32.totalorder %s257, %s258
      %p267 = scmp.eq.s32.totalorder %s37, 0
      %p268 = por %p266, %p267
      %p269 = scmp.ne.s32.totalorder %s257, %s258
      %p270 = scmp.eq.s32.totalorder %s38, 1
      %p271 = por %p269, %p270
      %p273 = scmp.ne.s32.totalorder %s258, %s272
      %p274 = scmp.eq.s32.totalorder %s38, 0
      %p275 = por %p273, %p274
      %s277 = sadd.s32 %s276, 1
      %p280 = scmp.eq.s32.totalorder %s32, 1
      %p281 = scmp.ne.s32.totalorder %s276, %s278
      %p282 = scmp.eq.s32.totalorder %s32, 0
      %p283 = por %p281, %p282
      %p284 = scmp.ne.s32.totalorder %s276, %s278
      %p285 = scmp.eq.s32.totalorder %s37, 1
      %p286 = por %p284, %p285
      %p287 = scmp.ne.s32.totalorder %s278, %s279
      %p288 = scmp.eq.s32.totalorder %s37, 0
      %p289 = por %p287, %p288
      %p290 = scmp.ne.s32.totalorder %s278, %s279
      %p291 = scmp.eq.s32.totalorder %s38, 1
      %p292 = por %p290, %p291
      %p294 = scmp.ne.s32.totalorder %s279, %s293
      %p295 = scmp.eq.s32.totalorder %s38, 0
      %p296 = por %p294, %p295
      %s298 = sadd.s32 %s297, 1
      %p301 = scmp.eq.s32.totalorder %s32, 1
      %p302 = scmp.ne.s32.totalorder %s297, %s299
      %p303 = scmp.eq.s32.totalorder %s32, 0
      %p304 = por %p302, %p303
      %p305 = scmp.ne.s32.totalorder %s297, %s299
      %p306 = scmp.eq.s32.totalorder %s37, 1
      %p307 = por %p305, %p306
      %p308 = scmp.ne.s32.totalorder %s299, %s300
      %p309 = scmp.eq.s32.totalorder %s37, 0
      %p310 = por %p308, %p309
      %p311 = scmp.ne.s32.totalorder %s299, %s300
      %p312 = scmp.eq.s32.totalorder %s38, 1
      %p313 = por %p311, %p312
      %p315 = scmp.ne.s32.totalorder %s300, %s314
      %p316 = scmp.eq.s32.totalorder %s38, 0
      %p317 = por %p315, %p316
      %s318 = ssub.s32 %s32, %s39
      %p319 = scmp.eq.s32.totalorder %s318, 0
      %s321 = sadd.s32 %s320, 1
      %s322 = scalar_select %p319, %s320, %s321
      %p325 = pneg %p319
      %p326 = scmp.eq.s32.totalorder %s32, 1
      %p327 = por %p325, %p326
      %p328 = scmp.ne.s32.totalorder %s320, %s323
      %p329 = scmp.eq.s32.totalorder %s32, 0
      %p330 = por %p328, %p329
      %p331 = scmp.ne.s32.totalorder %s320, %s323
      %p332 = scmp.eq.s32.totalorder %s37, 1
      %p333 = por %p331, %p332
      %p334 = scmp.ne.s32.totalorder %s323, %s324
      %p335 = scmp.eq.s32.totalorder %s37, 0
      %p336 = por %p334, %p335
      %p337 = scmp.ne.s32.totalorder %s323, %s324
      %p338 = scmp.eq.s32.totalorder %s38, 1
      %p339 = por %p337, %p338
      %p341 = scmp.ne.s32.totalorder %s324, %s340
      %p342 = scmp.eq.s32.totalorder %s38, 0
      %p343 = por %p341, %p342
      %s344 = ssub.s32 %s32, %s39
      %p345 = scmp.eq.s32.totalorder %s344, 0
      %s347 = sadd.s32 %s346, 1
      %s348 = scalar_select %p345, %s346, %s347
      %p351 = pneg %p345
      %p352 = scmp.eq.s32.totalorder %s32, 1
      %p353 = por %p351, %p352
      %p354 = scmp.ne.s32.totalorder %s346, %s349
      %p355 = scmp.eq.s32.totalorder %s32, 0
      %p356 = por %p354, %p355
      %p357 = scmp.ne.s32.totalorder %s346, %s349
      %p358 = scmp.eq.s32.totalorder %s37, 1
      %p359 = por %p357, %p358
      %p360 = scmp.ne.s32.totalorder %s349, %s350
      %p361 = scmp.eq.s32.totalorder %s37, 0
      %p362 = por %p360, %p361
      %p363 = scmp.ne.s32.totalorder %s349, %s350
      %p364 = scmp.eq.s32.totalorder %s38, 1
      %p365 = por %p363, %p364
      %p367 = scmp.ne.s32.totalorder %s350, %s366
      %p368 = scmp.eq.s32.totalorder %s38, 0
      %p369 = por %p367, %p368
      %p370 = scmp.le.s32.totalorder 1, %s32
      %p371 = scmp.lt.s32.totalorder %s32, 3
      %p372 = pnand %p370, %p371
      %p373 = pneg %p372
      // Predicated region
      $region9: #{tpu_custom_call.1} parent=5 // pred_check
        _
      $region10: #{tpu_custom_call.1} parent=5 // pred_check_branch
        %375 = sbr.rel (%p372) target = $region12
      $region11: #{tpu_custom_call.1} parent=5 // pred_region
        %s376 = ssub.s32 %s32, 1
        // Predicated region
        $region13: #{tpu_custom_call.1} parent=11 // pred_check
          %p377 = pneg %p79
        $region14: #{tpu_custom_call.1} parent=11 // pred_check_branch
          %379 = sbr.rel (%p377) target = $region16
        $region15: #{tpu_custom_call.1} parent=11 // pred_region
          _
        $region16: #{tpu_custom_call.1} parent=11 // pred_fallthru
          _
        // Predicated region
        $region17: #{tpu_custom_call.1} parent=11 // pred_check
          %p380 = pneg %p100
        $region18: #{tpu_custom_call.1} parent=11 // pred_check_branch
          %382 = sbr.rel (%p380) target = $region20
        $region19: #{tpu_custom_call.1} parent=11 // pred_region
          _
        $region20: #{tpu_custom_call.1} parent=11 // pred_fallthru
          _
        // Predicated region
        $region21: #{tpu_custom_call.1} parent=11 // pred_check
          %p383 = pneg %p121
        $region22: #{tpu_custom_call.1} parent=11 // pred_check_branch
          %385 = sbr.rel (%p383) target = $region24
        $region23: #{tpu_custom_call.1} parent=11 // pred_region
          _
        $region24: #{tpu_custom_call.1} parent=11 // pred_fallthru
          _
        // Predicated region
        $region25: #{tpu_custom_call.1} parent=11 // pred_check
          %p386 = pneg %p142
        $region26: #{tpu_custom_call.1} parent=11 // pred_check_branch
          %388 = sbr.rel (%p386) target = $region28
        $region27: #{tpu_custom_call.1} parent=11 // pred_region
          _
        $region28: #{tpu_custom_call.1} parent=11 // pred_fallthru
          _
        // Predicated region
        $region29: #{tpu_custom_call.1} parent=11 // pred_check
          %p389 = pneg %p163
        $region30: #{tpu_custom_call.1} parent=11 // pred_check_branch
          %391 = sbr.rel (%p389) target = $region32
        $region31: #{tpu_custom_call.1} parent=11 // pred_region
          %s393 = ssub.s32 16, 16
          %394 = vsyncadd [#allocation6], %s393
          %s396 = sshll.u32 [#allocation5], 4
          %s397 = int_to_ptr.vmem [resolvable:$true] %s396
          %399 = dma.hbm_to_vmem [thread:$0]  %s5, 16, %s397, [#allocation6]
        $region32: #{tpu_custom_call.1} parent=11 // pred_fallthru
          _
        // Predicated region
        $region33: #{tpu_custom_call.1} parent=11 // pred_check
          %p400 = pneg %p184
        $region34: #{tpu_custom_call.1} parent=11 // pred_check_branch
          %402 = sbr.rel (%p400) target = $region36
        $region35: #{tpu_custom_call.1} parent=11 // pred_region
          %s404 = ssub.s32 16, 16
          %405 = vsyncadd [#allocation6], %s404
          %s407 = sshll.u32 [#allocation7], 4
          %s408 = int_to_ptr.vmem [resolvable:$true] %s407
          %410 = dma.hbm_to_vmem [thread:$0]  %s6, 16, %s408, [#allocation6]
        $region36: #{tpu_custom_call.1} parent=11 // pred_fallthru
          _
        // Predicated region
        $region37: #{tpu_custom_call.1} parent=11 // pred_check
          %p411 = pneg %p205
        $region38: #{tpu_custom_call.1} parent=11 // pred_check_branch
          %413 = sbr.rel (%p411) target = $region40
        $region39: #{tpu_custom_call.1} parent=11 // pred_region
          _
        $region40: #{tpu_custom_call.1} parent=11 // pred_fallthru
          _
        // Predicated region
        $region41: #{tpu_custom_call.1} parent=11 // pred_check
          %p414 = pneg %p226
        $region42: #{tpu_custom_call.1} parent=11 // pred_check_branch
          %416 = sbr.rel (%p414) target = $region44
        $region43: #{tpu_custom_call.1} parent=11 // pred_region
          %s418 = ssub.s32 16, 16
          %419 = vsyncadd [#allocation9], %s418
          %s421 = sshll.u32 [#allocation8], 4
          %s422 = int_to_ptr.vmem [resolvable:$true] %s421
          %424 = dma.hbm_to_vmem [thread:$0]  %s8, 16, %s422, [#allocation9]
        $region44: #{tpu_custom_call.1} parent=11 // pred_fallthru
          _
        // Predicated region
        $region45: #{tpu_custom_call.1} parent=11 // pred_check
          %p425 = pneg %p247
        $region46: #{tpu_custom_call.1} parent=11 // pred_check_branch
          %427 = sbr.rel (%p425) target = $region48
        $region47: #{tpu_custom_call.1} parent=11 // pred_region
          _
        $region48: #{tpu_custom_call.1} parent=11 // pred_fallthru
          _
        // Predicated region
        $region49: #{tpu_custom_call.1} parent=11 // pred_check
          %p428 = pneg %p268
        $region50: #{tpu_custom_call.1} parent=11 // pred_check_branch
          %430 = sbr.rel (%p428) target = $region52
        $region51: #{tpu_custom_call.1} parent=11 // pred_region
          _
        $region52: #{tpu_custom_call.1} parent=11 // pred_fallthru
          _
        // Predicated region
        $region53: #{tpu_custom_call.1} parent=11 // pred_check
          %p431 = pneg %p289
        $region54: #{tpu_custom_call.1} parent=11 // pred_check_branch
          %433 = sbr.rel (%p431) target = $region56
        $region55: #{tpu_custom_call.1} parent=11 // pred_region
          _
        $region56: #{tpu_custom_call.1} parent=11 // pred_fallthru
          _
        // Predicated region
        $region57: #{tpu_custom_call.1} parent=11 // pred_check
          %p434 = pneg %p310
        $region58: #{tpu_custom_call.1} parent=11 // pred_check_branch
          %436 = sbr.rel (%p434) target = $region60
        $region59: #{tpu_custom_call.1} parent=11 // pred_region
          _
        $region60: #{tpu_custom_call.1} parent=11 // pred_fallthru
          _
      $region12: #{tpu_custom_call.1} parent=5 // pred_fallthru
        _
      %p437 = scmp.lt.s32.totalorder %s32, 2
      // Predicated region
      $region61: #{tpu_custom_call.1} parent=5 // pred_check
        %p438 = pneg %p437
      $region62: #{tpu_custom_call.1} parent=5 // pred_check_branch
        %440 = sbr.rel (%p438) target = $region64
      $region63: #{tpu_custom_call.1} parent=5 // pred_region
        // Predicated region
        $region65: #{tpu_custom_call.1} parent=63 // pred_check
          %p441 = pneg %p52
        $region66: #{tpu_custom_call.1} parent=63 // pred_check_branch
          %443 = sbr.rel (%p441) target = $region68
        $region67: #{tpu_custom_call.1} parent=63 // pred_region
          %s444 = sand.u32 %s42, 1
          %s445 = scalar_lea.sflag [#allocation3], %s444
          %s446 = sand.u32 %s42, 1
          %s447 = smul.addr %s446, 8
          %s448 = scalar_lea.vmem [#allocation2], %s447
          %s450 = ssub.s32 128, 128
          %451 = vsyncadd %s445, %s450
          %s452 = smul.addr %s32, 128
          %s453 = scalar_lea.hbm %s0, %s452
          %s455 = sshll.u32 %s448, 4
          %s456 = int_to_ptr.vmem [resolvable:$true] %s455
          %458 = dma.hbm_to_vmem [thread:$0]  %s453, 128, %s456, %s445
        $region68: #{tpu_custom_call.1} parent=63 // pred_fallthru
          _
      $region64: #{tpu_custom_call.1} parent=5 // pred_fallthru
        _
      %p459 = scmp.le.s32.totalorder 1, %s32
      %p460 = scmp.lt.s32.totalorder %s32, 3
      %p461 = pnand %p459, %p460
      %p462 = pneg %p461
      // Predicated region
      $region69: #{tpu_custom_call.1} parent=5 // pred_check
        _
      $region70: #{tpu_custom_call.1} parent=5 // pred_check_branch
        %464 = sbr.rel (%p461) target = $region72
      $region71: #{tpu_custom_call.1} parent=5 // pred_region
        %s465 = ssub.s32 %s32, 1
        %s466 = sand.u32 %s45, 1
        %s467 = scalar_lea.sflag [#allocation3], %s466
        %s468 = sand.u32 %s45, 1
        %s469 = smul.addr %s468, 8
        %s470 = scalar_lea.vmem [#allocation2], %s469
        // Predicated region
        $region73: #{tpu_custom_call.1} parent=71 // pred_check
          %p471 = pneg %p58
        $region74: #{tpu_custom_call.1} parent=71 // pred_check_branch
          %473 = sbr.rel (%p471) target = $region76
        $region75: #{tpu_custom_call.1} parent=71 // pred_region
          %474 = dma.done %s467, 128
        $region76: #{tpu_custom_call.1} parent=71 // pred_fallthru
          _
        // Predicated region
        $region77: #{tpu_custom_call.1} parent=71 // pred_check
          %p475 = pneg %p163
        $region78: #{tpu_custom_call.1} parent=71 // pred_check_branch
          %477 = sbr.rel (%p475) target = $region80
        $region79: #{tpu_custom_call.1} parent=71 // pred_region
          %478 = dma.done [#allocation6], 16
        $region80: #{tpu_custom_call.1} parent=71 // pred_fallthru
          _
        // Predicated region
        $region81: #{tpu_custom_call.1} parent=71 // pred_check
          %p479 = pneg %p184
        $region82: #{tpu_custom_call.1} parent=71 // pred_check_branch
          %481 = sbr.rel (%p479) target = $region84
        $region83: #{tpu_custom_call.1} parent=71 // pred_region
          %482 = dma.done [#allocation6], 16
        $region84: #{tpu_custom_call.1} parent=71 // pred_fallthru
          _
        // Predicated region
        $region85: #{tpu_custom_call.1} parent=71 // pred_check
          %p483 = pneg %p226
        $region86: #{tpu_custom_call.1} parent=71 // pred_check_branch
          %485 = sbr.rel (%p483) target = $region88
        $region87: #{tpu_custom_call.1} parent=71 // pred_region
          %486 = dma.done [#allocation9], 16
        $region88: #{tpu_custom_call.1} parent=71 // pred_fallthru
          _
        %s487 = sand.u32 %s45, 1
        %s488 = scalar_lea.sflag [#allocation3], %s487
        %s489 = sand.u32 %s45, 1
        %s490 = smul.addr %s489, 8
        %s491 = scalar_lea.vmem [#allocation2], %s490
        %p492 = pneg %p58
        %p493 = pneg %p55
        %p494 = pneg %p79
        %p495 = pneg %p76
        %p496 = pneg %p100
        %p497 = pneg %p97
        %p498 = pneg %p121
        %p499 = pneg %p118
        %p500 = pneg %p142
        %p501 = pneg %p139
        %p502 = pneg %p163
        %p503 = pneg %p160
        %p504 = pneg %p184
        %p505 = pneg %p181
        %p506 = pneg %p205
        %p507 = pneg %p202
        %p508 = pneg %p226
        %p509 = pneg %p223
        %p510 = pneg %p247
        %p511 = pneg %p244
        %p512 = pneg %p268
        %p513 = pneg %p265
        %p514 = pneg %p289
        %p515 = pneg %p286
        %p516 = pneg %p310
        %p517 = pneg %p307
        %p518 = pneg %p336
        %p519 = pneg %p333
        %s520 = sand.u32 %s323, 1
        %s521 = scalar_lea.sflag [#allocation4], %s520
        %s522 = sand.u32 %s323, 1
        %s523 = smul.addr %s522, 8
        %s524 = scalar_lea.vmem [#allocation10], %s523
        %p525 = pneg %p362
        %p526 = pneg %p359
        %s527 = sand.u32 %s349, 1
        %s528 = scalar_lea.sflag [#allocation12], %s527
        %s529 = sand.u32 %s349, 1
        %s530 = smul.addr %s529, 8
        %s531 = scalar_lea.vmem [#allocation11], %s530
        %v532 = vld [vmem:[%s470] sm:$0xff]
        %v533 = vld [vmem:[%s1] sm:$0xff]
        %v534 = vld [vmem:[%s1 + $0x8] sm:$0xff]
        %v535 = vld [vmem:[%s1 + $0x10] sm:$0xff]
        %v536 = vld [vmem:[%s1 + $0x18] sm:$0xff]
        %v537 = vld [vmem:[%s2] sm:$0x1]
        %v539 = vlaneseq
        %v540 = vshrl.u32 %v539, 7
        %v541 = vsub.s32 0, %v540
        %v542 = vrot.slane %v537, %v541
        %vm544 = vcmask 261120
        %v546 = vsel %vm544, %v532, 0
        %548 = vmatprep.subr.mxu0 0.0
        %549 = vmatpush1.msra.mxu0 %v533
        %550 = vmatprep.subr.mxu0 0.0
        %551 = vmatpush1.msra.mxu0 %v534
        %552 = vmatprep.subr.mxu0 0.0
        %553 = vmatpush1.msra.mxu0 %v535
        %554 = vmatprep.subr.mxu0 0.0
        %555 = vmatpush1.msra.mxu0 %v536
        %556 = vmatprep.subr.mxu0 0.0
        %557 = vmatpush1.msra.mxu0 0.0
        %558 = vmatprep.subr.mxu0 0.0
        %559 = vmatpush1.msra.mxu0 0.0
        %560 = vmatprep.subr.mxu0 0.0
        %561 = vmatpush1.msra.mxu0 0.0
        %562 = vmatprep.subr.mxu0 0.0
        %563 = vmatpush1.msra.mxu0 0.0
        %564 = vmatprep.subr.mxu0 0.0
        %565 = vmatpush1.msra.mxu0 0.0
        %566 = vmatprep.subr.mxu0 0.0
        %567 = vmatpush1.msra.mxu0 0.0
        %568 = vmatprep.subr.mxu0 0.0
        %569 = vmatpush1.msra.mxu0 0.0
        %570 = vmatprep.subr.mxu0 0.0
        %571 = vmatpush1.msra.mxu0 0.0
        %572 = vmatprep.subr.mxu0 0.0
        %573 = vmatpush1.msra.mxu0 0.0
        %574 = vmatprep.subr.mxu0 0.0
        %575 = vmatpush1.msra.mxu0 0.0
        %576 = vmatprep.subr.mxu0 0.0
        %577 = vmatpush1.msra.mxu0 0.0
        %578 = vmatprep.subr.mxu0 0.0
        %579 = vmatpush1.msra.mxu0 0.0
        %580 = vmatprep.subr.mxu0 0.0
        %581 = vmatpush1.msra.mxu0 0.0
        %582 = vmatprep.subr.mxu0 0.0
        %583 = vmatpush1.msra.mxu0 0.0
        %584 = vmatprep.subr.mxu0 0.0
        %585 = vmatpush1.msra.mxu0 0.0
        %586 = vmatprep.subr.mxu0 0.0
        %587 = vmatpush1.msra.mxu0 0.0
        %588 = vmatprep.subr.mxu0 0.0
        %589 = vmatpush1.msra.mxu0 0.0
        %590 = vmatprep.subr.mxu0 0.0
        %591 = vmatpush1.msra.mxu0 0.0
        %592 = vmatprep.subr.mxu0 0.0
        %593 = vmatpush1.msra.mxu0 0.0
        %594 = vmatprep.subr.mxu0 0.0
        %595 = vmatpush1.msra.mxu0 0.0
        %596 = vmatprep.subr.mxu0 0.0
        %597 = vmatpush1.msra.mxu0 0.0
        %598 = vmatprep.subr.mxu0 0.0
        %599 = vmatpush1.msra.mxu0 0.0
        %600 = vmatprep.subr.mxu0 0.0
        %601 = vmatpush1.msra.mxu0 0.0
        %602 = vmatprep.subr.mxu0 0.0
        %603 = vmatpush1.msra.mxu0 0.0
        %604 = vmatprep.subr.mxu0 0.0
        %605 = vmatpush1.msra.mxu0 0.0
        %606 = vmatprep.subr.mxu0 0.0
        %607 = vmatpush1.msra.mxu0 0.0
        %608 = vmatprep.subr.mxu0 0.0
        %609 = vmatpush1.msra.mxu0 0.0
        %610 = vmatprep.subr.mxu0 0.0
        %611 = vmatpush1.msra.mxu0 0.0
        %612 = vmatprep.mubr.f32.mxu0 0.0
        %613 = vmatmul.mubr.f32.gmra.mrb[0].mxu0 %v546
        %v614 = vpop.f32.mrb[0].mxu0
        %v615 = vadd.f32 %v542, %v614
        %v616 = vpop.f32.mrb[0].mxu0
        %617 = vdwg.mxu0
        %619 = vrot.lane.b32.xlu0 %v615, 96
        %v620 = vpop.permute.xlu0 %619
        %vm621 = vcmask 64512
        %v622 = vsel %vm621, %v615, 0
        %v624 = vsel %vm621, %v620, 0
        %626 = vmatprep.subr.mxu0 0.0
        %627 = vmatpush1.xpose.msra.mxu0 %v624
        %628 = vmatprep.subr.mxu0 0.0
        %629 = vmatpush1.xpose.msra.mxu0 0.0
        %630 = vmatprep.subr.mxu0 0.0
        %631 = vmatpush1.xpose.msra.mxu0 0.0
        %632 = vmatprep.subr.mxu0 0.0
        %633 = vmatpush1.xpose.msra.mxu0 0.0
        %634 = vmatprep.subr.mxu0 0.0
        %635 = vmatpush1.xpose.msra.mxu0 0.0
        %636 = vmatprep.subr.mxu0 0.0
        %637 = vmatpush1.xpose.msra.mxu0 0.0
        %638 = vmatprep.subr.mxu0 0.0
        %639 = vmatpush1.xpose.msra.mxu0 0.0
        %640 = vmatprep.subr.mxu0 0.0
        %641 = vmatpush1.xpose.msra.mxu0 0.0
        %642 = vmatprep.subr.mxu0 0.0
        %643 = vmatpush1.xpose.msra.mxu0 0.0
        %644 = vmatprep.subr.mxu0 0.0
        %645 = vmatpush1.xpose.msra.mxu0 0.0
        %646 = vmatprep.subr.mxu0 0.0
        %647 = vmatpush1.xpose.msra.mxu0 0.0
        %648 = vmatprep.subr.mxu0 0.0
        %649 = vmatpush1.xpose.msra.mxu0 0.0
        %650 = vmatprep.subr.mxu0 0.0
        %651 = vmatpush1.xpose.msra.mxu0 0.0
        %652 = vmatprep.subr.mxu0 0.0
        %653 = vmatpush1.xpose.msra.mxu0 0.0
        %654 = vmatprep.subr.mxu0 0.0
        %655 = vmatpush1.xpose.msra.mxu0 0.0
        %656 = vmatprep.subr.mxu0 0.0
        %657 = vmatpush1.xpose.msra.mxu0 0.0
        %658 = vmatprep.subr.mxu0 0.0
        %659 = vmatpush1.xpose.msra.mxu0 0.0
        %660 = vmatprep.subr.mxu0 0.0
        %661 = vmatpush1.xpose.msra.mxu0 0.0
        %662 = vmatprep.subr.mxu0 0.0
        %663 = vmatpush1.xpose.msra.mxu0 0.0
        %664 = vmatprep.subr.mxu0 0.0
        %665 = vmatpush1.xpose.msra.mxu0 0.0
        %666 = vmatprep.subr.mxu0 0.0
        %667 = vmatpush1.xpose.msra.mxu0 0.0
        %668 = vmatprep.subr.mxu0 0.0
        %669 = vmatpush1.xpose.msra.mxu0 0.0
        %670 = vmatprep.subr.mxu0 0.0
        %671 = vmatpush1.xpose.msra.mxu0 0.0
        %672 = vmatprep.subr.mxu0 0.0
        %673 = vmatpush1.xpose.msra.mxu0 0.0
        %674 = vmatprep.subr.mxu0 0.0
        %675 = vmatpush1.xpose.msra.mxu0 0.0
        %676 = vmatprep.subr.mxu0 0.0
        %677 = vmatpush1.xpose.msra.mxu0 0.0
        %678 = vmatprep.subr.mxu0 0.0
        %679 = vmatpush1.xpose.msra.mxu0 0.0
        %680 = vmatprep.subr.mxu0 0.0
        %681 = vmatpush1.xpose.msra.mxu0 0.0
        %682 = vmatprep.subr.mxu0 0.0
        %683 = vmatpush1.xpose.msra.mxu0 0.0
        %684 = vmatprep.subr.mxu0 0.0
        %685 = vmatpush1.xpose.msra.mxu0 0.0
        %686 = vmatprep.subr.mxu0 0.0
        %687 = vmatpush1.xpose.msra.mxu0 0.0
        %688 = vmatprep.subr.mxu0 0.0
        %689 = vmatpush1.xpose.msra.mxu0 0.0
        %690 = vmatprep.mubr.f32.mxu0 0.0
        %691 = vmatmul.mubr.f32.gmra.mrb[0].mxu0 %v622
        %v692 = vpop.f32.mrb[0].mxu0
        %v693 = vadd.f32 0.0, %v692
        %v694 = vpop.f32.mrb[0].mxu0
        %695 = vdwg.mxu0
        %v696 = vsel %vm621, %v693, -inf
        %697 = vmax.xlane.f32.xlu0 %v696
        %v698 = vpop.xlane.xlu0 %697
        %v699 = vsub.f32 %v693, %v698
        %v700 = vmul.f32 %v699, 1.442695
        %v701 = vpow.pop %v700
        %v702 = vsel %vm621, %v701, 0.0
        %703 = vadd.xlane.f32.xlu0 %v702
        %v704 = vpop.xlane.xlu0 %703
        %v705 = vrcp.pop %v704
        %v706 = vmul.f32 %v701, %v705
        %v707 = vmul.f32 %v706, 0.25
        %708 = vst.msk [vmem:[%s531] sm:$0xff] %vm621, %v707
        %709 = vrot.lane.b32.xlu0 %v615, 64
        %v710 = vpop.permute.xlu0 %709
        %v713 = vsel %vm621, %v706, 0
        %715 = vmatprep.subr.mxu0 0.0
        %716 = vmatpush1.msra.mxu0 %v710
        %717 = vmatprep.subr.mxu0 0.0
        %718 = vmatpush1.msra.mxu0 0.0
        %719 = vmatprep.subr.mxu0 0.0
        %720 = vmatpush1.msra.mxu0 0.0
        %721 = vmatprep.subr.mxu0 0.0
        %722 = vmatpush1.msra.mxu0 0.0
        %723 = vmatprep.subr.mxu0 0.0
        %724 = vmatpush1.msra.mxu0 0.0
        %725 = vmatprep.subr.mxu0 0.0
        %726 = vmatpush1.msra.mxu0 0.0
        %727 = vmatprep.subr.mxu0 0.0
        %728 = vmatpush1.msra.mxu0 0.0
        %729 = vmatprep.subr.mxu0 0.0
        %730 = vmatpush1.msra.mxu0 0.0
        %731 = vmatprep.subr.mxu0 0.0
        %732 = vmatpush1.msra.mxu0 0.0
        %733 = vmatprep.subr.mxu0 0.0
        %734 = vmatpush1.msra.mxu0 0.0
        %735 = vmatprep.subr.mxu0 0.0
        %736 = vmatpush1.msra.mxu0 0.0
        %737 = vmatprep.subr.mxu0 0.0
        %738 = vmatpush1.msra.mxu0 0.0
        %739 = vmatprep.subr.mxu0 0.0
        %740 = vmatpush1.msra.mxu0 0.0
        %741 = vmatprep.subr.mxu0 0.0
        %742 = vmatpush1.msra.mxu0 0.0
        %743 = vmatprep.subr.mxu0 0.0
        %744 = vmatpush1.msra.mxu0 0.0
        %745 = vmatprep.subr.mxu0 0.0
        %746 = vmatpush1.msra.mxu0 0.0
        %747 = vmatprep.subr.mxu0 0.0
        %748 = vmatpush1.msra.mxu0 0.0
        %749 = vmatprep.subr.mxu0 0.0
        %750 = vmatpush1.msra.mxu0 0.0
        %751 = vmatprep.subr.mxu0 0.0
        %752 = vmatpush1.msra.mxu0 0.0
        %753 = vmatprep.subr.mxu0 0.0
        %754 = vmatpush1.msra.mxu0 0.0
        %755 = vmatprep.subr.mxu0 0.0
        %756 = vmatpush1.msra.mxu0 0.0
        %757 = vmatprep.subr.mxu0 0.0
        %758 = vmatpush1.msra.mxu0 0.0
        %759 = vmatprep.subr.mxu0 0.0
        %760 = vmatpush1.msra.mxu0 0.0
        %761 = vmatprep.subr.mxu0 0.0
        %762 = vmatpush1.msra.mxu0 0.0
        %763 = vmatprep.subr.mxu0 0.0
        %764 = vmatpush1.msra.mxu0 0.0
        %765 = vmatprep.subr.mxu0 0.0
        %766 = vmatpush1.msra.mxu0 0.0
        %767 = vmatprep.subr.mxu0 0.0
        %768 = vmatpush1.msra.mxu0 0.0
        %769 = vmatprep.subr.mxu0 0.0
        %770 = vmatpush1.msra.mxu0 0.0
        %771 = vmatprep.subr.mxu0 0.0
        %772 = vmatpush1.msra.mxu0 0.0
        %773 = vmatprep.subr.mxu0 0.0
        %774 = vmatpush1.msra.mxu0 0.0
        %775 = vmatprep.subr.mxu0 0.0
        %776 = vmatpush1.msra.mxu0 0.0
        %777 = vmatprep.subr.mxu0 0.0
        %778 = vmatpush1.msra.mxu0 0.0
        %779 = vmatprep.mubr.f32.mxu0 0.0
        %780 = vmatmul.mubr.f32.gmra.mrb[0].mxu0 %v713
        %v781 = vpop.f32.mrb[0].mxu0
        %v782 = vadd.f32 0.0, %v781
        %v783 = vpop.f32.mrb[0].mxu0
        %784 = vdwg.mxu0
        %785 = vrot.lane.b32.xlu0 %v615, 120
        %v786 = vpop.permute.xlu0 %785
        %787 = vrot.lane.b32.xlu0 %v615, 88
        %v788 = vpop.permute.xlu0 %787
        %v789 = vsel %vm621, %v786, 0
        %v791 = vsel %vm621, %v788, 0
        %793 = vmatprep.subr.mxu0 0.0
        %794 = vmatpush1.xpose.msra.mxu0 %v791
        %795 = vmatprep.subr.mxu0 0.0
        %796 = vmatpush1.xpose.msra.mxu0 0.0
        %797 = vmatprep.subr.mxu0 0.0
        %798 = vmatpush1.xpose.msra.mxu0 0.0
        %799 = vmatprep.subr.mxu0 0.0
        %800 = vmatpush1.xpose.msra.mxu0 0.0
        %801 = vmatprep.subr.mxu0 0.0
        %802 = vmatpush1.xpose.msra.mxu0 0.0
        %803 = vmatprep.subr.mxu0 0.0
        %804 = vmatpush1.xpose.msra.mxu0 0.0
        %805 = vmatprep.subr.mxu0 0.0
        %806 = vmatpush1.xpose.msra.mxu0 0.0
        %807 = vmatprep.subr.mxu0 0.0
        %808 = vmatpush1.xpose.msra.mxu0 0.0
        %809 = vmatprep.subr.mxu0 0.0
        %810 = vmatpush1.xpose.msra.mxu0 0.0
        %811 = vmatprep.subr.mxu0 0.0
        %812 = vmatpush1.xpose.msra.mxu0 0.0
        %813 = vmatprep.subr.mxu0 0.0
        %814 = vmatpush1.xpose.msra.mxu0 0.0
        %815 = vmatprep.subr.mxu0 0.0
        %816 = vmatpush1.xpose.msra.mxu0 0.0
        %817 = vmatprep.subr.mxu0 0.0
        %818 = vmatpush1.xpose.msra.mxu0 0.0
        %819 = vmatprep.subr.mxu0 0.0
        %820 = vmatpush1.xpose.msra.mxu0 0.0
        %821 = vmatprep.subr.mxu0 0.0
        %822 = vmatpush1.xpose.msra.mxu0 0.0
        %823 = vmatprep.subr.mxu0 0.0
        %824 = vmatpush1.xpose.msra.mxu0 0.0
        %825 = vmatprep.subr.mxu0 0.0
        %826 = vmatpush1.xpose.msra.mxu0 0.0
        %827 = vmatprep.subr.mxu0 0.0
        %828 = vmatpush1.xpose.msra.mxu0 0.0
        %829 = vmatprep.subr.mxu0 0.0
        %830 = vmatpush1.xpose.msra.mxu0 0.0
        %831 = vmatprep.subr.mxu0 0.0
        %832 = vmatpush1.xpose.msra.mxu0 0.0
        %833 = vmatprep.subr.mxu0 0.0
        %834 = vmatpush1.xpose.msra.mxu0 0.0
        %835 = vmatprep.subr.mxu0 0.0
        %836 = vmatpush1.xpose.msra.mxu0 0.0
        %837 = vmatprep.subr.mxu0 0.0
        %838 = vmatpush1.xpose.msra.mxu0 0.0
        %839 = vmatprep.subr.mxu0 0.0
        %840 = vmatpush1.xpose.msra.mxu0 0.0
        %841 = vmatprep.subr.mxu0 0.0
        %842 = vmatpush1.xpose.msra.mxu0 0.0
        %843 = vmatprep.subr.mxu0 0.0
        %844 = vmatpush1.xpose.msra.mxu0 0.0
        %845 = vmatprep.subr.mxu0 0.0
        %846 = vmatpush1.xpose.msra.mxu0 0.0
        %847 = vmatprep.subr.mxu0 0.0
        %848 = vmatpush1.xpose.msra.mxu0 0.0
        %849 = vmatprep.subr.mxu0 0.0
        %850 = vmatpush1.xpose.msra.mxu0 0.0
        %851 = vmatprep.subr.mxu0 0.0
        %852 = vmatpush1.xpose.msra.mxu0 0.0
        %853 = vmatprep.subr.mxu0 0.0
        %854 = vmatpush1.xpose.msra.mxu0 0.0
        %855 = vmatprep.subr.mxu0 0.0
        %856 = vmatpush1.xpose.msra.mxu0 0.0
        %857 = vmatprep.mubr.f32.mxu0 0.0
        %858 = vmatmul.mubr.f32.gmra.mrb[0].mxu0 %v789
        %v859 = vpop.f32.mrb[0].mxu0
        %v860 = vadd.f32 0.0, %v859
        %v861 = vpop.f32.mrb[0].mxu0
        %862 = vdwg.mxu0
        %v863 = vsel %vm621, %v860, -inf
        %864 = vmax.xlane.f32.xlu0 %v863
        %v865 = vpop.xlane.xlu0 %864
        %v866 = vsub.f32 %v860, %v865
        %v867 = vmul.f32 %v866, 1.442695
        %v868 = vpow.pop %v867
        %v869 = vsel %vm621, %v868, 0.0
        %870 = vadd.xlane.f32.xlu0 %v869
        %v871 = vpop.xlane.xlu0 %870
        %v872 = vrcp.pop %v871
        %v873 = vmul.f32 %v868, %v872
        %v874 = vmul.f32 %v873, 0.25
        %v875 = vld [vmem:[%s531] sm:$0xff]
        %v876 = vadd.f32 %v875, %v874
        %877 = vst.msk [vmem:[%s531] sm:$0xff] %vm621, %v876
        %878 = vrot.lane.b32.xlu0 %v615, 56
        %v879 = vpop.permute.xlu0 %878
        %v882 = vsel %vm621, %v873, 0
        %884 = vmatprep.subr.mxu0 0.0
        %885 = vmatpush1.msra.mxu0 %v879
        %886 = vmatprep.subr.mxu0 0.0
        %887 = vmatpush1.msra.mxu0 0.0
        %888 = vmatprep.subr.mxu0 0.0
        %889 = vmatpush1.msra.mxu0 0.0
        %890 = vmatprep.subr.mxu0 0.0
        %891 = vmatpush1.msra.mxu0 0.0
        %892 = vmatprep.subr.mxu0 0.0
        %893 = vmatpush1.msra.mxu0 0.0
        %894 = vmatprep.subr.mxu0 0.0
        %895 = vmatpush1.msra.mxu0 0.0
        %896 = vmatprep.subr.mxu0 0.0
        %897 = vmatpush1.msra.mxu0 0.0
        %898 = vmatprep.subr.mxu0 0.0
        %899 = vmatpush1.msra.mxu0 0.0
        %900 = vmatprep.subr.mxu0 0.0
        %901 = vmatpush1.msra.mxu0 0.0
        %902 = vmatprep.subr.mxu0 0.0
        %903 = vmatpush1.msra.mxu0 0.0
        %904 = vmatprep.subr.mxu0 0.0
        %905 = vmatpush1.msra.mxu0 0.0
        %906 = vmatprep.subr.mxu0 0.0
        %907 = vmatpush1.msra.mxu0 0.0
        %908 = vmatprep.subr.mxu0 0.0
        %909 = vmatpush1.msra.mxu0 0.0
        %910 = vmatprep.subr.mxu0 0.0
        %911 = vmatpush1.msra.mxu0 0.0
        %912 = vmatprep.subr.mxu0 0.0
        %913 = vmatpush1.msra.mxu0 0.0
        %914 = vmatprep.subr.mxu0 0.0
        %915 = vmatpush1.msra.mxu0 0.0
        %916 = vmatprep.subr.mxu0 0.0
        %917 = vmatpush1.msra.mxu0 0.0
        %918 = vmatprep.subr.mxu0 0.0
        %919 = vmatpush1.msra.mxu0 0.0
        %920 = vmatprep.subr.mxu0 0.0
        %921 = vmatpush1.msra.mxu0 0.0
        %922 = vmatprep.subr.mxu0 0.0
        %923 = vmatpush1.msra.mxu0 0.0
        %924 = vmatprep.subr.mxu0 0.0
        %925 = vmatpush1.msra.mxu0 0.0
        %926 = vmatprep.subr.mxu0 0.0
        %927 = vmatpush1.msra.mxu0 0.0
        %928 = vmatprep.subr.mxu0 0.0
        %929 = vmatpush1.msra.mxu0 0.0
        %930 = vmatprep.subr.mxu0 0.0
        %931 = vmatpush1.msra.mxu0 0.0
        %932 = vmatprep.subr.mxu0 0.0
        %933 = vmatpush1.msra.mxu0 0.0
        %934 = vmatprep.subr.mxu0 0.0
        %935 = vmatpush1.msra.mxu0 0.0
        %936 = vmatprep.subr.mxu0 0.0
        %937 = vmatpush1.msra.mxu0 0.0
        %938 = vmatprep.subr.mxu0 0.0
        %939 = vmatpush1.msra.mxu0 0.0
        %940 = vmatprep.subr.mxu0 0.0
        %941 = vmatpush1.msra.mxu0 0.0
        %942 = vmatprep.subr.mxu0 0.0
        %943 = vmatpush1.msra.mxu0 0.0
        %944 = vmatprep.subr.mxu0 0.0
        %945 = vmatpush1.msra.mxu0 0.0
        %946 = vmatprep.subr.mxu0 0.0
        %947 = vmatpush1.msra.mxu0 0.0
        %948 = vmatprep.mubr.f32.mxu0 0.0
        %949 = vmatmul.mubr.f32.gmra.mrb[0].mxu0 %v882
        %v950 = vpop.f32.mrb[0].mxu0
        %v951 = vadd.f32 0.0, %v950
        %v952 = vpop.f32.mrb[0].mxu0
        %953 = vdwg.mxu0
        %954 = vrot.lane.b32.xlu0 %v615, 112
        %v955 = vpop.permute.xlu0 %954
        %956 = vrot.lane.b32.xlu0 %v615, 80
        %v957 = vpop.permute.xlu0 %956
        %v958 = vsel %vm621, %v955, 0
        %v960 = vsel %vm621, %v957, 0
        %962 = vmatprep.subr.mxu0 0.0
        %963 = vmatpush1.xpose.msra.mxu0 %v960
        %964 = vmatprep.subr.mxu0 0.0
        %965 = vmatpush1.xpose.msra.mxu0 0.0
        %966 = vmatprep.subr.mxu0 0.0
        %967 = vmatpush1.xpose.msra.mxu0 0.0
        %968 = vmatprep.subr.mxu0 0.0
        %969 = vmatpush1.xpose.msra.mxu0 0.0
        %970 = vmatprep.subr.mxu0 0.0
        %971 = vmatpush1.xpose.msra.mxu0 0.0
        %972 = vmatprep.subr.mxu0 0.0
        %973 = vmatpush1.xpose.msra.mxu0 0.0
        %974 = vmatprep.subr.mxu0 0.0
        %975 = vmatpush1.xpose.msra.mxu0 0.0
        %976 = vmatprep.subr.mxu0 0.0
        %977 = vmatpush1.xpose.msra.mxu0 0.0
        %978 = vmatprep.subr.mxu0 0.0
        %979 = vmatpush1.xpose.msra.mxu0 0.0
        %980 = vmatprep.subr.mxu0 0.0
        %981 = vmatpush1.xpose.msra.mxu0 0.0
        %982 = vmatprep.subr.mxu0 0.0
        %983 = vmatpush1.xpose.msra.mxu0 0.0
        %984 = vmatprep.subr.mxu0 0.0
        %985 = vmatpush1.xpose.msra.mxu0 0.0
        %986 = vmatprep.subr.mxu0 0.0
        %987 = vmatpush1.xpose.msra.mxu0 0.0
        %988 = vmatprep.subr.mxu0 0.0
        %989 = vmatpush1.xpose.msra.mxu0 0.0
        %990 = vmatprep.subr.mxu0 0.0
        %991 = vmatpush1.xpose.msra.mxu0 0.0
        %992 = vmatprep.subr.mxu0 0.0
        %993 = vmatpush1.xpose.msra.mxu0 0.0
        %994 = vmatprep.subr.mxu0 0.0
        %995 = vmatpush1.xpose.msra.mxu0 0.0
        %996 = vmatprep.subr.mxu0 0.0
        %997 = vmatpush1.xpose.msra.mxu0 0.0
        %998 = vmatprep.subr.mxu0 0.0
        %999 = vmatpush1.xpose.msra.mxu0 0.0
        %1000 = vmatprep.subr.mxu0 0.0
        %1001 = vmatpush1.xpose.msra.mxu0 0.0
        %1002 = vmatprep.subr.mxu0 0.0
        %1003 = vmatpush1.xpose.msra.mxu0 0.0
        %1004 = vmatprep.subr.mxu0 0.0
        %1005 = vmatpush1.xpose.msra.mxu0 0.0
        %1006 = vmatprep.subr.mxu0 0.0
        %1007 = vmatpush1.xpose.msra.mxu0 0.0
        %1008 = vmatprep.subr.mxu0 0.0
        %1009 = vmatpush1.xpose.msra.mxu0 0.0
        %1010 = vmatprep.subr.mxu0 0.0
        %1011 = vmatpush1.xpose.msra.mxu0 0.0
        %1012 = vmatprep.subr.mxu0 0.0
        %1013 = vmatpush1.xpose.msra.mxu0 0.0
        %1014 = vmatprep.subr.mxu0 0.0
        %1015 = vmatpush1.xpose.msra.mxu0 0.0
        %1016 = vmatprep.subr.mxu0 0.0
        %1017 = vmatpush1.xpose.msra.mxu0 0.0
        %1018 = vmatprep.subr.mxu0 0.0
        %1019 = vmatpush1.xpose.msra.mxu0 0.0
        %1020 = vmatprep.subr.mxu0 0.0
        %1021 = vmatpush1.xpose.msra.mxu0 0.0
        %1022 = vmatprep.subr.mxu0 0.0
        %1023 = vmatpush1.xpose.msra.mxu0 0.0
        %1024 = vmatprep.subr.mxu0 0.0
        %1025 = vmatpush1.xpose.msra.mxu0 0.0
        %1026 = vmatprep.mubr.f32.mxu0 0.0
        %1027 = vmatmul.mubr.f32.gmra.mrb[0].mxu0 %v958
        %v1028 = vpop.f32.mrb[0].mxu0
        %v1029 = vadd.f32 0.0, %v1028
        %v1030 = vpop.f32.mrb[0].mxu0
        %1031 = vdwg.mxu0
        %v1032 = vsel %vm621, %v1029, -inf
        %1033 = vmax.xlane.f32.xlu0 %v1032
        %v1034 = vpop.xlane.xlu0 %1033
        %v1035 = vsub.f32 %v1029, %v1034
        %v1036 = vmul.f32 %v1035, 1.442695
        %v1037 = vpow.pop %v1036
        %v1038 = vsel %vm621, %v1037, 0.0
        %1039 = vadd.xlane.f32.xlu0 %v1038
        %v1040 = vpop.xlane.xlu0 %1039
        %v1041 = vrcp.pop %v1040
        %v1042 = vmul.f32 %v1037, %v1041
        %v1043 = vmul.f32 %v1042, 0.25
        %v1044 = vld [vmem:[%s531] sm:$0xff]
        %v1045 = vadd.f32 %v1044, %v1043
        %1046 = vst.msk [vmem:[%s531] sm:$0xff] %vm621, %v1045
        %1047 = vrot.lane.b32.xlu0 %v615, 48
        %v1048 = vpop.permute.xlu0 %1047
        %v1051 = vsel %vm621, %v1042, 0
        %1053 = vmatprep.subr.mxu0 0.0
        %1054 = vmatpush1.msra.mxu0 %v1048
        %1055 = vmatprep.subr.mxu0 0.0
        %1056 = vmatpush1.msra.mxu0 0.0
        %1057 = vmatprep.subr.mxu0 0.0
        %1058 = vmatpush1.msra.mxu0 0.0
        %1059 = vmatprep.subr.mxu0 0.0
        %1060 = vmatpush1.msra.mxu0 0.0
        %1061 = vmatprep.subr.mxu0 0.0
        %1062 = vmatpush1.msra.mxu0 0.0
        %1063 = vmatprep.subr.mxu0 0.0
        %1064 = vmatpush1.msra.mxu0 0.0
        %1065 = vmatprep.subr.mxu0 0.0
        %1066 = vmatpush1.msra.mxu0 0.0
        %1067 = vmatprep.subr.mxu0 0.0
        %1068 = vmatpush1.msra.mxu0 0.0
        %1069 = vmatprep.subr.mxu0 0.0
        %1070 = vmatpush1.msra.mxu0 0.0
        %1071 = vmatprep.subr.mxu0 0.0
        %1072 = vmatpush1.msra.mxu0 0.0
        %1073 = vmatprep.subr.mxu0 0.0
        %1074 = vmatpush1.msra.mxu0 0.0
        %1075 = vmatprep.subr.mxu0 0.0
        %1076 = vmatpush1.msra.mxu0 0.0
        %1077 = vmatprep.subr.mxu0 0.0
        %1078 = vmatpush1.msra.mxu0 0.0
        %1079 = vmatprep.subr.mxu0 0.0
        %1080 = vmatpush1.msra.mxu0 0.0
        %1081 = vmatprep.subr.mxu0 0.0
        %1082 = vmatpush1.msra.mxu0 0.0
        %1083 = vmatprep.subr.mxu0 0.0
        %1084 = vmatpush1.msra.mxu0 0.0
        %1085 = vmatprep.subr.mxu0 0.0
        %1086 = vmatpush1.msra.mxu0 0.0
        %1087 = vmatprep.subr.mxu0 0.0
        %1088 = vmatpush1.msra.mxu0 0.0
        %1089 = vmatprep.subr.mxu0 0.0
        %1090 = vmatpush1.msra.mxu0 0.0
        %1091 = vmatprep.subr.mxu0 0.0
        %1092 = vmatpush1.msra.mxu0 0.0
        %1093 = vmatprep.subr.mxu0 0.0
        %1094 = vmatpush1.msra.mxu0 0.0
        %1095 = vmatprep.subr.mxu0 0.0
        %1096 = vmatpush1.msra.mxu0 0.0
        %1097 = vmatprep.subr.mxu0 0.0
        %1098 = vmatpush1.msra.mxu0 0.0
        %1099 = vmatprep.subr.mxu0 0.0
        %1100 = vmatpush1.msra.mxu0 0.0
        %1101 = vmatprep.subr.mxu0 0.0
        %1102 = vmatpush1.msra.mxu0 0.0
        %1103 = vmatprep.subr.mxu0 0.0
        %1104 = vmatpush1.msra.mxu0 0.0
        %1105 = vmatprep.subr.mxu0 0.0
        %1106 = vmatpush1.msra.mxu0 0.0
        %1107 = vmatprep.subr.mxu0 0.0
        %1108 = vmatpush1.msra.mxu0 0.0
        %1109 = vmatprep.subr.mxu0 0.0
        %1110 = vmatpush1.msra.mxu0 0.0
        %1111 = vmatprep.subr.mxu0 0.0
        %1112 = vmatpush1.msra.mxu0 0.0
        %1113 = vmatprep.subr.mxu0 0.0
        %1114 = vmatpush1.msra.mxu0 0.0
        %1115 = vmatprep.subr.mxu0 0.0
        %1116 = vmatpush1.msra.mxu0 0.0
        %1117 = vmatprep.mubr.f32.mxu0 0.0
        %1118 = vmatmul.mubr.f32.gmra.mrb[0].mxu0 %v1051
        %v1119 = vpop.f32.mrb[0].mxu0
        %v1120 = vadd.f32 0.0, %v1119
        %v1121 = vpop.f32.mrb[0].mxu0
        %1122 = vdwg.mxu0
        %1123 = vrot.lane.b32.xlu0 %v615, 104
        %v1124 = vpop.permute.xlu0 %1123
        %1125 = vrot.lane.b32.xlu0 %v615, 72
        %v1126 = vpop.permute.xlu0 %1125
        %v1127 = vsel %vm621, %v1124, 0
        %v1129 = vsel %vm621, %v1126, 0
        %1131 = vmatprep.subr.mxu0 0.0
        %1132 = vmatpush1.xpose.msra.mxu0 %v1129
        %1133 = vmatprep.subr.mxu0 0.0
        %1134 = vmatpush1.xpose.msra.mxu0 0.0
        %1135 = vmatprep.subr.mxu0 0.0
        %1136 = vmatpush1.xpose.msra.mxu0 0.0
        %1137 = vmatprep.subr.mxu0 0.0
        %1138 = vmatpush1.xpose.msra.mxu0 0.0
        %1139 = vmatprep.subr.mxu0 0.0
        %1140 = vmatpush1.xpose.msra.mxu0 0.0
        %1141 = vmatprep.subr.mxu0 0.0
        %1142 = vmatpush1.xpose.msra.mxu0 0.0
        %1143 = vmatprep.subr.mxu0 0.0
        %1144 = vmatpush1.xpose.msra.mxu0 0.0
        %1145 = vmatprep.subr.mxu0 0.0
        %1146 = vmatpush1.xpose.msra.mxu0 0.0
        %1147 = vmatprep.subr.mxu0 0.0
        %1148 = vmatpush1.xpose.msra.mxu0 0.0
        %1149 = vmatprep.subr.mxu0 0.0
        %1150 = vmatpush1.xpose.msra.mxu0 0.0
        %1151 = vmatprep.subr.mxu0 0.0
        %1152 = vmatpush1.xpose.msra.mxu0 0.0
        %1153 = vmatprep.subr.mxu0 0.0
        %1154 = vmatpush1.xpose.msra.mxu0 0.0
        %1155 = vmatprep.subr.mxu0 0.0
        %1156 = vmatpush1.xpose.msra.mxu0 0.0
        %1157 = vmatprep.subr.mxu0 0.0
        %1158 = vmatpush1.xpose.msra.mxu0 0.0
        %1159 = vmatprep.subr.mxu0 0.0
        %1160 = vmatpush1.xpose.msra.mxu0 0.0
        %1161 = vmatprep.subr.mxu0 0.0
        %1162 = vmatpush1.xpose.msra.mxu0 0.0
        %1163 = vmatprep.subr.mxu0 0.0
        %1164 = vmatpush1.xpose.msra.mxu0 0.0
        %1165 = vmatprep.subr.mxu0 0.0
        %1166 = vmatpush1.xpose.msra.mxu0 0.0
        %1167 = vmatprep.subr.mxu0 0.0
        %1168 = vmatpush1.xpose.msra.mxu0 0.0
        %1169 = vmatprep.subr.mxu0 0.0
        %1170 = vmatpush1.xpose.msra.mxu0 0.0
        %1171 = vmatprep.subr.mxu0 0.0
        %1172 = vmatpush1.xpose.msra.mxu0 0.0
        %1173 = vmatprep.subr.mxu0 0.0
        %1174 = vmatpush1.xpose.msra.mxu0 0.0
        %1175 = vmatprep.subr.mxu0 0.0
        %1176 = vmatpush1.xpose.msra.mxu0 0.0
        %1177 = vmatprep.subr.mxu0 0.0
        %1178 = vmatpush1.xpose.msra.mxu0 0.0
        %1179 = vmatprep.subr.mxu0 0.0
        %1180 = vmatpush1.xpose.msra.mxu0 0.0
        %1181 = vmatprep.subr.mxu0 0.0
        %1182 = vmatpush1.xpose.msra.mxu0 0.0
        %1183 = vmatprep.subr.mxu0 0.0
        %1184 = vmatpush1.xpose.msra.mxu0 0.0
        %1185 = vmatprep.subr.mxu0 0.0
        %1186 = vmatpush1.xpose.msra.mxu0 0.0
        %1187 = vmatprep.subr.mxu0 0.0
        %1188 = vmatpush1.xpose.msra.mxu0 0.0
        %1189 = vmatprep.subr.mxu0 0.0
        %1190 = vmatpush1.xpose.msra.mxu0 0.0
        %1191 = vmatprep.subr.mxu0 0.0
        %1192 = vmatpush1.xpose.msra.mxu0 0.0
        %1193 = vmatprep.subr.mxu0 0.0
        %1194 = vmatpush1.xpose.msra.mxu0 0.0
        %1195 = vmatprep.mubr.f32.mxu0 0.0
        %1196 = vmatmul.mubr.f32.gmra.mrb[0].mxu0 %v1127
        %v1197 = vpop.f32.mrb[0].mxu0
        %v1198 = vadd.f32 0.0, %v1197
        %v1199 = vpop.f32.mrb[0].mxu0
        %1200 = vdwg.mxu0
        %v1201 = vsel %vm621, %v1198, -inf
        %1202 = vmax.xlane.f32.xlu0 %v1201
        %v1203 = vpop.xlane.xlu0 %1202
        %v1204 = vsub.f32 %v1198, %v1203
        %v1205 = vmul.f32 %v1204, 1.442695
        %v1206 = vpow.pop %v1205
        %v1207 = vsel %vm621, %v1206, 0.0
        %1208 = vadd.xlane.f32.xlu0 %v1207
        %v1209 = vpop.xlane.xlu0 %1208
        %v1210 = vrcp.pop %v1209
        %v1211 = vmul.f32 %v1206, %v1210
        %v1212 = vmul.f32 %v1211, 0.25
        %v1213 = vld [vmem:[%s531] sm:$0xff]
        %v1214 = vadd.f32 %v1213, %v1212
        %1215 = vst.msk [vmem:[%s531] sm:$0xff] %vm621, %v1214
        %1216 = vrot.lane.b32.xlu0 %v615, 40
        %v1217 = vpop.permute.xlu0 %1216
        %v1220 = vsel %vm621, %v1211, 0
        %1222 = vmatprep.subr.mxu0 0.0
        %1223 = vmatpush1.msra.mxu0 %v1217
        %1224 = vmatprep.subr.mxu0 0.0
        %1225 = vmatpush1.msra.mxu0 0.0
        %1226 = vmatprep.subr.mxu0 0.0
        %1227 = vmatpush1.msra.mxu0 0.0
        %1228 = vmatprep.subr.mxu0 0.0
        %1229 = vmatpush1.msra.mxu0 0.0
        %1230 = vmatprep.subr.mxu0 0.0
        %1231 = vmatpush1.msra.mxu0 0.0
        %1232 = vmatprep.subr.mxu0 0.0
        %1233 = vmatpush1.msra.mxu0 0.0
        %1234 = vmatprep.subr.mxu0 0.0
        %1235 = vmatpush1.msra.mxu0 0.0
        %1236 = vmatprep.subr.mxu0 0.0
        %1237 = vmatpush1.msra.mxu0 0.0
        %1238 = vmatprep.subr.mxu0 0.0
        %1239 = vmatpush1.msra.mxu0 0.0
        %1240 = vmatprep.subr.mxu0 0.0
        %1241 = vmatpush1.msra.mxu0 0.0
        %1242 = vmatprep.subr.mxu0 0.0
        %1243 = vmatpush1.msra.mxu0 0.0
        %1244 = vmatprep.subr.mxu0 0.0
        %1245 = vmatpush1.msra.mxu0 0.0
        %1246 = vmatprep.subr.mxu0 0.0
        %1247 = vmatpush1.msra.mxu0 0.0
        %1248 = vmatprep.subr.mxu0 0.0
        %1249 = vmatpush1.msra.mxu0 0.0
        %1250 = vmatprep.subr.mxu0 0.0
        %1251 = vmatpush1.msra.mxu0 0.0
        %1252 = vmatprep.subr.mxu0 0.0
        %1253 = vmatpush1.msra.mxu0 0.0
        %1254 = vmatprep.subr.mxu0 0.0
        %1255 = vmatpush1.msra.mxu0 0.0
        %1256 = vmatprep.subr.mxu0 0.0
        %1257 = vmatpush1.msra.mxu0 0.0
        %1258 = vmatprep.subr.mxu0 0.0
        %1259 = vmatpush1.msra.mxu0 0.0
        %1260 = vmatprep.subr.mxu0 0.0
        %1261 = vmatpush1.msra.mxu0 0.0
        %1262 = vmatprep.subr.mxu0 0.0
        %1263 = vmatpush1.msra.mxu0 0.0
        %1264 = vmatprep.subr.mxu0 0.0
        %1265 = vmatpush1.msra.mxu0 0.0
        %1266 = vmatprep.subr.mxu0 0.0
        %1267 = vmatpush1.msra.mxu0 0.0
        %1268 = vmatprep.subr.mxu0 0.0
        %1269 = vmatpush1.msra.mxu0 0.0
        %1270 = vmatprep.subr.mxu0 0.0
        %1271 = vmatpush1.msra.mxu0 0.0
        %1272 = vmatprep.subr.mxu0 0.0
        %1273 = vmatpush1.msra.mxu0 0.0
        %1274 = vmatprep.subr.mxu0 0.0
        %1275 = vmatpush1.msra.mxu0 0.0
        %1276 = vmatprep.subr.mxu0 0.0
        %1277 = vmatpush1.msra.mxu0 0.0
        %1278 = vmatprep.subr.mxu0 0.0
        %1279 = vmatpush1.msra.mxu0 0.0
        %1280 = vmatprep.subr.mxu0 0.0
        %1281 = vmatpush1.msra.mxu0 0.0
        %1282 = vmatprep.subr.mxu0 0.0
        %1283 = vmatpush1.msra.mxu0 0.0
        %1284 = vmatprep.subr.mxu0 0.0
        %1285 = vmatpush1.msra.mxu0 0.0
        %1286 = vmatprep.mubr.f32.mxu0 0.0
        %1287 = vmatmul.mubr.f32.gmra.mrb[0].mxu0 %v1220
        %v1288 = vpop.f32.mrb[0].mxu0
        %v1289 = vadd.f32 0.0, %v1288
        %v1290 = vpop.f32.mrb[0].mxu0
        %1291 = vdwg.mxu0
        %1293 = vrot.lane.b32.xlu0 %v951, 8
        %v1294 = vpop.permute.xlu0 %1293
        %1297 = vrot.lane.b32.xlu0 %v1120, 16
        %v1298 = vpop.permute.xlu0 %1297
        %1301 = vrot.lane.b32.xlu0 %v1289, 24
        %v1302 = vpop.permute.xlu0 %1301
        %v1304 = vsel %vm621, %v782, %v1294
        %vm1305 = vcmask 130048
        %v1306 = vsel %vm1305, %v1304, %v1298
        %vm1307 = vcmask 195584
        %v1308 = vsel %vm1307, %v1306, %v1302
        %v1309 = vld [vmem:[%s3] sm:$0xff]
        %v1310 = vld [vmem:[%s3 + $0x8] sm:$0xff]
        %v1311 = vld [vmem:[%s3 + $0x10] sm:$0xff]
        %v1312 = vld [vmem:[%s3 + $0x18] sm:$0xff]
        %v1313 = vld [vmem:[%s4] sm:$0x1]
        %v1315 = vlaneseq
        %v1316 = vshrl.u32 %v1315, 7
        %v1317 = vsub.s32 0, %v1316
        %v1318 = vrot.slane %v1313, %v1317
        %v1321 = vsel %vm544, %v1308, 0
        %1323 = vmatprep.subr.mxu0 0.0
        %1324 = vmatpush1.msra.mxu0 %v1309
        %1325 = vmatprep.subr.mxu0 0.0
        %1326 = vmatpush1.msra.mxu0 %v1310
        %1327 = vmatprep.subr.mxu0 0.0
        %1328 = vmatpush1.msra.mxu0 %v1311
        %1329 = vmatprep.subr.mxu0 0.0
        %1330 = vmatpush1.msra.mxu0 %v1312
        %1331 = vmatprep.subr.mxu0 0.0
        %1332 = vmatpush1.msra.mxu0 0.0
        %1333 = vmatprep.subr.mxu0 0.0
        %1334 = vmatpush1.msra.mxu0 0.0
        %1335 = vmatprep.subr.mxu0 0.0
        %1336 = vmatpush1.msra.mxu0 0.0
        %1337 = vmatprep.subr.mxu0 0.0
        %1338 = vmatpush1.msra.mxu0 0.0
        %1339 = vmatprep.subr.mxu0 0.0
        %1340 = vmatpush1.msra.mxu0 0.0
        %1341 = vmatprep.subr.mxu0 0.0
        %1342 = vmatpush1.msra.mxu0 0.0
        %1343 = vmatprep.subr.mxu0 0.0
        %1344 = vmatpush1.msra.mxu0 0.0
        %1345 = vmatprep.subr.mxu0 0.0
        %1346 = vmatpush1.msra.mxu0 0.0
        %1347 = vmatprep.subr.mxu0 0.0
        %1348 = vmatpush1.msra.mxu0 0.0
        %1349 = vmatprep.subr.mxu0 0.0
        %1350 = vmatpush1.msra.mxu0 0.0
        %1351 = vmatprep.subr.mxu0 0.0
        %1352 = vmatpush1.msra.mxu0 0.0
        %1353 = vmatprep.subr.mxu0 0.0
        %1354 = vmatpush1.msra.mxu0 0.0
        %1355 = vmatprep.subr.mxu0 0.0
        %1356 = vmatpush1.msra.mxu0 0.0
        %1357 = vmatprep.subr.mxu0 0.0
        %1358 = vmatpush1.msra.mxu0 0.0
        %1359 = vmatprep.subr.mxu0 0.0
        %1360 = vmatpush1.msra.mxu0 0.0
        %1361 = vmatprep.subr.mxu0 0.0
        %1362 = vmatpush1.msra.mxu0 0.0
        %1363 = vmatprep.subr.mxu0 0.0
        %1364 = vmatpush1.msra.mxu0 0.0
        %1365 = vmatprep.subr.mxu0 0.0
        %1366 = vmatpush1.msra.mxu0 0.0
        %1367 = vmatprep.subr.mxu0 0.0
        %1368 = vmatpush1.msra.mxu0 0.0
        %1369 = vmatprep.subr.mxu0 0.0
        %1370 = vmatpush1.msra.mxu0 0.0
        %1371 = vmatprep.subr.mxu0 0.0
        %1372 = vmatpush1.msra.mxu0 0.0
        %1373 = vmatprep.subr.mxu0 0.0
        %1374 = vmatpush1.msra.mxu0 0.0
        %1375 = vmatprep.subr.mxu0 0.0
        %1376 = vmatpush1.msra.mxu0 0.0
        %1377 = vmatprep.subr.mxu0 0.0
        %1378 = vmatpush1.msra.mxu0 0.0
        %1379 = vmatprep.subr.mxu0 0.0
        %1380 = vmatpush1.msra.mxu0 0.0
        %1381 = vmatprep.subr.mxu0 0.0
        %1382 = vmatpush1.msra.mxu0 0.0
        %1383 = vmatprep.subr.mxu0 0.0
        %1384 = vmatpush1.msra.mxu0 0.0
        %1385 = vmatprep.subr.mxu0 0.0
        %1386 = vmatpush1.msra.mxu0 0.0
        %1387 = vmatprep.mubr.f32.mxu0 0.0
        %1388 = vmatmul.mubr.f32.gmra.mrb[0].mxu0 %v1321
        %v1389 = vpop.f32.mrb[0].mxu0
        %v1390 = vadd.f32 %v1318, %v1389
        %v1391 = vpop.f32.mrb[0].mxu0
        %1392 = vdwg.mxu0
        %v1393 = vadd.f32 %v532, %v1390
        %v1394 = vsel %vm544, %v1393, 0.0
        %1395 = vadd.xlane.f32.xlu0 %v1394
        %v1396 = vpop.xlane.xlu0 %1395
        %v1397 = vrcp.pop 32.0
        %v1398 = vmul.f32 %v1396, %v1397
        %v1399 = vsub.f32 %v1393, %v1398
        %v1400 = vmul.f32 %v1399, %v1399
        %v1401 = vsel %vm544, %v1400, 0.0
        %1402 = vadd.xlane.f32.xlu0 %v1401
        %v1403 = vpop.xlane.xlu0 %1402
        %v1404 = vmul.f32 %v1403, %v1397
        %v1405 = vadd.f32 %v1404, 1e-05
        %v1406 = vrsqrt.pop %v1405
        %v1407 = vmul.f32 %v1399, %v1406
        %v1408 = vld [vmem:[#allocation5] sm:$0x1]
        %v1410 = vlaneseq
        %v1411 = vshrl.u32 %v1410, 7
        %v1412 = vsub.s32 0, %v1411
        %v1413 = vrot.slane %v1408, %v1412
        %v1415 = vmul.f32 %v1407, %v1413
        %v1416 = vld [vmem:[#allocation7] sm:$0x1]
        %v1418 = vlaneseq
        %v1419 = vshrl.u32 %v1418, 7
        %v1420 = vsub.s32 0, %v1419
        %v1421 = vrot.slane %v1416, %v1420
        %v1423 = vadd.f32 %v1415, %v1421
        %v1424 = vld [vmem:[%s7] sm:$0xff]
        %v1425 = vld [vmem:[%s7 + $0x8] sm:$0xff]
        %v1426 = vld [vmem:[%s7 + $0x10] sm:$0xff]
        %v1427 = vld [vmem:[%s7 + $0x18] sm:$0xff]
        %v1428 = vld [vmem:[#allocation8] sm:$0x1]
        %v1430 = vlaneseq
        %v1431 = vshrl.u32 %v1430, 7
        %v1432 = vsub.s32 0, %v1431
        %v1433 = vrot.slane %v1428, %v1432
        %v1436 = vsel %vm544, %v1423, 0
        %1438 = vmatprep.subr.mxu0 0.0
        %1439 = vmatpush1.msra.mxu0 %v1424
        %1440 = vmatprep.subr.mxu0 0.0
        %1441 = vmatpush1.msra.mxu0 %v1425
        %1442 = vmatprep.subr.mxu0 0.0
        %1443 = vmatpush1.msra.mxu0 %v1426
        %1444 = vmatprep.subr.mxu0 0.0
        %1445 = vmatpush1.msra.mxu0 %v1427
        %1446 = vmatprep.subr.mxu0 0.0
        %1447 = vmatpush1.msra.mxu0 0.0
        %1448 = vmatprep.subr.mxu0 0.0
        %1449 = vmatpush1.msra.mxu0 0.0
        %1450 = vmatprep.subr.mxu0 0.0
        %1451 = vmatpush1.msra.mxu0 0.0
        %1452 = vmatprep.subr.mxu0 0.0
        %1453 = vmatpush1.msra.mxu0 0.0
        %1454 = vmatprep.subr.mxu0 0.0
        %1455 = vmatpush1.msra.mxu0 0.0
        %1456 = vmatprep.subr.mxu0 0.0
        %1457 = vmatpush1.msra.mxu0 0.0
        %1458 = vmatprep.subr.mxu0 0.0
        %1459 = vmatpush1.msra.mxu0 0.0
        %1460 = vmatprep.subr.mxu0 0.0
        %1461 = vmatpush1.msra.mxu0 0.0
        %1462 = vmatprep.subr.mxu0 0.0
        %1463 = vmatpush1.msra.mxu0 0.0
        %1464 = vmatprep.subr.mxu0 0.0
        %1465 = vmatpush1.msra.mxu0 0.0
        %1466 = vmatprep.subr.mxu0 0.0
        %1467 = vmatpush1.msra.mxu0 0.0
        %1468 = vmatprep.subr.mxu0 0.0
        %1469 = vmatpush1.msra.mxu0 0.0
        %1470 = vmatprep.subr.mxu0 0.0
        %1471 = vmatpush1.msra.mxu0 0.0
        %1472 = vmatprep.subr.mxu0 0.0
        %1473 = vmatpush1.msra.mxu0 0.0
        %1474 = vmatprep.subr.mxu0 0.0
        %1475 = vmatpush1.msra.mxu0 0.0
        %1476 = vmatprep.subr.mxu0 0.0
        %1477 = vmatpush1.msra.mxu0 0.0
        %1478 = vmatprep.subr.mxu0 0.0
        %1479 = vmatpush1.msra.mxu0 0.0
        %1480 = vmatprep.subr.mxu0 0.0
        %1481 = vmatpush1.msra.mxu0 0.0
        %1482 = vmatprep.subr.mxu0 0.0
        %1483 = vmatpush1.msra.mxu0 0.0
        %1484 = vmatprep.subr.mxu0 0.0
        %1485 = vmatpush1.msra.mxu0 0.0
        %1486 = vmatprep.subr.mxu0 0.0
        %1487 = vmatpush1.msra.mxu0 0.0
        %1488 = vmatprep.subr.mxu0 0.0
        %1489 = vmatpush1.msra.mxu0 0.0
        %1490 = vmatprep.subr.mxu0 0.0
        %1491 = vmatpush1.msra.mxu0 0.0
        %1492 = vmatprep.subr.mxu0 0.0
        %1493 = vmatpush1.msra.mxu0 0.0
        %1494 = vmatprep.subr.mxu0 0.0
        %1495 = vmatpush1.msra.mxu0 0.0
        %1496 = vmatprep.subr.mxu0 0.0
        %1497 = vmatpush1.msra.mxu0 0.0
        %1498 = vmatprep.subr.mxu0 0.0
        %1499 = vmatpush1.msra.mxu0 0.0
        %1500 = vmatprep.subr.mxu0 0.0
        %1501 = vmatpush1.msra.mxu0 0.0
        %1502 = vmatprep.mubr.f32.mxu0 0.0
        %1503 = vmatmul.mubr.f32.gmra.mrb[0].mxu0 %v1436
        %v1504 = vpop.f32.mrb[0].mxu0
        %v1505 = vadd.f32 %v1433, %v1504
        %v1506 = vpop.f32.mrb[0].mxu0
        %1507 = vdwg.mxu0
        %v1508 = vmax.f32 %v1505, 0.0
        %v1509 = vld [vmem:[%s9] sm:$0xff]
        %v1510 = vld [vmem:[%s9 + $0x8] sm:$0xff]
        %v1511 = vld [vmem:[%s9 + $0x10] sm:$0xff]
        %v1512 = vld [vmem:[%s9 + $0x18] sm:$0xff]
        %v1513 = vld [vmem:[%s9 + $0x20] sm:$0xff]
        %v1514 = vld [vmem:[%s9 + $0x28] sm:$0xff]
        %v1515 = vld [vmem:[%s9 + $0x30] sm:$0xff]
        %v1516 = vld [vmem:[%s9 + $0x38] sm:$0xff]
        %v1517 = vld [vmem:[%s10] sm:$0x1]
        %v1519 = vlaneseq
        %v1520 = vshrl.u32 %v1519, 7
        %v1521 = vsub.s32 0, %v1520
        %v1522 = vrot.slane %v1517, %v1521
        %vm1524 = vcmask 523264
        %v1526 = vsel %vm1524, %v1508, 0
        %1528 = vmatprep.subr.mxu0 0.0
        %1529 = vmatpush1.msra.mxu0 %v1509
        %1530 = vmatprep.subr.mxu0 0.0
        %1531 = vmatpush1.msra.mxu0 %v1510
        %1532 = vmatprep.subr.mxu0 0.0
        %1533 = vmatpush1.msra.mxu0 %v1511
        %1534 = vmatprep.subr.mxu0 0.0
        %1535 = vmatpush1.msra.mxu0 %v1512
        %1536 = vmatprep.subr.mxu0 0.0
        %1537 = vmatpush1.msra.mxu0 %v1513
        %1538 = vmatprep.subr.mxu0 0.0
        %1539 = vmatpush1.msra.mxu0 %v1514
        %1540 = vmatprep.subr.mxu0 0.0
        %1541 = vmatpush1.msra.mxu0 %v1515
        %1542 = vmatprep.subr.mxu0 0.0
        %1543 = vmatpush1.msra.mxu0 %v1516
        %1544 = vmatprep.subr.mxu0 0.0
        %1545 = vmatpush1.msra.mxu0 0.0
        %1546 = vmatprep.subr.mxu0 0.0
        %1547 = vmatpush1.msra.mxu0 0.0
        %1548 = vmatprep.subr.mxu0 0.0
        %1549 = vmatpush1.msra.mxu0 0.0
        %1550 = vmatprep.subr.mxu0 0.0
        %1551 = vmatpush1.msra.mxu0 0.0
        %1552 = vmatprep.subr.mxu0 0.0
        %1553 = vmatpush1.msra.mxu0 0.0
        %1554 = vmatprep.subr.mxu0 0.0
        %1555 = vmatpush1.msra.mxu0 0.0
        %1556 = vmatprep.subr.mxu0 0.0
        %1557 = vmatpush1.msra.mxu0 0.0
        %1558 = vmatprep.subr.mxu0 0.0
        %1559 = vmatpush1.msra.mxu0 0.0
        %1560 = vmatprep.subr.mxu0 0.0
        %1561 = vmatpush1.msra.mxu0 0.0
        %1562 = vmatprep.subr.mxu0 0.0
        %1563 = vmatpush1.msra.mxu0 0.0
        %1564 = vmatprep.subr.mxu0 0.0
        %1565 = vmatpush1.msra.mxu0 0.0
        %1566 = vmatprep.subr.mxu0 0.0
        %1567 = vmatpush1.msra.mxu0 0.0
        %1568 = vmatprep.subr.mxu0 0.0
        %1569 = vmatpush1.msra.mxu0 0.0
        %1570 = vmatprep.subr.mxu0 0.0
        %1571 = vmatpush1.msra.mxu0 0.0
        %1572 = vmatprep.subr.mxu0 0.0
        %1573 = vmatpush1.msra.mxu0 0.0
        %1574 = vmatprep.subr.mxu0 0.0
        %1575 = vmatpush1.msra.mxu0 0.0
        %1576 = vmatprep.subr.mxu0 0.0
        %1577 = vmatpush1.msra.mxu0 0.0
        %1578 = vmatprep.subr.mxu0 0.0
        %1579 = vmatpush1.msra.mxu0 0.0
        %1580 = vmatprep.subr.mxu0 0.0
        %1581 = vmatpush1.msra.mxu0 0.0
        %1582 = vmatprep.subr.mxu0 0.0
        %1583 = vmatpush1.msra.mxu0 0.0
        %1584 = vmatprep.subr.mxu0 0.0
        %1585 = vmatpush1.msra.mxu0 0.0
        %1586 = vmatprep.subr.mxu0 0.0
        %1587 = vmatpush1.msra.mxu0 0.0
        %1588 = vmatprep.subr.mxu0 0.0
        %1589 = vmatpush1.msra.mxu0 0.0
        %1590 = vmatprep.subr.mxu0 0.0
        %1591 = vmatpush1.msra.mxu0 0.0
        %1592 = vmatprep.mubr.f32.mxu0 0.0
        %1593 = vmatmul.mubr.f32.gmra.mrb[0].mxu0 %v1526
        %v1594 = vpop.f32.mrb[0].mxu0
        %v1595 = vadd.f32 %v1522, %v1594
        %v1596 = vpop.f32.mrb[0].mxu0
        %1597 = vdwg.mxu0
        %v1598 = vadd.f32 %v1423, %v1595
        %v1599 = vsel %vm544, %v1598, 0.0
        %1600 = vadd.xlane.f32.xlu0 %v1599
        %v1601 = vpop.xlane.xlu0 %1600
        %v1602 = vmul.f32 %v1601, %v1397
        %v1603 = vsub.f32 %v1598, %v1602
        %v1604 = vmul.f32 %v1603, %v1603
        %v1605 = vsel %vm544, %v1604, 0.0
        %1606 = vadd.xlane.f32.xlu0 %v1605
        %v1607 = vpop.xlane.xlu0 %1606
        %v1608 = vmul.f32 %v1607, %v1397
        %v1609 = vadd.f32 %v1608, 1e-05
        %v1610 = vrsqrt.pop %v1609
        %v1611 = vmul.f32 %v1603, %v1610
        %v1612 = vld [vmem:[%s11] sm:$0x1]
        %v1614 = vlaneseq
        %v1615 = vshrl.u32 %v1614, 7
        %v1616 = vsub.s32 0, %v1615
        %v1617 = vrot.slane %v1612, %v1616
        %v1619 = vmul.f32 %v1611, %v1617
        %v1620 = vld [vmem:[%s12] sm:$0x1]
        %v1622 = vlaneseq
        %v1623 = vshrl.u32 %v1622, 7
        %v1624 = vsub.s32 0, %v1623
        %v1625 = vrot.slane %v1620, %v1624
        %v1627 = vadd.f32 %v1619, %v1625
        %1628 = vst.msk [vmem:[%s524] sm:$0xff] %vm544, %v1627
        %s1629 = sand.u32 %s323, 1
        %s1630 = scalar_lea.sflag [#allocation4], %s1629
        %s1631 = sand.u32 %s323, 1
        %s1632 = smul.addr %s1631, 8
        %s1633 = scalar_lea.vmem [#allocation10], %s1632
        %s1634 = sand.u32 %s349, 1
        %s1635 = scalar_lea.sflag [#allocation12], %s1634
        %s1636 = sand.u32 %s349, 1
        %s1637 = smul.addr %s1636, 8
        %s1638 = scalar_lea.vmem [#allocation11], %s1637
        // Predicated region
        $region89: #{tpu_custom_call.1} parent=71 // pred_check
          %p1639 = pneg %p333
        $region90: #{tpu_custom_call.1} parent=71 // pred_check_branch
          %1641 = sbr.rel (%p1639) target = $region92
        $region91: #{tpu_custom_call.1} parent=71 // pred_region
          %s1643 = ssub.s32 128, 128
          %1644 = vsyncadd %s1630, %s1643
          %s1645 = smul.addr %s37, 128
          %s1646 = scalar_lea.hbm %s13, %s1645
          %s1648 = sshll.u32 %s1633, 4
          %s1649 = int_to_ptr.vmem [resolvable:$true] %s1648
          %1651 = dma.vmem_to_hbm [thread:$0]  %s1649, 128, %s1646, %s1630
        $region92: #{tpu_custom_call.1} parent=71 // pred_fallthru
          _
        // Predicated region
        $region93: #{tpu_custom_call.1} parent=71 // pred_check
          %p1652 = pneg %p359
        $region94: #{tpu_custom_call.1} parent=71 // pred_check_branch
          %1654 = sbr.rel (%p1652) target = $region96
        $region95: #{tpu_custom_call.1} parent=71 // pred_region
          %s1656 = ssub.s32 128, 128
          %1657 = vsyncadd %s1635, %s1656
          %s1658 = smul.addr %s37, 128
          %s1659 = scalar_lea.hbm %s14, %s1658
          %s1661 = sshll.u32 %s1638, 4
          %s1662 = int_to_ptr.vmem [resolvable:$true] %s1661
          %1664 = dma.vmem_to_hbm [thread:$0]  %s1662, 128, %s1659, %s1635
        $region96: #{tpu_custom_call.1} parent=71 // pred_fallthru
          _
      $region72: #{tpu_custom_call.1} parent=5 // pred_fallthru
        _
      %p1665 = scmp.le.s32.totalorder 2, %s32
      // Predicated region
      $region97: #{tpu_custom_call.1} parent=5 // pred_check
        %p1666 = pneg %p1665
      $region98: #{tpu_custom_call.1} parent=5 // pred_check_branch
        %1668 = sbr.rel (%p1666) target = $region100
      $region99: #{tpu_custom_call.1} parent=5 // pred_region
        %s1669 = ssub.s32 %s32, 2
        // Predicated region
        $region101: #{tpu_custom_call.1} parent=99 // pred_check
          %p1670 = pneg %p339
        $region102: #{tpu_custom_call.1} parent=99 // pred_check_branch
          %1672 = sbr.rel (%p1670) target = $region104
        $region103: #{tpu_custom_call.1} parent=99 // pred_region
          %s1673 = sand.u32 %s324, 1
          %s1674 = scalar_lea.sflag [#allocation4], %s1673
          %s1675 = sand.u32 %s324, 1
          %s1676 = smul.addr %s1675, 8
          %s1677 = scalar_lea.vmem [#allocation10], %s1676
          %1678 = dma.done %s1674, 128
        $region104: #{tpu_custom_call.1} parent=99 // pred_fallthru
          _
        // Predicated region
        $region105: #{tpu_custom_call.1} parent=99 // pred_check
          %p1679 = pneg %p365
        $region106: #{tpu_custom_call.1} parent=99 // pred_check_branch
          %1681 = sbr.rel (%p1679) target = $region108
        $region107: #{tpu_custom_call.1} parent=99 // pred_region
          %s1682 = sand.u32 %s350, 1
          %s1683 = scalar_lea.sflag [#allocation12], %s1682
          %s1684 = sand.u32 %s350, 1
          %s1685 = smul.addr %s1684, 8
          %s1686 = scalar_lea.vmem [#allocation11], %s1685
          %1687 = dma.done %s1683, 128
        $region108: #{tpu_custom_call.1} parent=99 // pred_fallthru
          _
      $region100: #{tpu_custom_call.1} parent=5 // pred_fallthru
        _
    $region6: #{tpu_custom_call.1} parent=1 // loop_footer
      %s36 = sadd.s32 1, %s32
    $region7: #{tpu_custom_call.1} parent=1 // loop_footer_branch
      %31 = sbr.rel target = $region3
    $region8: #{tpu_custom_call.1} parent=1 // loop_exit
      _
    %1688 = vsyncpa [#allocation3], 1
    %s1689 = scalar_lea.sflag [#allocation3], 1
    %1690 = vsyncpa %s1689, 1
    %1691 = vsyncpa [#allocation6], 1
    %1692 = vsyncpa [#allocation9], 1
    %1693 = vsyncpa [#allocation4], 1
    %s1694 = scalar_lea.sflag [#allocation4], 1
    %1695 = vsyncpa %s1694, 1
    %1696 = vsyncpa [#allocation12], 1
    %s1697 = scalar_lea.sflag [#allocation12], 1
    %1698 = vsyncpa %s1697, 1

</llo_original>
